<compile_context>
chip_gen: v5e
topology: v5e:2x2
jax: 0.10.0
libtpu: 0.0.40
codegen_flags: <defaults>
</compile_context>

<pallas_src>
import math

import jax
import jax.numpy as jnp
from jax import lax
from jax.experimental import pallas as pl
from jax.experimental.pallas import tpu as pltpu

# --- small, module-consistent configuration -----------------------------
S = 16                 # sequence length (tokens)
D = 128                # input_dimension
H = 8                  # num_heads
DK = D // H            # key_dimension = input_dimension / 8
N_LAYERS = 6           # n
LN_EPS = 1e-5          # nn.LayerNorm default


def _layernorm_fast(x, w, b):
    # var = E[x^2] - mu^2: two independent lane reductions (XLU) instead of a
    # dependent mean -> (x-mu)^2 -> mean chain.  Values are O(1) f32 -> safe.
    mu = jnp.mean(x, axis=-1, keepdims=True)
    ms = jnp.mean(x * x, axis=-1, keepdims=True)
    var = ms - mu * mu
    return (x - mu) * lax.rsqrt(var + LN_EPS) * w + b


def _layernorm_ref(x, w, b):
    mu = jnp.mean(x, axis=-1, keepdims=True)
    var = jnp.mean((x - mu) ** 2, axis=-1, keepdims=True)
    return (x - mu) * lax.rsqrt(var + LN_EPS) * w + b


def encoder_kernel(x_ref, wqkv_ref, bqkv_ref, wo_ref, bo_ref,
                   wff_ref, bff_ref, lnw_ref, lnb_ref, mask_ref, out_ref):
    bf = jnp.bfloat16

    # ---- loop-invariant loads / broadcasts, hoisted out of the unrolled loop
    wqkv = wqkv_ref[...]                                 # [D, 3D] bf16
    wo = wo_ref[...]                                     # [D, D]  bf16
    wff = wff_ref[...]                                   # [D, D]  bf16
    mask_bf = mask_ref[...]                              # [D, D]  bf16 block-diag 0/1
    bqkv = jnp.broadcast_to(bqkv_ref[...], (S, 3 * D))   # f32
    bo = jnp.broadcast_to(bo_ref[...], (S, D))
    bff = jnp.broadcast_to(bff_ref[...], (S, D))
    lnw = jnp.broadcast_to(lnw_ref[...], (S, D))
    lnb = jnp.broadcast_to(lnb_ref[...], (S, D))

    x = x_ref[0]                                         # [S, D] f32

    # The 6 encoder blocks share one set of weights (the PyTorch module reuses
    # the same sub-modules); fully unroll the short fixed-trip-count loop.
    for _ in range(N_LAYERS):
        # Fused Q|K|V projection (one wide MXU matmul); the 1/sqrt(DK)=0.25
        # score scale is pre-folded (losslessly) into the Q weights/bias.
        qkv = jnp.dot(x.astype(bf), wqkv,
                      preferred_element_type=jnp.float32) + bqkv
        q = qkv[:, 0:D].astype(bf)                       # [S, D]
        kv = qkv[:, D:3 * D].astype(bf)                  # [S, 2D]

        # Block-diagonal K and V slabs: tile K|V 8x along sublanes (one
        # aligned concat) and mask with the hoisted 0/1 block-diagonal mask.
        # Block (h,h) of bdk/bdv is K_h / V_h ([S, DK]).
        bdkv = jnp.concatenate([kv] * H, axis=0)         # [D, 2D]
        bdk = bdkv[:, 0:D] * mask_bf                     # [D, D]
        bdv = bdkv[:, D:2 * D] * mask_bf                 # [D, D]

        # Score slab: column block h = Q_h @ K_h^T  (single [S,D]x[D,D] MXU op,
        # contracting last dims -> no explicit transpose).
        s = lax.dot_general(q, bdk, (((1,), (1,)), ((), ())),
                            preferred_element_type=jnp.float32)
        # One row-global max (shift-invariant per block; >= each block's max).
        s = s - jnp.max(s, axis=-1, keepdims=True)
        p = jnp.exp(s)
        p_bf = p.astype(bf)
        # Per-head softmax denominators, broadcast across each block's columns,
        # via one matmul against the block-diagonal ones mask (MXU, not XLU).
        denom = jnp.dot(p_bf, mask_bf, preferred_element_type=jnp.float32)
        # Unnormalized per-head contexts already in concatenated-head layout.
        ctx = jnp.dot(p_bf, bdv, preferred_element_type=jnp.float32)
        ctx = ctx * pl.reciprocal(denom, approx=True)    # [S, D]

        attn = jnp.dot(ctx.astype(bf), wo,
                       preferred_element_type=jnp.float32) + bo
        a1 = _layernorm_fast(x + attn, lnw, lnb)
        ff = jnp.dot(a1.astype(bf), wff,
                     preferred_element_type=jnp.float32) + bff
        x = _layernorm_fast(a1 + ff, lnw, lnb)

    out_ref[0] = x


def prepare_params(p):
    """Fuse Q|K|V, fold the score scale into Q, cast weights to bf16, build the
    block-diagonal head mask.  Call ONCE, outside the per-forward path."""
    scale = 1.0 / math.sqrt(DK)   # = 0.25 (power of two -> lossless fold)
    wqkv = jnp.concatenate([p["wq"] * scale, p["wk"], p["wv"]], axis=1)
    bqkv = jnp.concatenate([p["bq"] * scale, p["bk"], p["bv"]], axis=1)
    blk = jnp.arange(D) // DK
    bdmask = (blk[:, None] == blk[None, :]).astype(jnp.bfloat16)  # [D, D]
    return dict(
        wqkv=wqkv.astype(jnp.bfloat16),
        bqkv=bqkv.astype(jnp.float32),
        wo=p["wo"].astype(jnp.bfloat16), bo=p["bo"],
        wff=p["wff"].astype(jnp.bfloat16), bff=p["bff"],
        lnw=p["lnw"], lnb=p["lnb"],
        bdmask=bdmask,
    )


@jax.jit
def transformer_encoder(x, prep):
    """x: [B, S, D] batch of independent sequences."""
    B = x.shape[0]
    full = lambda shape: pl.BlockSpec(shape, lambda b: tuple(0 for _ in shape))
    in_specs = [
        pl.BlockSpec((1, S, D), lambda b: (b, 0, 0)),   # activations: pipelined
        full((D, 3 * D)),                               # weights: constant index
        full((1, 3 * D)),                               # -> stay VMEM resident
        full((D, D)),
        full((1, D)),
        full((D, D)),
        full((1, D)),
        full((1, D)),
        full((1, D)),
        full((D, D)),                                   # block-diagonal mask
    ]
    return pl.pallas_call(
        encoder_kernel,
        out_shape=jax.ShapeDtypeStruct(x.shape, x.dtype),
        grid=(B,),
        in_specs=in_specs,
        out_specs=pl.BlockSpec((1, S, D), lambda b: (b, 0, 0)),
        compiler_params=pltpu.CompilerParams(
            dimension_semantics=("parallel",)),
    )(x, prep["wqkv"], prep["bqkv"], prep["wo"], prep["bo"],
      prep["wff"], prep["bff"], prep["lnw"], prep["lnb"], prep["bdmask"])


# --- pure-JAX reference mirroring the PyTorch module structure ------------
# (per-head q/k/v Linear, scaled dot-product attention, concat, final Linear,
#  add+LayerNorm, Linear FF, add+LayerNorm, repeated n times with shared
#  weights).  Matmul inputs are cast to bf16 with f32 accumulation to match
#  the kernel's MXU precision; softmax/LayerNorm are exact f32.
def reference_forward(x, p):
    bf = jnp.bfloat16
    scale = 1.0 / math.sqrt(DK)
    wq, wk, wv = p["wq"].astype(bf), p["wk"].astype(bf), p["wv"].astype(bf)
    wo, wff = p["wo"].astype(bf), p["wff"].astype(bf)
    for _ in range(N_LAYERS):
        xb = x.astype(bf)
        q = jnp.dot(xb, wq, preferred_element_type=jnp.float32) + p["bq"]
        k = jnp.dot(xb, wk, preferred_element_type=jnp.float32) + p["bk"]
        v = jnp.dot(xb, wv, preferred_element_type=jnp.float32) + p["bv"]
        heads = []
        for h in range(H):
            lo, hi = h * DK, (h + 1) * DK
            s = jnp.dot(q[:, lo:hi].astype(bf), k[:, lo:hi].astype(bf).T,
                        preferred_element_type=jnp.float32) * scale
            pr = jax.nn.softmax(s, axis=1)
            heads.append(jnp.dot(pr.astype(bf), v[:, lo:hi].astype(bf),
                                 preferred_element_type=jnp.float32))
        attn = jnp.dot(jnp.concatenate(heads, axis=1).astype(bf), wo,
                       preferred_element_type=jnp.float32) + p["bo"]
        a1 = _layernorm_ref(x + attn, p["lnw"], p["lnb"])
        ff = jnp.dot(a1.astype(bf), wff,
                     preferred_element_type=jnp.float32) + p["bff"]
        x = _layernorm_ref(a1 + ff, p["lnw"], p["lnb"])
    return x


def make_params(key):
    ks = jax.random.split(key, 8)
    init = lambda k, shape, s=0.05: (s * jax.random.normal(k, shape)).astype(jnp.float32)
    return {
        "wq": init(ks[0], (D, H * DK)), "bq": init(ks[1], (1, H * DK)),
        "wk": init(ks[2], (D, H * DK)), "bk": init(ks[3], (1, H * DK)),
        "wv": init(ks[4], (D, H * DK)), "bv": init(ks[5], (1, H * DK)),
        "wo": init(ks[6], (H * DK, D)), "bo": jnp.zeros((1, D), jnp.float32),
        "wff": init(ks[7], (D, D)),     "bff": jnp.zeros((1, D), jnp.float32),
        "lnw": jnp.ones((1, D), jnp.float32),   # LayerNorm default init
        "lnb": jnp.zeros((1, D), jnp.float32),
    }


if __name__ == "__main__":
    key = jax.random.PRNGKey(0)
    k_x, k_p = jax.random.split(key)
    B = 2
    x = jax.random.normal(k_x, (B, S, D), dtype=jnp.float32)
    params = make_params(k_p)
    prep = prepare_params(params)   # hoisted out of the per-call path

    out = jax.block_until_ready(transformer_encoder(x, prep))
    ref = jnp.stack([reference_forward(x[b], params) for b in range(B)])

    assert out.shape == (B, S, D)
    max_diff = float(jnp.max(jnp.abs(out - ref)))
    assert jnp.allclose(out, ref, atol=2e-2, rtol=2e-2), (
        "mismatch vs reference, max abs diff = %g" % max_diff)
    print("KERNEL_OK")
</pallas_src>

<mosaic_0001>
module attributes {stable_mosaic.version = 11 : i64} {
  func.func @encoder_kernel(%arg0: i32, %arg1: memref<1x16x128xf32, #tpu.memory_space<vmem>>, %arg2: memref<128x384xbf16, #tpu.memory_space<vmem>>, %arg3: memref<1x384xf32, #tpu.memory_space<vmem>>, %arg4: memref<128x128xbf16, #tpu.memory_space<vmem>>, %arg5: memref<1x128xf32, #tpu.memory_space<vmem>>, %arg6: memref<128x128xbf16, #tpu.memory_space<vmem>>, %arg7: memref<1x128xf32, #tpu.memory_space<vmem>>, %arg8: memref<1x128xf32, #tpu.memory_space<vmem>>, %arg9: memref<1x128xf32, #tpu.memory_space<vmem>>, %arg10: memref<128x128xbf16, #tpu.memory_space<vmem>>, %arg11: memref<1x16x128xf32, #tpu.memory_space<vmem>>) attributes {dimension_semantics = [#tpu.dimension_semantics<parallel>], iteration_bounds = array<i64: 2>, scalar_prefetch = 0 : i64, scratch_operands = 0 : i64, tpu.core_type = #tpu.core_type<tc>, window_params = [{transform_indices = @transform_0, window_bounds = array<i64: 1, 16, 128>}, {pipeline_mode = #tpu.pipeline_mode<synchronous>, transform_indices = @transform_1, window_bounds = array<i64: 128, 384>}, {pipeline_mode = #tpu.pipeline_mode<synchronous>, transform_indices = @transform_2, window_bounds = array<i64: 1, 384>}, {pipeline_mode = #tpu.pipeline_mode<synchronous>, transform_indices = @transform_3, window_bounds = array<i64: 128, 128>}, {pipeline_mode = #tpu.pipeline_mode<synchronous>, transform_indices = @transform_4, window_bounds = array<i64: 1, 128>}, {pipeline_mode = #tpu.pipeline_mode<synchronous>, transform_indices = @transform_5, window_bounds = array<i64: 128, 128>}, {pipeline_mode = #tpu.pipeline_mode<synchronous>, transform_indices = @transform_6, window_bounds = array<i64: 1, 128>}, {pipeline_mode = #tpu.pipeline_mode<synchronous>, transform_indices = @transform_7, window_bounds = array<i64: 1, 128>}, {pipeline_mode = #tpu.pipeline_mode<synchronous>, transform_indices = @transform_8, window_bounds = array<i64: 1, 128>}, {pipeline_mode = #tpu.pipeline_mode<synchronous>, transform_indices = @transform_9, window_bounds = array<i64: 128, 128>}, {transform_indices = @transform_10, window_bounds = array<i64: 1, 16, 128>}]} {
    %c0 = arith.constant 0 : index
    %c0_0 = arith.constant 0 : index
    %0 = vector.load %arg2[%c0, %c0_0] : memref<128x384xbf16, #tpu.memory_space<vmem>>, vector<128x384xbf16>
    %c0_1 = arith.constant 0 : index
    %c0_2 = arith.constant 0 : index
    %1 = vector.load %arg4[%c0_1, %c0_2] : memref<128x128xbf16, #tpu.memory_space<vmem>>, vector<128x128xbf16>
    %c0_3 = arith.constant 0 : index
    %c0_4 = arith.constant 0 : index
    %2 = vector.load %arg6[%c0_3, %c0_4] : memref<128x128xbf16, #tpu.memory_space<vmem>>, vector<128x128xbf16>
    %c0_5 = arith.constant 0 : index
    %c0_6 = arith.constant 0 : index
    %3 = vector.load %arg10[%c0_5, %c0_6] : memref<128x128xbf16, #tpu.memory_space<vmem>>, vector<128x128xbf16>
    %c0_7 = arith.constant 0 : index
    %c0_8 = arith.constant 0 : index
    %4 = vector.load %arg3[%c0_7, %c0_8] : memref<1x384xf32, #tpu.memory_space<vmem>>, vector<1x384xf32>
    %5 = vector.shape_cast %4 : vector<1x384xf32> to vector<1x384xf32>
    %6 = vector.broadcast %5 : vector<1x384xf32> to vector<16x384xf32>
    %c0_9 = arith.constant 0 : index
    %c0_10 = arith.constant 0 : index
    %7 = vector.load %arg5[%c0_9, %c0_10] : memref<1x128xf32, #tpu.memory_space<vmem>>, vector<1x128xf32>
    %8 = vector.shape_cast %7 : vector<1x128xf32> to vector<1x128xf32>
    %9 = vector.broadcast %8 : vector<1x128xf32> to vector<16x128xf32>
    %c0_11 = arith.constant 0 : index
    %c0_12 = arith.constant 0 : index
    %10 = vector.load %arg7[%c0_11, %c0_12] : memref<1x128xf32, #tpu.memory_space<vmem>>, vector<1x128xf32>
    %11 = vector.shape_cast %10 : vector<1x128xf32> to vector<1x128xf32>
    %12 = vector.broadcast %11 : vector<1x128xf32> to vector<16x128xf32>
    %c0_13 = arith.constant 0 : index
    %c0_14 = arith.constant 0 : index
    %13 = vector.load %arg8[%c0_13, %c0_14] : memref<1x128xf32, #tpu.memory_space<vmem>>, vector<1x128xf32>
    %14 = vector.shape_cast %13 : vector<1x128xf32> to vector<1x128xf32>
    %15 = vector.broadcast %14 : vector<1x128xf32> to vector<16x128xf32>
    %c0_15 = arith.constant 0 : index
    %c0_16 = arith.constant 0 : index
    %16 = vector.load %arg9[%c0_15, %c0_16] : memref<1x128xf32, #tpu.memory_space<vmem>>, vector<1x128xf32>
    %17 = vector.shape_cast %16 : vector<1x128xf32> to vector<1x128xf32>
    %18 = vector.broadcast %17 : vector<1x128xf32> to vector<16x128xf32>
    %c0_17 = arith.constant 0 : index
    %c0_18 = arith.constant 0 : index
    %c0_19 = arith.constant 0 : index
    %19 = vector.load %arg1[%c0_17, %c0_18, %c0_19] : memref<1x16x128xf32, #tpu.memory_space<vmem>>, vector<1x16x128xf32>
    %20 = vector.shape_cast %19 : vector<1x16x128xf32> to vector<16x128xf32>
    %21 = arith.truncf %20 : vector<16x128xf32> to vector<16x128xbf16>
    %cst = arith.constant dense<0.000000e+00> : vector<16x384xf32>
    %22 = tpu.matmul %21, %0, %cst {dimension_numbers = #tpu.dot_dimension_numbers<[1], [0], [0], [1], [0, 0, 1, 1], [], []>} : vector<16x128xbf16>, vector<128x384xbf16>, vector<16x384xf32> -> vector<16x384xf32>
    %23 = arith.addf %22, %6 : vector<16x384xf32>
    %24 = vector.extract_strided_slice %23 {offsets = [0, 0], sizes = [16, 128], strides = [1, 1]} : vector<16x384xf32> to vector<16x128xf32>
    %25 = arith.truncf %24 : vector<16x128xf32> to vector<16x128xbf16>
    %26 = vector.extract_strided_slice %23 {offsets = [0, 128], sizes = [16, 256], strides = [1, 1]} : vector<16x384xf32> to vector<16x256xf32>
    %27 = arith.truncf %26 : vector<16x256xf32> to vector<16x256xbf16>
    %28 = tpu.concatenate %27, %27, %27, %27, %27, %27, %27, %27 in 0 : vector<16x256xbf16>, vector<16x256xbf16>, vector<16x256xbf16>, vector<16x256xbf16>, vector<16x256xbf16>, vector<16x256xbf16>, vector<16x256xbf16>, vector<16x256xbf16> -> vector<128x256xbf16>
    %29 = vector.extract_strided_slice %28 {offsets = [0, 0], sizes = [128, 128], strides = [1, 1]} : vector<128x256xbf16> to vector<128x128xbf16>
    %30 = arith.mulf %29, %3 : vector<128x128xbf16>
    %31 = vector.extract_strided_slice %28 {offsets = [0, 128], sizes = [128, 128], strides = [1, 1]} : vector<128x256xbf16> to vector<128x128xbf16>
    %32 = arith.mulf %31, %3 : vector<128x128xbf16>
    %cst_20 = arith.constant dense<0.000000e+00> : vector<16x128xf32>
    %33 = tpu.matmul %25, %30, %cst_20 {dimension_numbers = #tpu.dot_dimension_numbers<[1], [1], [0], [0], [0, 0, 1, 0], [], []>} : vector<16x128xbf16>, vector<128x128xbf16>, vector<16x128xf32> -> vector<16x128xf32>
    %cst_21 = arith.constant dense<0xFF800000> : vector<16xf32>
    %34 = vector.multi_reduction <maximumf>, %33, %cst_21 [1] : vector<16x128xf32> to vector<16xf32>
    %35 = vector.shape_cast %34 : vector<16xf32> to vector<16x1xf32>
    %36 = vector.broadcast %35 : vector<16x1xf32> to vector<16x128xf32>
    %37 = arith.subf %33, %36 : vector<16x128xf32>
    %38 = math.exp %37 : vector<16x128xf32>
    %39 = arith.truncf %38 : vector<16x128xf32> to vector<16x128xbf16>
    %cst_22 = arith.constant dense<0.000000e+00> : vector<16x128xf32>
    %40 = tpu.matmul %39, %3, %cst_22 {dimension_numbers = #tpu.dot_dimension_numbers<[1], [0], [0], [1], [0, 0, 1, 1], [], []>} : vector<16x128xbf16>, vector<128x128xbf16>, vector<16x128xf32> -> vector<16x128xf32>
    %cst_23 = arith.constant dense<0.000000e+00> : vector<16x128xf32>
    %41 = tpu.matmul %39, %32, %cst_23 {dimension_numbers = #tpu.dot_dimension_numbers<[1], [0], [0], [1], [0, 0, 1, 1], [], []>} : vector<16x128xbf16>, vector<128x128xbf16>, vector<16x128xf32> -> vector<16x128xf32>
    %42 = tpu.reciprocal %40 {approx = true} : vector<16x128xf32> -> vector<16x128xf32>
    %43 = arith.mulf %41, %42 : vector<16x128xf32>
    %44 = arith.truncf %43 : vector<16x128xf32> to vector<16x128xbf16>
    %cst_24 = arith.constant dense<0.000000e+00> : vector<16x128xf32>
    %45 = tpu.matmul %44, %1, %cst_24 {dimension_numbers = #tpu.dot_dimension_numbers<[1], [0], [0], [1], [0, 0, 1, 1], [], []>} : vector<16x128xbf16>, vector<128x128xbf16>, vector<16x128xf32> -> vector<16x128xf32>
    %46 = arith.addf %45, %9 : vector<16x128xf32>
    %47 = arith.addf %20, %46 : vector<16x128xf32>
    %cst_25 = arith.constant dense<0.000000e+00> : vector<16xf32>
    %48 = vector.multi_reduction <add>, %47, %cst_25 [1] : vector<16x128xf32> to vector<16xf32>
    %49 = vector.shape_cast %48 : vector<16xf32> to vector<16x1xf32>
    %cst_26 = arith.constant 1.280000e+02 : f32
    %50 = vector.broadcast %cst_26 : f32 to vector<16x1xf32>
    %51 = arith.divf %49, %50 : vector<16x1xf32>
    %52 = arith.mulf %47, %47 : vector<16x128xf32>
    %cst_27 = arith.constant dense<0.000000e+00> : vector<16xf32>
    %53 = vector.multi_reduction <add>, %52, %cst_27 [1] : vector<16x128xf32> to vector<16xf32>
    %54 = vector.shape_cast %53 : vector<16xf32> to vector<16x1xf32>
    %cst_28 = arith.constant 1.280000e+02 : f32
    %55 = vector.broadcast %cst_28 : f32 to vector<16x1xf32>
    %56 = arith.divf %54, %55 : vector<16x1xf32>
    %57 = arith.mulf %51, %51 : vector<16x1xf32>
    %58 = arith.subf %56, %57 : vector<16x1xf32>
    %59 = vector.broadcast %51 : vector<16x1xf32> to vector<16x128xf32>
    %60 = arith.subf %47, %59 : vector<16x128xf32>
    %cst_29 = arith.constant 9.99999974E-6 : f32
    %61 = vector.broadcast %cst_29 : f32 to vector<16x1xf32>
    %62 = arith.addf %58, %61 : vector<16x1xf32>
    %63 = math.rsqrt %62 : vector<16x1xf32>
    %64 = vector.broadcast %63 : vector<16x1xf32> to vector<16x128xf32>
    %65 = arith.mulf %60, %64 : vector<16x128xf32>
    %66 = arith.mulf %65, %15 : vector<16x128xf32>
    %67 = arith.addf %66, %18 : vector<16x128xf32>
    %68 = arith.truncf %67 : vector<16x128xf32> to vector<16x128xbf16>
    %cst_30 = arith.constant dense<0.000000e+00> : vector<16x128xf32>
    %69 = tpu.matmul %68, %2, %cst_30 {dimension_numbers = #tpu.dot_dimension_numbers<[1], [0], [0], [1], [0, 0, 1, 1], [], []>} : vector<16x128xbf16>, vector<128x128xbf16>, vector<16x128xf32> -> vector<16x128xf32>
    %70 = arith.addf %69, %12 : vector<16x128xf32>
    %71 = arith.addf %67, %70 : vector<16x128xf32>
    %cst_31 = arith.constant dense<0.000000e+00> : vector<16xf32>
    %72 = vector.multi_reduction <add>, %71, %cst_31 [1] : vector<16x128xf32> to vector<16xf32>
    %73 = vector.shape_cast %72 : vector<16xf32> to vector<16x1xf32>
    %cst_32 = arith.constant 1.280000e+02 : f32
    %74 = vector.broadcast %cst_32 : f32 to vector<16x1xf32>
    %75 = arith.divf %73, %74 : vector<16x1xf32>
    %76 = arith.mulf %71, %71 : vector<16x128xf32>
    %cst_33 = arith.constant dense<0.000000e+00> : vector<16xf32>
    %77 = vector.multi_reduction <add>, %76, %cst_33 [1] : vector<16x128xf32> to vector<16xf32>
    %78 = vector.shape_cast %77 : vector<16xf32> to vector<16x1xf32>
    %cst_34 = arith.constant 1.280000e+02 : f32
    %79 = vector.broadcast %cst_34 : f32 to vector<16x1xf32>
    %80 = arith.divf %78, %79 : vector<16x1xf32>
    %81 = arith.mulf %75, %75 : vector<16x1xf32>
    %82 = arith.subf %80, %81 : vector<16x1xf32>
    %83 = vector.broadcast %75 : vector<16x1xf32> to vector<16x128xf32>
    %84 = arith.subf %71, %83 : vector<16x128xf32>
    %cst_35 = arith.constant 9.99999974E-6 : f32
    %85 = vector.broadcast %cst_35 : f32 to vector<16x1xf32>
    %86 = arith.addf %82, %85 : vector<16x1xf32>
    %87 = math.rsqrt %86 : vector<16x1xf32>
    %88 = vector.broadcast %87 : vector<16x1xf32> to vector<16x128xf32>
    %89 = arith.mulf %84, %88 : vector<16x128xf32>
    %90 = arith.mulf %89, %15 : vector<16x128xf32>
    %91 = arith.addf %90, %18 : vector<16x128xf32>
    %92 = arith.truncf %91 : vector<16x128xf32> to vector<16x128xbf16>
    %cst_36 = arith.constant dense<0.000000e+00> : vector<16x384xf32>
    %93 = tpu.matmul %92, %0, %cst_36 {dimension_numbers = #tpu.dot_dimension_numbers<[1], [0], [0], [1], [0, 0, 1, 1], [], []>} : vector<16x128xbf16>, vector<128x384xbf16>, vector<16x384xf32> -> vector<16x384xf32>
    %94 = arith.addf %93, %6 : vector<16x384xf32>
    %95 = vector.extract_strided_slice %94 {offsets = [0, 0], sizes = [16, 128], strides = [1, 1]} : vector<16x384xf32> to vector<16x128xf32>
    %96 = arith.truncf %95 : vector<16x128xf32> to vector<16x128xbf16>
    %97 = vector.extract_strided_slice %94 {offsets = [0, 128], sizes = [16, 256], strides = [1, 1]} : vector<16x384xf32> to vector<16x256xf32>
    %98 = arith.truncf %97 : vector<16x256xf32> to vector<16x256xbf16>
    %99 = tpu.concatenate %98, %98, %98, %98, %98, %98, %98, %98 in 0 : vector<16x256xbf16>, vector<16x256xbf16>, vector<16x256xbf16>, vector<16x256xbf16>, vector<16x256xbf16>, vector<16x256xbf16>, vector<16x256xbf16>, vector<16x256xbf16> -> vector<128x256xbf16>
    %100 = vector.extract_strided_slice %99 {offsets = [0, 0], sizes = [128, 128], strides = [1, 1]} : vector<128x256xbf16> to vector<128x128xbf16>
    %101 = arith.mulf %100, %3 : vector<128x128xbf16>
    %102 = vector.extract_strided_slice %99 {offsets = [0, 128], sizes = [128, 128], strides = [1, 1]} : vector<128x256xbf16> to vector<128x128xbf16>
    %103 = arith.mulf %102, %3 : vector<128x128xbf16>
    %cst_37 = arith.constant dense<0.000000e+00> : vector<16x128xf32>
    %104 = tpu.matmul %96, %101, %cst_37 {dimension_numbers = #tpu.dot_dimension_numbers<[1], [1], [0], [0], [0, 0, 1, 0], [], []>} : vector<16x128xbf16>, vector<128x128xbf16>, vector<16x128xf32> -> vector<16x128xf32>
    %cst_38 = arith.constant dense<0xFF800000> : vector<16xf32>
    %105 = vector.multi_reduction <maximumf>, %104, %cst_38 [1] : vector<16x128xf32> to vector<16xf32>
    %106 = vector.shape_cast %105 : vector<16xf32> to vector<16x1xf32>
    %107 = vector.broadcast %106 : vector<16x1xf32> to vector<16x128xf32>
    %108 = arith.subf %104, %107 : vector<16x128xf32>
    %109 = math.exp %108 : vector<16x128xf32>
    %110 = arith.truncf %109 : vector<16x128xf32> to vector<16x128xbf16>
    %cst_39 = arith.constant dense<0.000000e+00> : vector<16x128xf32>
    %111 = tpu.matmul %110, %3, %cst_39 {dimension_numbers = #tpu.dot_dimension_numbers<[1], [0], [0], [1], [0, 0, 1, 1], [], []>} : vector<16x128xbf16>, vector<128x128xbf16>, vector<16x128xf32> -> vector<16x128xf32>
    %cst_40 = arith.constant dense<0.000000e+00> : vector<16x128xf32>
    %112 = tpu.matmul %110, %103, %cst_40 {dimension_numbers = #tpu.dot_dimension_numbers<[1], [0], [0], [1], [0, 0, 1, 1], [], []>} : vector<16x128xbf16>, vector<128x128xbf16>, vector<16x128xf32> -> vector<16x128xf32>
    %113 = tpu.reciprocal %111 {approx = true} : vector<16x128xf32> -> vector<16x128xf32>
    %114 = arith.mulf %112, %113 : vector<16x128xf32>
    %115 = arith.truncf %114 : vector<16x128xf32> to vector<16x128xbf16>
    %cst_41 = arith.constant dense<0.000000e+00> : vector<16x128xf32>
    %116 = tpu.matmul %115, %1, %cst_41 {dimension_numbers = #tpu.dot_dimension_numbers<[1], [0], [0], [1], [0, 0, 1, 1], [], []>} : vector<16x128xbf16>, vector<128x128xbf16>, vector<16x128xf32> -> vector<16x128xf32>
    %117 = arith.addf %116, %9 : vector<16x128xf32>
    %118 = arith.addf %91, %117 : vector<16x128xf32>
    %cst_42 = arith.constant dense<0.000000e+00> : vector<16xf32>
    %119 = vector.multi_reduction <add>, %118, %cst_42 [1] : vector<16x128xf32> to vector<16xf32>
    %120 = vector.shape_cast %119 : vector<16xf32> to vector<16x1xf32>
    %cst_43 = arith.constant 1.280000e+02 : f32
    %121 = vector.broadcast %cst_43 : f32 to vector<16x1xf32>
    %122 = arith.divf %120, %121 : vector<16x1xf32>
    %123 = arith.mulf %118, %118 : vector<16x128xf32>
    %cst_44 = arith.constant dense<0.000000e+00> : vector<16xf32>
    %124 = vector.multi_reduction <add>, %123, %cst_44 [1] : vector<16x128xf32> to vector<16xf32>
    %125 = vector.shape_cast %124 : vector<16xf32> to vector<16x1xf32>
    %cst_45 = arith.constant 1.280000e+02 : f32
    %126 = vector.broadcast %cst_45 : f32 to vector<16x1xf32>
    %127 = arith.divf %125, %126 : vector<16x1xf32>
    %128 = arith.mulf %122, %122 : vector<16x1xf32>
    %129 = arith.subf %127, %128 : vector<16x1xf32>
    %130 = vector.broadcast %122 : vector<16x1xf32> to vector<16x128xf32>
    %131 = arith.subf %118, %130 : vector<16x128xf32>
    %cst_46 = arith.constant 9.99999974E-6 : f32
    %132 = vector.broadcast %cst_46 : f32 to vector<16x1xf32>
    %133 = arith.addf %129, %132 : vector<16x1xf32>
    %134 = math.rsqrt %133 : vector<16x1xf32>
    %135 = vector.broadcast %134 : vector<16x1xf32> to vector<16x128xf32>
    %136 = arith.mulf %131, %135 : vector<16x128xf32>
    %137 = arith.mulf %136, %15 : vector<16x128xf32>
    %138 = arith.addf %137, %18 : vector<16x128xf32>
    %139 = arith.truncf %138 : vector<16x128xf32> to vector<16x128xbf16>
    %cst_47 = arith.constant dense<0.000000e+00> : vector<16x128xf32>
    %140 = tpu.matmul %139, %2, %cst_47 {dimension_numbers = #tpu.dot_dimension_numbers<[1], [0], [0], [1], [0, 0, 1, 1], [], []>} : vector<16x128xbf16>, vector<128x128xbf16>, vector<16x128xf32> -> vector<16x128xf32>
    %141 = arith.addf %140, %12 : vector<16x128xf32>
    %142 = arith.addf %138, %141 : vector<16x128xf32>
    %cst_48 = arith.constant dense<0.000000e+00> : vector<16xf32>
    %143 = vector.multi_reduction <add>, %142, %cst_48 [1] : vector<16x128xf32> to vector<16xf32>
    %144 = vector.shape_cast %143 : vector<16xf32> to vector<16x1xf32>
    %cst_49 = arith.constant 1.280000e+02 : f32
    %145 = vector.broadcast %cst_49 : f32 to vector<16x1xf32>
    %146 = arith.divf %144, %145 : vector<16x1xf32>
    %147 = arith.mulf %142, %142 : vector<16x128xf32>
    %cst_50 = arith.constant dense<0.000000e+00> : vector<16xf32>
    %148 = vector.multi_reduction <add>, %147, %cst_50 [1] : vector<16x128xf32> to vector<16xf32>
    %149 = vector.shape_cast %148 : vector<16xf32> to vector<16x1xf32>
    %cst_51 = arith.constant 1.280000e+02 : f32
    %150 = vector.broadcast %cst_51 : f32 to vector<16x1xf32>
    %151 = arith.divf %149, %150 : vector<16x1xf32>
    %152 = arith.mulf %146, %146 : vector<16x1xf32>
    %153 = arith.subf %151, %152 : vector<16x1xf32>
    %154 = vector.broadcast %146 : vector<16x1xf32> to vector<16x128xf32>
    %155 = arith.subf %142, %154 : vector<16x128xf32>
    %cst_52 = arith.constant 9.99999974E-6 : f32
    %156 = vector.broadcast %cst_52 : f32 to vector<16x1xf32>
    %157 = arith.addf %153, %156 : vector<16x1xf32>
    %158 = math.rsqrt %157 : vector<16x1xf32>
    %159 = vector.broadcast %158 : vector<16x1xf32> to vector<16x128xf32>
    %160 = arith.mulf %155, %159 : vector<16x128xf32>
    %161 = arith.mulf %160, %15 : vector<16x128xf32>
    %162 = arith.addf %161, %18 : vector<16x128xf32>
    %163 = arith.truncf %162 : vector<16x128xf32> to vector<16x128xbf16>
    %cst_53 = arith.constant dense<0.000000e+00> : vector<16x384xf32>
    %164 = tpu.matmul %163, %0, %cst_53 {dimension_numbers = #tpu.dot_dimension_numbers<[1], [0], [0], [1], [0, 0, 1, 1], [], []>} : vector<16x128xbf16>, vector<128x384xbf16>, vector<16x384xf32> -> vector<16x384xf32>
    %165 = arith.addf %164, %6 : vector<16x384xf32>
    %166 = vector.extract_strided_slice %165 {offsets = [0, 0], sizes = [16, 128], strides = [1, 1]} : vector<16x384xf32> to vector<16x128xf32>
    %167 = arith.truncf %166 : vector<16x128xf32> to vector<16x128xbf16>
    %168 = vector.extract_strided_slice %165 {offsets = [0, 128], sizes = [16, 256], strides = [1, 1]} : vector<16x384xf32> to vector<16x256xf32>
    %169 = arith.truncf %168 : vector<16x256xf32> to vector<16x256xbf16>
    %170 = tpu.concatenate %169, %169, %169, %169, %169, %169, %169, %169 in 0 : vector<16x256xbf16>, vector<16x256xbf16>, vector<16x256xbf16>, vector<16x256xbf16>, vector<16x256xbf16>, vector<16x256xbf16>, vector<16x256xbf16>, vector<16x256xbf16> -> vector<128x256xbf16>
    %171 = vector.extract_strided_slice %170 {offsets = [0, 0], sizes = [128, 128], strides = [1, 1]} : vector<128x256xbf16> to vector<128x128xbf16>
    %172 = arith.mulf %171, %3 : vector<128x128xbf16>
    %173 = vector.extract_strided_slice %170 {offsets = [0, 128], sizes = [128, 128], strides = [1, 1]} : vector<128x256xbf16> to vector<128x128xbf16>
    %174 = arith.mulf %173, %3 : vector<128x128xbf16>
    %cst_54 = arith.constant dense<0.000000e+00> : vector<16x128xf32>
    %175 = tpu.matmul %167, %172, %cst_54 {dimension_numbers = #tpu.dot_dimension_numbers<[1], [1], [0], [0], [0, 0, 1, 0], [], []>} : vector<16x128xbf16>, vector<128x128xbf16>, vector<16x128xf32> -> vector<16x128xf32>
    %cst_55 = arith.constant dense<0xFF800000> : vector<16xf32>
    %176 = vector.multi_reduction <maximumf>, %175, %cst_55 [1] : vector<16x128xf32> to vector<16xf32>
    %177 = vector.shape_cast %176 : vector<16xf32> to vector<16x1xf32>
    %178 = vector.broadcast %177 : vector<16x1xf32> to vector<16x128xf32>
    %179 = arith.subf %175, %178 : vector<16x128xf32>
    %180 = math.exp %179 : vector<16x128xf32>
    %181 = arith.truncf %180 : vector<16x128xf32> to vector<16x128xbf16>
    %cst_56 = arith.constant dense<0.000000e+00> : vector<16x128xf32>
    %182 = tpu.matmul %181, %3, %cst_56 {dimension_numbers = #tpu.dot_dimension_numbers<[1], [0], [0], [1], [0, 0, 1, 1], [], []>} : vector<16x128xbf16>, vector<128x128xbf16>, vector<16x128xf32> -> vector<16x128xf32>
    %cst_57 = arith.constant dense<0.000000e+00> : vector<16x128xf32>
    %183 = tpu.matmul %181, %174, %cst_57 {dimension_numbers = #tpu.dot_dimension_numbers<[1], [0], [0], [1], [0, 0, 1, 1], [], []>} : vector<16x128xbf16>, vector<128x128xbf16>, vector<16x128xf32> -> vector<16x128xf32>
    %184 = tpu.reciprocal %182 {approx = true} : vector<16x128xf32> -> vector<16x128xf32>
    %185 = arith.mulf %183, %184 : vector<16x128xf32>
    %186 = arith.truncf %185 : vector<16x128xf32> to vector<16x128xbf16>
    %cst_58 = arith.constant dense<0.000000e+00> : vector<16x128xf32>
    %187 = tpu.matmul %186, %1, %cst_58 {dimension_numbers = #tpu.dot_dimension_numbers<[1], [0], [0], [1], [0, 0, 1, 1], [], []>} : vector<16x128xbf16>, vector<128x128xbf16>, vector<16x128xf32> -> vector<16x128xf32>
    %188 = arith.addf %187, %9 : vector<16x128xf32>
    %189 = arith.addf %162, %188 : vector<16x128xf32>
    %cst_59 = arith.constant dense<0.000000e+00> : vector<16xf32>
    %190 = vector.multi_reduction <add>, %189, %cst_59 [1] : vector<16x128xf32> to vector<16xf32>
    %191 = vector.shape_cast %190 : vector<16xf32> to vector<16x1xf32>
    %cst_60 = arith.constant 1.280000e+02 : f32
    %192 = vector.broadcast %cst_60 : f32 to vector<16x1xf32>
    %193 = arith.divf %191, %192 : vector<16x1xf32>
    %194 = arith.mulf %189, %189 : vector<16x128xf32>
    %cst_61 = arith.constant dense<0.000000e+00> : vector<16xf32>
    %195 = vector.multi_reduction <add>, %194, %cst_61 [1] : vector<16x128xf32> to vector<16xf32>
    %196 = vector.shape_cast %195 : vector<16xf32> to vector<16x1xf32>
    %cst_62 = arith.constant 1.280000e+02 : f32
    %197 = vector.broadcast %cst_62 : f32 to vector<16x1xf32>
    %198 = arith.divf %196, %197 : vector<16x1xf32>
    %199 = arith.mulf %193, %193 : vector<16x1xf32>
    %200 = arith.subf %198, %199 : vector<16x1xf32>
    %201 = vector.broadcast %193 : vector<16x1xf32> to vector<16x128xf32>
    %202 = arith.subf %189, %201 : vector<16x128xf32>
    %cst_63 = arith.constant 9.99999974E-6 : f32
    %203 = vector.broadcast %cst_63 : f32 to vector<16x1xf32>
    %204 = arith.addf %200, %203 : vector<16x1xf32>
    %205 = math.rsqrt %204 : vector<16x1xf32>
    %206 = vector.broadcast %205 : vector<16x1xf32> to vector<16x128xf32>
    %207 = arith.mulf %202, %206 : vector<16x128xf32>
    %208 = arith.mulf %207, %15 : vector<16x128xf32>
    %209 = arith.addf %208, %18 : vector<16x128xf32>
    %210 = arith.truncf %209 : vector<16x128xf32> to vector<16x128xbf16>
    %cst_64 = arith.constant dense<0.000000e+00> : vector<16x128xf32>
    %211 = tpu.matmul %210, %2, %cst_64 {dimension_numbers = #tpu.dot_dimension_numbers<[1], [0], [0], [1], [0, 0, 1, 1], [], []>} : vector<16x128xbf16>, vector<128x128xbf16>, vector<16x128xf32> -> vector<16x128xf32>
    %212 = arith.addf %211, %12 : vector<16x128xf32>
    %213 = arith.addf %209, %212 : vector<16x128xf32>
    %cst_65 = arith.constant dense<0.000000e+00> : vector<16xf32>
    %214 = vector.multi_reduction <add>, %213, %cst_65 [1] : vector<16x128xf32> to vector<16xf32>
    %215 = vector.shape_cast %214 : vector<16xf32> to vector<16x1xf32>
    %cst_66 = arith.constant 1.280000e+02 : f32
    %216 = vector.broadcast %cst_66 : f32 to vector<16x1xf32>
    %217 = arith.divf %215, %216 : vector<16x1xf32>
    %218 = arith.mulf %213, %213 : vector<16x128xf32>
    %cst_67 = arith.constant dense<0.000000e+00> : vector<16xf32>
    %219 = vector.multi_reduction <add>, %218, %cst_67 [1] : vector<16x128xf32> to vector<16xf32>
    %220 = vector.shape_cast %219 : vector<16xf32> to vector<16x1xf32>
    %cst_68 = arith.constant 1.280000e+02 : f32
    %221 = vector.broadcast %cst_68 : f32 to vector<16x1xf32>
    %222 = arith.divf %220, %221 : vector<16x1xf32>
    %223 = arith.mulf %217, %217 : vector<16x1xf32>
    %224 = arith.subf %222, %223 : vector<16x1xf32>
    %225 = vector.broadcast %217 : vector<16x1xf32> to vector<16x128xf32>
    %226 = arith.subf %213, %225 : vector<16x128xf32>
    %cst_69 = arith.constant 9.99999974E-6 : f32
    %227 = vector.broadcast %cst_69 : f32 to vector<16x1xf32>
    %228 = arith.addf %224, %227 : vector<16x1xf32>
    %229 = math.rsqrt %228 : vector<16x1xf32>
    %230 = vector.broadcast %229 : vector<16x1xf32> to vector<16x128xf32>
    %231 = arith.mulf %226, %230 : vector<16x128xf32>
    %232 = arith.mulf %231, %15 : vector<16x128xf32>
    %233 = arith.addf %232, %18 : vector<16x128xf32>
    %234 = arith.truncf %233 : vector<16x128xf32> to vector<16x128xbf16>
    %cst_70 = arith.constant dense<0.000000e+00> : vector<16x384xf32>
    %235 = tpu.matmul %234, %0, %cst_70 {dimension_numbers = #tpu.dot_dimension_numbers<[1], [0], [0], [1], [0, 0, 1, 1], [], []>} : vector<16x128xbf16>, vector<128x384xbf16>, vector<16x384xf32> -> vector<16x384xf32>
    %236 = arith.addf %235, %6 : vector<16x384xf32>
    %237 = vector.extract_strided_slice %236 {offsets = [0, 0], sizes = [16, 128], strides = [1, 1]} : vector<16x384xf32> to vector<16x128xf32>
    %238 = arith.truncf %237 : vector<16x128xf32> to vector<16x128xbf16>
    %239 = vector.extract_strided_slice %236 {offsets = [0, 128], sizes = [16, 256], strides = [1, 1]} : vector<16x384xf32> to vector<16x256xf32>
    %240 = arith.truncf %239 : vector<16x256xf32> to vector<16x256xbf16>
    %241 = tpu.concatenate %240, %240, %240, %240, %240, %240, %240, %240 in 0 : vector<16x256xbf16>, vector<16x256xbf16>, vector<16x256xbf16>, vector<16x256xbf16>, vector<16x256xbf16>, vector<16x256xbf16>, vector<16x256xbf16>, vector<16x256xbf16> -> vector<128x256xbf16>
    %242 = vector.extract_strided_slice %241 {offsets = [0, 0], sizes = [128, 128], strides = [1, 1]} : vector<128x256xbf16> to vector<128x128xbf16>
    %243 = arith.mulf %242, %3 : vector<128x128xbf16>
    %244 = vector.extract_strided_slice %241 {offsets = [0, 128], sizes = [128, 128], strides = [1, 1]} : vector<128x256xbf16> to vector<128x128xbf16>
    %245 = arith.mulf %244, %3 : vector<128x128xbf16>
    %cst_71 = arith.constant dense<0.000000e+00> : vector<16x128xf32>
    %246 = tpu.matmul %238, %243, %cst_71 {dimension_numbers = #tpu.dot_dimension_numbers<[1], [1], [0], [0], [0, 0, 1, 0], [], []>} : vector<16x128xbf16>, vector<128x128xbf16>, vector<16x128xf32> -> vector<16x128xf32>
    %cst_72 = arith.constant dense<0xFF800000> : vector<16xf32>
    %247 = vector.multi_reduction <maximumf>, %246, %cst_72 [1] : vector<16x128xf32> to vector<16xf32>
    %248 = vector.shape_cast %247 : vector<16xf32> to vector<16x1xf32>
    %249 = vector.broadcast %248 : vector<16x1xf32> to vector<16x128xf32>
    %250 = arith.subf %246, %249 : vector<16x128xf32>
    %251 = math.exp %250 : vector<16x128xf32>
    %252 = arith.truncf %251 : vector<16x128xf32> to vector<16x128xbf16>
    %cst_73 = arith.constant dense<0.000000e+00> : vector<16x128xf32>
    %253 = tpu.matmul %252, %3, %cst_73 {dimension_numbers = #tpu.dot_dimension_numbers<[1], [0], [0], [1], [0, 0, 1, 1], [], []>} : vector<16x128xbf16>, vector<128x128xbf16>, vector<16x128xf32> -> vector<16x128xf32>
    %cst_74 = arith.constant dense<0.000000e+00> : vector<16x128xf32>
    %254 = tpu.matmul %252, %245, %cst_74 {dimension_numbers = #tpu.dot_dimension_numbers<[1], [0], [0], [1], [0, 0, 1, 1], [], []>} : vector<16x128xbf16>, vector<128x128xbf16>, vector<16x128xf32> -> vector<16x128xf32>
    %255 = tpu.reciprocal %253 {approx = true} : vector<16x128xf32> -> vector<16x128xf32>
    %256 = arith.mulf %254, %255 : vector<16x128xf32>
    %257 = arith.truncf %256 : vector<16x128xf32> to vector<16x128xbf16>
    %cst_75 = arith.constant dense<0.000000e+00> : vector<16x128xf32>
    %258 = tpu.matmul %257, %1, %cst_75 {dimension_numbers = #tpu.dot_dimension_numbers<[1], [0], [0], [1], [0, 0, 1, 1], [], []>} : vector<16x128xbf16>, vector<128x128xbf16>, vector<16x128xf32> -> vector<16x128xf32>
    %259 = arith.addf %258, %9 : vector<16x128xf32>
    %260 = arith.addf %233, %259 : vector<16x128xf32>
    %cst_76 = arith.constant dense<0.000000e+00> : vector<16xf32>
    %261 = vector.multi_reduction <add>, %260, %cst_76 [1] : vector<16x128xf32> to vector<16xf32>
    %262 = vector.shape_cast %261 : vector<16xf32> to vector<16x1xf32>
    %cst_77 = arith.constant 1.280000e+02 : f32
    %263 = vector.broadcast %cst_77 : f32 to vector<16x1xf32>
    %264 = arith.divf %262, %263 : vector<16x1xf32>
    %265 = arith.mulf %260, %260 : vector<16x128xf32>
    %cst_78 = arith.constant dense<0.000000e+00> : vector<16xf32>
    %266 = vector.multi_reduction <add>, %265, %cst_78 [1] : vector<16x128xf32> to vector<16xf32>
    %267 = vector.shape_cast %266 : vector<16xf32> to vector<16x1xf32>
    %cst_79 = arith.constant 1.280000e+02 : f32
    %268 = vector.broadcast %cst_79 : f32 to vector<16x1xf32>
    %269 = arith.divf %267, %268 : vector<16x1xf32>
    %270 = arith.mulf %264, %264 : vector<16x1xf32>
    %271 = arith.subf %269, %270 : vector<16x1xf32>
    %272 = vector.broadcast %264 : vector<16x1xf32> to vector<16x128xf32>
    %273 = arith.subf %260, %272 : vector<16x128xf32>
    %cst_80 = arith.constant 9.99999974E-6 : f32
    %274 = vector.broadcast %cst_80 : f32 to vector<16x1xf32>
    %275 = arith.addf %271, %274 : vector<16x1xf32>
    %276 = math.rsqrt %275 : vector<16x1xf32>
    %277 = vector.broadcast %276 : vector<16x1xf32> to vector<16x128xf32>
    %278 = arith.mulf %273, %277 : vector<16x128xf32>
    %279 = arith.mulf %278, %15 : vector<16x128xf32>
    %280 = arith.addf %279, %18 : vector<16x128xf32>
    %281 = arith.truncf %280 : vector<16x128xf32> to vector<16x128xbf16>
    %cst_81 = arith.constant dense<0.000000e+00> : vector<16x128xf32>
    %282 = tpu.matmul %281, %2, %cst_81 {dimension_numbers = #tpu.dot_dimension_numbers<[1], [0], [0], [1], [0, 0, 1, 1], [], []>} : vector<16x128xbf16>, vector<128x128xbf16>, vector<16x128xf32> -> vector<16x128xf32>
    %283 = arith.addf %282, %12 : vector<16x128xf32>
    %284 = arith.addf %280, %283 : vector<16x128xf32>
    %cst_82 = arith.constant dense<0.000000e+00> : vector<16xf32>
    %285 = vector.multi_reduction <add>, %284, %cst_82 [1] : vector<16x128xf32> to vector<16xf32>
    %286 = vector.shape_cast %285 : vector<16xf32> to vector<16x1xf32>
    %cst_83 = arith.constant 1.280000e+02 : f32
    %287 = vector.broadcast %cst_83 : f32 to vector<16x1xf32>
    %288 = arith.divf %286, %287 : vector<16x1xf32>
    %289 = arith.mulf %284, %284 : vector<16x128xf32>
    %cst_84 = arith.constant dense<0.000000e+00> : vector<16xf32>
    %290 = vector.multi_reduction <add>, %289, %cst_84 [1] : vector<16x128xf32> to vector<16xf32>
    %291 = vector.shape_cast %290 : vector<16xf32> to vector<16x1xf32>
    %cst_85 = arith.constant 1.280000e+02 : f32
    %292 = vector.broadcast %cst_85 : f32 to vector<16x1xf32>
    %293 = arith.divf %291, %292 : vector<16x1xf32>
    %294 = arith.mulf %288, %288 : vector<16x1xf32>
    %295 = arith.subf %293, %294 : vector<16x1xf32>
    %296 = vector.broadcast %288 : vector<16x1xf32> to vector<16x128xf32>
    %297 = arith.subf %284, %296 : vector<16x128xf32>
    %cst_86 = arith.constant 9.99999974E-6 : f32
    %298 = vector.broadcast %cst_86 : f32 to vector<16x1xf32>
    %299 = arith.addf %295, %298 : vector<16x1xf32>
    %300 = math.rsqrt %299 : vector<16x1xf32>
    %301 = vector.broadcast %300 : vector<16x1xf32> to vector<16x128xf32>
    %302 = arith.mulf %297, %301 : vector<16x128xf32>
    %303 = arith.mulf %302, %15 : vector<16x128xf32>
    %304 = arith.addf %303, %18 : vector<16x128xf32>
    %305 = arith.truncf %304 : vector<16x128xf32> to vector<16x128xbf16>
    %cst_87 = arith.constant dense<0.000000e+00> : vector<16x384xf32>
    %306 = tpu.matmul %305, %0, %cst_87 {dimension_numbers = #tpu.dot_dimension_numbers<[1], [0], [0], [1], [0, 0, 1, 1], [], []>} : vector<16x128xbf16>, vector<128x384xbf16>, vector<16x384xf32> -> vector<16x384xf32>
    %307 = arith.addf %306, %6 : vector<16x384xf32>
    %308 = vector.extract_strided_slice %307 {offsets = [0, 0], sizes = [16, 128], strides = [1, 1]} : vector<16x384xf32> to vector<16x128xf32>
    %309 = arith.truncf %308 : vector<16x128xf32> to vector<16x128xbf16>
    %310 = vector.extract_strided_slice %307 {offsets = [0, 128], sizes = [16, 256], strides = [1, 1]} : vector<16x384xf32> to vector<16x256xf32>
    %311 = arith.truncf %310 : vector<16x256xf32> to vector<16x256xbf16>
    %312 = tpu.concatenate %311, %311, %311, %311, %311, %311, %311, %311 in 0 : vector<16x256xbf16>, vector<16x256xbf16>, vector<16x256xbf16>, vector<16x256xbf16>, vector<16x256xbf16>, vector<16x256xbf16>, vector<16x256xbf16>, vector<16x256xbf16> -> vector<128x256xbf16>
    %313 = vector.extract_strided_slice %312 {offsets = [0, 0], sizes = [128, 128], strides = [1, 1]} : vector<128x256xbf16> to vector<128x128xbf16>
    %314 = arith.mulf %313, %3 : vector<128x128xbf16>
    %315 = vector.extract_strided_slice %312 {offsets = [0, 128], sizes = [128, 128], strides = [1, 1]} : vector<128x256xbf16> to vector<128x128xbf16>
    %316 = arith.mulf %315, %3 : vector<128x128xbf16>
    %cst_88 = arith.constant dense<0.000000e+00> : vector<16x128xf32>
    %317 = tpu.matmul %309, %314, %cst_88 {dimension_numbers = #tpu.dot_dimension_numbers<[1], [1], [0], [0], [0, 0, 1, 0], [], []>} : vector<16x128xbf16>, vector<128x128xbf16>, vector<16x128xf32> -> vector<16x128xf32>
    %cst_89 = arith.constant dense<0xFF800000> : vector<16xf32>
    %318 = vector.multi_reduction <maximumf>, %317, %cst_89 [1] : vector<16x128xf32> to vector<16xf32>
    %319 = vector.shape_cast %318 : vector<16xf32> to vector<16x1xf32>
    %320 = vector.broadcast %319 : vector<16x1xf32> to vector<16x128xf32>
    %321 = arith.subf %317, %320 : vector<16x128xf32>
    %322 = math.exp %321 : vector<16x128xf32>
    %323 = arith.truncf %322 : vector<16x128xf32> to vector<16x128xbf16>
    %cst_90 = arith.constant dense<0.000000e+00> : vector<16x128xf32>
    %324 = tpu.matmul %323, %3, %cst_90 {dimension_numbers = #tpu.dot_dimension_numbers<[1], [0], [0], [1], [0, 0, 1, 1], [], []>} : vector<16x128xbf16>, vector<128x128xbf16>, vector<16x128xf32> -> vector<16x128xf32>
    %cst_91 = arith.constant dense<0.000000e+00> : vector<16x128xf32>
    %325 = tpu.matmul %323, %316, %cst_91 {dimension_numbers = #tpu.dot_dimension_numbers<[1], [0], [0], [1], [0, 0, 1, 1], [], []>} : vector<16x128xbf16>, vector<128x128xbf16>, vector<16x128xf32> -> vector<16x128xf32>
    %326 = tpu.reciprocal %324 {approx = true} : vector<16x128xf32> -> vector<16x128xf32>
    %327 = arith.mulf %325, %326 : vector<16x128xf32>
    %328 = arith.truncf %327 : vector<16x128xf32> to vector<16x128xbf16>
    %cst_92 = arith.constant dense<0.000000e+00> : vector<16x128xf32>
    %329 = tpu.matmul %328, %1, %cst_92 {dimension_numbers = #tpu.dot_dimension_numbers<[1], [0], [0], [1], [0, 0, 1, 1], [], []>} : vector<16x128xbf16>, vector<128x128xbf16>, vector<16x128xf32> -> vector<16x128xf32>
    %330 = arith.addf %329, %9 : vector<16x128xf32>
    %331 = arith.addf %304, %330 : vector<16x128xf32>
    %cst_93 = arith.constant dense<0.000000e+00> : vector<16xf32>
    %332 = vector.multi_reduction <add>, %331, %cst_93 [1] : vector<16x128xf32> to vector<16xf32>
    %333 = vector.shape_cast %332 : vector<16xf32> to vector<16x1xf32>
    %cst_94 = arith.constant 1.280000e+02 : f32
    %334 = vector.broadcast %cst_94 : f32 to vector<16x1xf32>
    %335 = arith.divf %333, %334 : vector<16x1xf32>
    %336 = arith.mulf %331, %331 : vector<16x128xf32>
    %cst_95 = arith.constant dense<0.000000e+00> : vector<16xf32>
    %337 = vector.multi_reduction <add>, %336, %cst_95 [1] : vector<16x128xf32> to vector<16xf32>
    %338 = vector.shape_cast %337 : vector<16xf32> to vector<16x1xf32>
    %cst_96 = arith.constant 1.280000e+02 : f32
    %339 = vector.broadcast %cst_96 : f32 to vector<16x1xf32>
    %340 = arith.divf %338, %339 : vector<16x1xf32>
    %341 = arith.mulf %335, %335 : vector<16x1xf32>
    %342 = arith.subf %340, %341 : vector<16x1xf32>
    %343 = vector.broadcast %335 : vector<16x1xf32> to vector<16x128xf32>
    %344 = arith.subf %331, %343 : vector<16x128xf32>
    %cst_97 = arith.constant 9.99999974E-6 : f32
    %345 = vector.broadcast %cst_97 : f32 to vector<16x1xf32>
    %346 = arith.addf %342, %345 : vector<16x1xf32>
    %347 = math.rsqrt %346 : vector<16x1xf32>
    %348 = vector.broadcast %347 : vector<16x1xf32> to vector<16x128xf32>
    %349 = arith.mulf %344, %348 : vector<16x128xf32>
    %350 = arith.mulf %349, %15 : vector<16x128xf32>
    %351 = arith.addf %350, %18 : vector<16x128xf32>
    %352 = arith.truncf %351 : vector<16x128xf32> to vector<16x128xbf16>
    %cst_98 = arith.constant dense<0.000000e+00> : vector<16x128xf32>
    %353 = tpu.matmul %352, %2, %cst_98 {dimension_numbers = #tpu.dot_dimension_numbers<[1], [0], [0], [1], [0, 0, 1, 1], [], []>} : vector<16x128xbf16>, vector<128x128xbf16>, vector<16x128xf32> -> vector<16x128xf32>
    %354 = arith.addf %353, %12 : vector<16x128xf32>
    %355 = arith.addf %351, %354 : vector<16x128xf32>
    %cst_99 = arith.constant dense<0.000000e+00> : vector<16xf32>
    %356 = vector.multi_reduction <add>, %355, %cst_99 [1] : vector<16x128xf32> to vector<16xf32>
    %357 = vector.shape_cast %356 : vector<16xf32> to vector<16x1xf32>
    %cst_100 = arith.constant 1.280000e+02 : f32
    %358 = vector.broadcast %cst_100 : f32 to vector<16x1xf32>
    %359 = arith.divf %357, %358 : vector<16x1xf32>
    %360 = arith.mulf %355, %355 : vector<16x128xf32>
    %cst_101 = arith.constant dense<0.000000e+00> : vector<16xf32>
    %361 = vector.multi_reduction <add>, %360, %cst_101 [1] : vector<16x128xf32> to vector<16xf32>
    %362 = vector.shape_cast %361 : vector<16xf32> to vector<16x1xf32>
    %cst_102 = arith.constant 1.280000e+02 : f32
    %363 = vector.broadcast %cst_102 : f32 to vector<16x1xf32>
    %364 = arith.divf %362, %363 : vector<16x1xf32>
    %365 = arith.mulf %359, %359 : vector<16x1xf32>
    %366 = arith.subf %364, %365 : vector<16x1xf32>
    %367 = vector.broadcast %359 : vector<16x1xf32> to vector<16x128xf32>
    %368 = arith.subf %355, %367 : vector<16x128xf32>
    %cst_103 = arith.constant 9.99999974E-6 : f32
    %369 = vector.broadcast %cst_103 : f32 to vector<16x1xf32>
    %370 = arith.addf %366, %369 : vector<16x1xf32>
    %371 = math.rsqrt %370 : vector<16x1xf32>
    %372 = vector.broadcast %371 : vector<16x1xf32> to vector<16x128xf32>
    %373 = arith.mulf %368, %372 : vector<16x128xf32>
    %374 = arith.mulf %373, %15 : vector<16x128xf32>
    %375 = arith.addf %374, %18 : vector<16x128xf32>
    %376 = arith.truncf %375 : vector<16x128xf32> to vector<16x128xbf16>
    %cst_104 = arith.constant dense<0.000000e+00> : vector<16x384xf32>
    %377 = tpu.matmul %376, %0, %cst_104 {dimension_numbers = #tpu.dot_dimension_numbers<[1], [0], [0], [1], [0, 0, 1, 1], [], []>} : vector<16x128xbf16>, vector<128x384xbf16>, vector<16x384xf32> -> vector<16x384xf32>
    %378 = arith.addf %377, %6 : vector<16x384xf32>
    %379 = vector.extract_strided_slice %378 {offsets = [0, 0], sizes = [16, 128], strides = [1, 1]} : vector<16x384xf32> to vector<16x128xf32>
    %380 = arith.truncf %379 : vector<16x128xf32> to vector<16x128xbf16>
    %381 = vector.extract_strided_slice %378 {offsets = [0, 128], sizes = [16, 256], strides = [1, 1]} : vector<16x384xf32> to vector<16x256xf32>
    %382 = arith.truncf %381 : vector<16x256xf32> to vector<16x256xbf16>
    %383 = tpu.concatenate %382, %382, %382, %382, %382, %382, %382, %382 in 0 : vector<16x256xbf16>, vector<16x256xbf16>, vector<16x256xbf16>, vector<16x256xbf16>, vector<16x256xbf16>, vector<16x256xbf16>, vector<16x256xbf16>, vector<16x256xbf16> -> vector<128x256xbf16>
    %384 = vector.extract_strided_slice %383 {offsets = [0, 0], sizes = [128, 128], strides = [1, 1]} : vector<128x256xbf16> to vector<128x128xbf16>
    %385 = arith.mulf %384, %3 : vector<128x128xbf16>
    %386 = vector.extract_strided_slice %383 {offsets = [0, 128], sizes = [128, 128], strides = [1, 1]} : vector<128x256xbf16> to vector<128x128xbf16>
    %387 = arith.mulf %386, %3 : vector<128x128xbf16>
    %cst_105 = arith.constant dense<0.000000e+00> : vector<16x128xf32>
    %388 = tpu.matmul %380, %385, %cst_105 {dimension_numbers = #tpu.dot_dimension_numbers<[1], [1], [0], [0], [0, 0, 1, 0], [], []>} : vector<16x128xbf16>, vector<128x128xbf16>, vector<16x128xf32> -> vector<16x128xf32>
    %cst_106 = arith.constant dense<0xFF800000> : vector<16xf32>
    %389 = vector.multi_reduction <maximumf>, %388, %cst_106 [1] : vector<16x128xf32> to vector<16xf32>
    %390 = vector.shape_cast %389 : vector<16xf32> to vector<16x1xf32>
    %391 = vector.broadcast %390 : vector<16x1xf32> to vector<16x128xf32>
    %392 = arith.subf %388, %391 : vector<16x128xf32>
    %393 = math.exp %392 : vector<16x128xf32>
    %394 = arith.truncf %393 : vector<16x128xf32> to vector<16x128xbf16>
    %cst_107 = arith.constant dense<0.000000e+00> : vector<16x128xf32>
    %395 = tpu.matmul %394, %3, %cst_107 {dimension_numbers = #tpu.dot_dimension_numbers<[1], [0], [0], [1], [0, 0, 1, 1], [], []>} : vector<16x128xbf16>, vector<128x128xbf16>, vector<16x128xf32> -> vector<16x128xf32>
    %cst_108 = arith.constant dense<0.000000e+00> : vector<16x128xf32>
    %396 = tpu.matmul %394, %387, %cst_108 {dimension_numbers = #tpu.dot_dimension_numbers<[1], [0], [0], [1], [0, 0, 1, 1], [], []>} : vector<16x128xbf16>, vector<128x128xbf16>, vector<16x128xf32> -> vector<16x128xf32>
    %397 = tpu.reciprocal %395 {approx = true} : vector<16x128xf32> -> vector<16x128xf32>
    %398 = arith.mulf %396, %397 : vector<16x128xf32>
    %399 = arith.truncf %398 : vector<16x128xf32> to vector<16x128xbf16>
    %cst_109 = arith.constant dense<0.000000e+00> : vector<16x128xf32>
    %400 = tpu.matmul %399, %1, %cst_109 {dimension_numbers = #tpu.dot_dimension_numbers<[1], [0], [0], [1], [0, 0, 1, 1], [], []>} : vector<16x128xbf16>, vector<128x128xbf16>, vector<16x128xf32> -> vector<16x128xf32>
    %401 = arith.addf %400, %9 : vector<16x128xf32>
    %402 = arith.addf %375, %401 : vector<16x128xf32>
    %cst_110 = arith.constant dense<0.000000e+00> : vector<16xf32>
    %403 = vector.multi_reduction <add>, %402, %cst_110 [1] : vector<16x128xf32> to vector<16xf32>
    %404 = vector.shape_cast %403 : vector<16xf32> to vector<16x1xf32>
    %cst_111 = arith.constant 1.280000e+02 : f32
    %405 = vector.broadcast %cst_111 : f32 to vector<16x1xf32>
    %406 = arith.divf %404, %405 : vector<16x1xf32>
    %407 = arith.mulf %402, %402 : vector<16x128xf32>
    %cst_112 = arith.constant dense<0.000000e+00> : vector<16xf32>
    %408 = vector.multi_reduction <add>, %407, %cst_112 [1] : vector<16x128xf32> to vector<16xf32>
    %409 = vector.shape_cast %408 : vector<16xf32> to vector<16x1xf32>
    %cst_113 = arith.constant 1.280000e+02 : f32
    %410 = vector.broadcast %cst_113 : f32 to vector<16x1xf32>
    %411 = arith.divf %409, %410 : vector<16x1xf32>
    %412 = arith.mulf %406, %406 : vector<16x1xf32>
    %413 = arith.subf %411, %412 : vector<16x1xf32>
    %414 = vector.broadcast %406 : vector<16x1xf32> to vector<16x128xf32>
    %415 = arith.subf %402, %414 : vector<16x128xf32>
    %cst_114 = arith.constant 9.99999974E-6 : f32
    %416 = vector.broadcast %cst_114 : f32 to vector<16x1xf32>
    %417 = arith.addf %413, %416 : vector<16x1xf32>
    %418 = math.rsqrt %417 : vector<16x1xf32>
    %419 = vector.broadcast %418 : vector<16x1xf32> to vector<16x128xf32>
    %420 = arith.mulf %415, %419 : vector<16x128xf32>
    %421 = arith.mulf %420, %15 : vector<16x128xf32>
    %422 = arith.addf %421, %18 : vector<16x128xf32>
    %423 = arith.truncf %422 : vector<16x128xf32> to vector<16x128xbf16>
    %cst_115 = arith.constant dense<0.000000e+00> : vector<16x128xf32>
    %424 = tpu.matmul %423, %2, %cst_115 {dimension_numbers = #tpu.dot_dimension_numbers<[1], [0], [0], [1], [0, 0, 1, 1], [], []>} : vector<16x128xbf16>, vector<128x128xbf16>, vector<16x128xf32> -> vector<16x128xf32>
    %425 = arith.addf %424, %12 : vector<16x128xf32>
    %426 = arith.addf %422, %425 : vector<16x128xf32>
    %cst_116 = arith.constant dense<0.000000e+00> : vector<16xf32>
    %427 = vector.multi_reduction <add>, %426, %cst_116 [1] : vector<16x128xf32> to vector<16xf32>
    %428 = vector.shape_cast %427 : vector<16xf32> to vector<16x1xf32>
    %cst_117 = arith.constant 1.280000e+02 : f32
    %429 = vector.broadcast %cst_117 : f32 to vector<16x1xf32>
    %430 = arith.divf %428, %429 : vector<16x1xf32>
    %431 = arith.mulf %426, %426 : vector<16x128xf32>
    %cst_118 = arith.constant dense<0.000000e+00> : vector<16xf32>
    %432 = vector.multi_reduction <add>, %431, %cst_118 [1] : vector<16x128xf32> to vector<16xf32>
    %433 = vector.shape_cast %432 : vector<16xf32> to vector<16x1xf32>
    %cst_119 = arith.constant 1.280000e+02 : f32
    %434 = vector.broadcast %cst_119 : f32 to vector<16x1xf32>
    %435 = arith.divf %433, %434 : vector<16x1xf32>
    %436 = arith.mulf %430, %430 : vector<16x1xf32>
    %437 = arith.subf %435, %436 : vector<16x1xf32>
    %438 = vector.broadcast %430 : vector<16x1xf32> to vector<16x128xf32>
    %439 = arith.subf %426, %438 : vector<16x128xf32>
    %cst_120 = arith.constant 9.99999974E-6 : f32
    %440 = vector.broadcast %cst_120 : f32 to vector<16x1xf32>
    %441 = arith.addf %437, %440 : vector<16x1xf32>
    %442 = math.rsqrt %441 : vector<16x1xf32>
    %443 = vector.broadcast %442 : vector<16x1xf32> to vector<16x128xf32>
    %444 = arith.mulf %439, %443 : vector<16x128xf32>
    %445 = arith.mulf %444, %15 : vector<16x128xf32>
    %446 = arith.addf %445, %18 : vector<16x128xf32>
    %c0_121 = arith.constant 0 : index
    %c0_122 = arith.constant 0 : index
    %c0_123 = arith.constant 0 : index
    %447 = vector.load %arg11[%c0_121, %c0_122, %c0_123] : memref<1x16x128xf32, #tpu.memory_space<vmem>>, vector<1x16x128xf32>
    %448 = vector.shape_cast %447 : vector<1x16x128xf32> to vector<16x128xf32>
    %449 = vector.shape_cast %446 : vector<16x128xf32> to vector<1x16x128xf32>
    tpu.vector_store %arg11[%c0_121, %c0_122, %c0_123], %449 {strides = array<i32>} : memref<1x16x128xf32, #tpu.memory_space<vmem>>, vector<1x16x128xf32>,
    return
  }
  func.func @transform_0(%arg0: i32) -> (i32, i32, i32) {
    %c0_i32 = arith.constant 0 : i32
    %c0_i32_0 = arith.constant 0 : i32
    %c0_i32_1 = arith.constant 0 : i32
    return %arg0, %c0_i32, %c0_i32_0 : i32, i32, i32
  }
  func.func @transform_1(%arg0: i32) -> (i32, i32) {
    %c0_i32 = arith.constant 0 : i32
    %c0_i32_0 = arith.constant 0 : i32
    %c0_i32_1 = arith.constant 0 : i32
    return %c0_i32, %c0_i32_0 : i32, i32
  }
  func.func @transform_2(%arg0: i32) -> (i32, i32) {
    %c0_i32 = arith.constant 0 : i32
    %c0_i32_0 = arith.constant 0 : i32
    %c0_i32_1 = arith.constant 0 : i32
    return %c0_i32, %c0_i32_0 : i32, i32
  }
  func.func @transform_3(%arg0: i32) -> (i32, i32) {
    %c0_i32 = arith.constant 0 : i32
    %c0_i32_0 = arith.constant 0 : i32
    %c0_i32_1 = arith.constant 0 : i32
    return %c0_i32, %c0_i32_0 : i32, i32
  }
  func.func @transform_4(%arg0: i32) -> (i32, i32) {
    %c0_i32 = arith.constant 0 : i32
    %c0_i32_0 = arith.constant 0 : i32
    %c0_i32_1 = arith.constant 0 : i32
    return %c0_i32, %c0_i32_0 : i32, i32
  }
  func.func @transform_5(%arg0: i32) -> (i32, i32) {
    %c0_i32 = arith.constant 0 : i32
    %c0_i32_0 = arith.constant 0 : i32
    %c0_i32_1 = arith.constant 0 : i32
    return %c0_i32, %c0_i32_0 : i32, i32
  }
  func.func @transform_6(%arg0: i32) -> (i32, i32) {
    %c0_i32 = arith.constant 0 : i32
    %c0_i32_0 = arith.constant 0 : i32
    %c0_i32_1 = arith.constant 0 : i32
    return %c0_i32, %c0_i32_0 : i32, i32
  }
  func.func @transform_7(%arg0: i32) -> (i32, i32) {
    %c0_i32 = arith.constant 0 : i32
    %c0_i32_0 = arith.constant 0 : i32
    %c0_i32_1 = arith.constant 0 : i32
    return %c0_i32, %c0_i32_0 : i32, i32
  }
  func.func @transform_8(%arg0: i32) -> (i32, i32) {
    %c0_i32 = arith.constant 0 : i32
    %c0_i32_0 = arith.constant 0 : i32
    %c0_i32_1 = arith.constant 0 : i32
    return %c0_i32, %c0_i32_0 : i32, i32
  }
  func.func @transform_9(%arg0: i32) -> (i32, i32) {
    %c0_i32 = arith.constant 0 : i32
    %c0_i32_0 = arith.constant 0 : i32
    %c0_i32_1 = arith.constant 0 : i32
    return %c0_i32, %c0_i32_0 : i32, i32
  }
  func.func @transform_10(%arg0: i32) -> (i32, i32, i32) {
    %c0_i32 = arith.constant 0 : i32
    %c0_i32_0 = arith.constant 0 : i32
    %c0_i32_1 = arith.constant 0 : i32
    return %arg0, %c0_i32, %c0_i32_0 : i32, i32, i32
  }
}

</mosaic_0001>

<llo_original>
// kernel: transformer_encoder.1
$region0: #{transformer_encoder.1}
  #allocation0 [shape = 'u32[]', space=smem, size = 0x4, offset = 0x4, fixed_abs, tag = 'smem constant byte address 0x4 - core index']
  #allocation1 [shape = 'u32[72,128]{1,0:T(1,128)}', space=vmem, size = 0x9000, scoped, tag = 'internal scratch']
  %s0 = inlined_call_operand.hbm [shape: f32[2,16,128], index: 0, kind: input, shape index: {}]
  %s1 = inlined_call_operand.hbm [shape: bf16[128,384], index: 1, kind: input, shape index: {}]
  %s2 = inlined_call_operand.vmem [shape: f32[1,384], index: 2, kind: input, shape index: {}]
  %s3 = inlined_call_operand.hbm [shape: bf16[128,128], index: 3, kind: input, shape index: {}]
  %s4 = inlined_call_operand.hbm [shape: f32[1,128], index: 4, kind: input, shape index: {}]
  %s5 = inlined_call_operand.hbm [shape: bf16[128,128], index: 5, kind: input, shape index: {}]
  %s6 = inlined_call_operand.hbm [shape: f32[1,128], index: 6, kind: input, shape index: {}]
  %s7 = inlined_call_operand.vmem [shape: f32[1,128], index: 7, kind: input, shape index: {}]
  %s8 = inlined_call_operand.hbm [shape: f32[1,128], index: 8, kind: input, shape index: {}]
  %s9 = inlined_call_operand.hbm [shape: bf16[128,128], index: 9, kind: input, shape index: {}]
  %s10 = inlined_call_operand.hbm [shape: f32[2,16,128], index: 10, kind: output, shape index: {}]
  %s11 = sld [smem:[#allocation0]]
  $region105: #{transformer_encoder.1} parent=0
    _
  %s13 = ssub.s32 1, %s11
  %s14 = scalar_select 0, %s13, %s11
  $region1: #{transformer_encoder.1} parent=0
    #allocation2 [shape = 'u8[16384]{0}', space=vmem, size = 0x4000, scoped, tag = 'input window, operand 0']
    #allocation3 [shape = 's32[2]{0}', space=sflag, size = 0x8, scoped, tag = 'scoped memory for transformer_encoder.1']
    #allocation4 [shape = 's32[2]{0}', space=sflag, size = 0x8, scoped, tag = 'scoped memory for transformer_encoder.1']
    #allocation5 [shape = 'u8[98304]{0}', space=vmem, size = 0x18000, scoped, tag = 'input window, operand 1, single buffered']
    #allocation6 [shape = 's32[1]{0}', space=sflag, size = 0x4, scoped, tag = 'scoped memory for transformer_encoder.1']
    #allocation7 [shape = 'u8[32768]{0}', space=vmem, size = 0x8000, scoped, tag = 'input window, operand 3, single buffered']
    #allocation8 [shape = 'u8[512]{0}', space=vmem, size = 0x400, scoped, tag = 'input window, operand 4, single buffered']
    #allocation9 [shape = 's32[1]{0}', space=sflag, size = 0x4, scoped, tag = 'scoped memory for transformer_encoder.1']
    #allocation10 [shape = 'u8[32768]{0}', space=vmem, size = 0x8000, scoped, tag = 'input window, operand 5, single buffered']
    #allocation11 [shape = 'u8[512]{0}', space=vmem, size = 0x400, scoped, tag = 'input window, operand 6, single buffered']
    #allocation12 [shape = 's32[1]{0}', space=sflag, size = 0x4, scoped, tag = 'scoped memory for transformer_encoder.1']
    #allocation13 [shape = 'u8[512]{0}', space=vmem, size = 0x400, scoped, tag = 'input window, operand 8, single buffered']
    #allocation14 [shape = 'u8[32768]{0}', space=vmem, size = 0x8000, scoped, tag = 'input window, operand 9, single buffered']
    #allocation15 [shape = 's32[1]{0}', space=sflag, size = 0x4, scoped, tag = 'scoped memory for transformer_encoder.1']
    #allocation16 [shape = 'u8[16384]{0}', space=vmem, size = 0x4000, scoped, tag = 'output window, operand 0']
    %15 = vsyncpa [#allocation3], 0
    %s16 = scalar_lea.sflag [#allocation3], 1
    %17 = vsyncpa %s16, 0
    %18 = vsyncpa [#allocation6], 0
    %19 = vsyncpa [#allocation9], 0
    %20 = vsyncpa [#allocation12], 0
    %21 = vsyncpa [#allocation15], 0
    %22 = vsyncpa [#allocation4], 0
    %s23 = scalar_lea.sflag [#allocation4], 1
    %24 = vsyncpa %s23, 0
    loop: start=0, step=1, limit=4
    $region2: #{transformer_encoder.1} parent=1 // loop_pre_header
      _
    $region3: #{transformer_encoder.1} parent=1 // loop_header
      %s26 = sphi 0, %s30
      %p27 = scmp.ge.s32.totalorder %s26, 4
      %s36 = sphi 0, %s38
      %s39 = sphi 0, %s36
      %s40 = sphi 0, %s39
      %s56 = sphi 0, %s40
      %s60 = sphi 0, %s60
      %s62 = sphi 0, %s60
      %s63 = sphi 0, %s62
      %s77 = sphi 0, %s63
      %s81 = sphi 0, %s81
      %s83 = sphi 0, %s81
      %s84 = sphi 0, %s83
      %s98 = sphi 0, %s84
      %s102 = sphi 0, %s102
      %s104 = sphi 0, %s102
      %s105 = sphi 0, %s104
      %s119 = sphi 0, %s105
      %s123 = sphi 0, %s123
      %s125 = sphi 0, %s123
      %s126 = sphi 0, %s125
      %s140 = sphi 0, %s126
      %s144 = sphi 0, %s144
      %s146 = sphi 0, %s144
      %s147 = sphi 0, %s146
      %s161 = sphi 0, %s147
      %s165 = sphi 0, %s165
      %s167 = sphi 0, %s165
      %s168 = sphi 0, %s167
      %s182 = sphi 0, %s168
      %s186 = sphi 0, %s186
      %s188 = sphi 0, %s186
      %s189 = sphi 0, %s188
      %s203 = sphi 0, %s189
      %s207 = sphi 0, %s207
      %s209 = sphi 0, %s207
      %s210 = sphi 0, %s209
      %s224 = sphi 0, %s210
      %s228 = sphi 0, %s228
      %s230 = sphi 0, %s228
      %s231 = sphi 0, %s230
      %s245 = sphi 0, %s231
      %s251 = sphi 0, %s253
      %s254 = sphi 0, %s251
      %s255 = sphi 0, %s254
      %s271 = sphi 0, %s255
    $region4: #{transformer_encoder.1} parent=1 // loop_header_branch
      %29 = sbr.rel (%p27) target = $region8
    $region5: #{transformer_encoder.1} parent=1 // loop_body
      %s31 = ssub.s32 %s26, 1
      %s32 = ssub.s32 %s26, 2
      %s33 = sadd.s32 %s26, 1
      %s34 = ssub.s32 %s26, %s33
      %p35 = scmp.eq.s32.totalorder %s34, 0
      %s37 = sadd.s32 %s36, 1
      %s38 = scalar_select %p35, %s36, %s37
      %p41 = pneg %p35
      %p42 = scmp.eq.s32.totalorder %s26, 1
      %p43 = por %p41, %p42
      %p44 = scmp.ne.s32.totalorder %s36, %s39
      %p45 = scmp.eq.s32.totalorder %s26, 0
      %p46 = por %p44, %p45
      %p47 = scmp.ne.s32.totalorder %s36, %s39
      %p48 = scmp.eq.s32.totalorder %s31, 1
      %p49 = por %p47, %p48
      %p50 = scmp.ne.s32.totalorder %s39, %s40
      %p51 = scmp.eq.s32.totalorder %s31, 0
      %p52 = por %p50, %p51
      %p53 = scmp.ne.s32.totalorder %s39, %s40
      %p54 = scmp.eq.s32.totalorder %s32, 1
      %p55 = por %p53, %p54
      %p57 = scmp.ne.s32.totalorder %s40, %s56
      %p58 = scmp.eq.s32.totalorder %s32, 0
      %p59 = por %p57, %p58
      %s61 = sadd.s32 %s60, 1
      %p64 = scmp.eq.s32.totalorder %s26, 1
      %p65 = scmp.ne.s32.totalorder %s60, %s62
      %p66 = scmp.eq.s32.totalorder %s26, 0
      %p67 = por %p65, %p66
      %p68 = scmp.ne.s32.totalorder %s60, %s62
      %p69 = scmp.eq.s32.totalorder %s31, 1
      %p70 = por %p68, %p69
      %p71 = scmp.ne.s32.totalorder %s62, %s63
      %p72 = scmp.eq.s32.totalorder %s31, 0
      %p73 = por %p71, %p72
      %p74 = scmp.ne.s32.totalorder %s62, %s63
      %p75 = scmp.eq.s32.totalorder %s32, 1
      %p76 = por %p74, %p75
      %p78 = scmp.ne.s32.totalorder %s63, %s77
      %p79 = scmp.eq.s32.totalorder %s32, 0
      %p80 = por %p78, %p79
      %s82 = sadd.s32 %s81, 1
      %p85 = scmp.eq.s32.totalorder %s26, 1
      %p86 = scmp.ne.s32.totalorder %s81, %s83
      %p87 = scmp.eq.s32.totalorder %s26, 0
      %p88 = por %p86, %p87
      %p89 = scmp.ne.s32.totalorder %s81, %s83
      %p90 = scmp.eq.s32.totalorder %s31, 1
      %p91 = por %p89, %p90
      %p92 = scmp.ne.s32.totalorder %s83, %s84
      %p93 = scmp.eq.s32.totalorder %s31, 0
      %p94 = por %p92, %p93
      %p95 = scmp.ne.s32.totalorder %s83, %s84
      %p96 = scmp.eq.s32.totalorder %s32, 1
      %p97 = por %p95, %p96
      %p99 = scmp.ne.s32.totalorder %s84, %s98
      %p100 = scmp.eq.s32.totalorder %s32, 0
      %p101 = por %p99, %p100
      %s103 = sadd.s32 %s102, 1
      %p106 = scmp.eq.s32.totalorder %s26, 1
      %p107 = scmp.ne.s32.totalorder %s102, %s104
      %p108 = scmp.eq.s32.totalorder %s26, 0
      %p109 = por %p107, %p108
      %p110 = scmp.ne.s32.totalorder %s102, %s104
      %p111 = scmp.eq.s32.totalorder %s31, 1
      %p112 = por %p110, %p111
      %p113 = scmp.ne.s32.totalorder %s104, %s105
      %p114 = scmp.eq.s32.totalorder %s31, 0
      %p115 = por %p113, %p114
      %p116 = scmp.ne.s32.totalorder %s104, %s105
      %p117 = scmp.eq.s32.totalorder %s32, 1
      %p118 = por %p116, %p117
      %p120 = scmp.ne.s32.totalorder %s105, %s119
      %p121 = scmp.eq.s32.totalorder %s32, 0
      %p122 = por %p120, %p121
      %s124 = sadd.s32 %s123, 1
      %p127 = scmp.eq.s32.totalorder %s26, 1
      %p128 = scmp.ne.s32.totalorder %s123, %s125
      %p129 = scmp.eq.s32.totalorder %s26, 0
      %p130 = por %p128, %p129
      %p131 = scmp.ne.s32.totalorder %s123, %s125
      %p132 = scmp.eq.s32.totalorder %s31, 1
      %p133 = por %p131, %p132
      %p134 = scmp.ne.s32.totalorder %s125, %s126
      %p135 = scmp.eq.s32.totalorder %s31, 0
      %p136 = por %p134, %p135
      %p137 = scmp.ne.s32.totalorder %s125, %s126
      %p138 = scmp.eq.s32.totalorder %s32, 1
      %p139 = por %p137, %p138
      %p141 = scmp.ne.s32.totalorder %s126, %s140
      %p142 = scmp.eq.s32.totalorder %s32, 0
      %p143 = por %p141, %p142
      %s145 = sadd.s32 %s144, 1
      %p148 = scmp.eq.s32.totalorder %s26, 1
      %p149 = scmp.ne.s32.totalorder %s144, %s146
      %p150 = scmp.eq.s32.totalorder %s26, 0
      %p151 = por %p149, %p150
      %p152 = scmp.ne.s32.totalorder %s144, %s146
      %p153 = scmp.eq.s32.totalorder %s31, 1
      %p154 = por %p152, %p153
      %p155 = scmp.ne.s32.totalorder %s146, %s147
      %p156 = scmp.eq.s32.totalorder %s31, 0
      %p157 = por %p155, %p156
      %p158 = scmp.ne.s32.totalorder %s146, %s147
      %p159 = scmp.eq.s32.totalorder %s32, 1
      %p160 = por %p158, %p159
      %p162 = scmp.ne.s32.totalorder %s147, %s161
      %p163 = scmp.eq.s32.totalorder %s32, 0
      %p164 = por %p162, %p163
      %s166 = sadd.s32 %s165, 1
      %p169 = scmp.eq.s32.totalorder %s26, 1
      %p170 = scmp.ne.s32.totalorder %s165, %s167
      %p171 = scmp.eq.s32.totalorder %s26, 0
      %p172 = por %p170, %p171
      %p173 = scmp.ne.s32.totalorder %s165, %s167
      %p174 = scmp.eq.s32.totalorder %s31, 1
      %p175 = por %p173, %p174
      %p176 = scmp.ne.s32.totalorder %s167, %s168
      %p177 = scmp.eq.s32.totalorder %s31, 0
      %p178 = por %p176, %p177
      %p179 = scmp.ne.s32.totalorder %s167, %s168
      %p180 = scmp.eq.s32.totalorder %s32, 1
      %p181 = por %p179, %p180
      %p183 = scmp.ne.s32.totalorder %s168, %s182
      %p184 = scmp.eq.s32.totalorder %s32, 0
      %p185 = por %p183, %p184
      %s187 = sadd.s32 %s186, 1
      %p190 = scmp.eq.s32.totalorder %s26, 1
      %p191 = scmp.ne.s32.totalorder %s186, %s188
      %p192 = scmp.eq.s32.totalorder %s26, 0
      %p193 = por %p191, %p192
      %p194 = scmp.ne.s32.totalorder %s186, %s188
      %p195 = scmp.eq.s32.totalorder %s31, 1
      %p196 = por %p194, %p195
      %p197 = scmp.ne.s32.totalorder %s188, %s189
      %p198 = scmp.eq.s32.totalorder %s31, 0
      %p199 = por %p197, %p198
      %p200 = scmp.ne.s32.totalorder %s188, %s189
      %p201 = scmp.eq.s32.totalorder %s32, 1
      %p202 = por %p200, %p201
      %p204 = scmp.ne.s32.totalorder %s189, %s203
      %p205 = scmp.eq.s32.totalorder %s32, 0
      %p206 = por %p204, %p205
      %s208 = sadd.s32 %s207, 1
      %p211 = scmp.eq.s32.totalorder %s26, 1
      %p212 = scmp.ne.s32.totalorder %s207, %s209
      %p213 = scmp.eq.s32.totalorder %s26, 0
      %p214 = por %p212, %p213
      %p215 = scmp.ne.s32.totalorder %s207, %s209
      %p216 = scmp.eq.s32.totalorder %s31, 1
      %p217 = por %p215, %p216
      %p218 = scmp.ne.s32.totalorder %s209, %s210
      %p219 = scmp.eq.s32.totalorder %s31, 0
      %p220 = por %p218, %p219
      %p221 = scmp.ne.s32.totalorder %s209, %s210
      %p222 = scmp.eq.s32.totalorder %s32, 1
      %p223 = por %p221, %p222
      %p225 = scmp.ne.s32.totalorder %s210, %s224
      %p226 = scmp.eq.s32.totalorder %s32, 0
      %p227 = por %p225, %p226
      %s229 = sadd.s32 %s228, 1
      %p232 = scmp.eq.s32.totalorder %s26, 1
      %p233 = scmp.ne.s32.totalorder %s228, %s230
      %p234 = scmp.eq.s32.totalorder %s26, 0
      %p235 = por %p233, %p234
      %p236 = scmp.ne.s32.totalorder %s228, %s230
      %p237 = scmp.eq.s32.totalorder %s31, 1
      %p238 = por %p236, %p237
      %p239 = scmp.ne.s32.totalorder %s230, %s231
      %p240 = scmp.eq.s32.totalorder %s31, 0
      %p241 = por %p239, %p240
      %p242 = scmp.ne.s32.totalorder %s230, %s231
      %p243 = scmp.eq.s32.totalorder %s32, 1
      %p244 = por %p242, %p243
      %p246 = scmp.ne.s32.totalorder %s231, %s245
      %p247 = scmp.eq.s32.totalorder %s32, 0
      %p248 = por %p246, %p247
      %s249 = ssub.s32 %s26, %s33
      %p250 = scmp.eq.s32.totalorder %s249, 0
      %s252 = sadd.s32 %s251, 1
      %s253 = scalar_select %p250, %s251, %s252
      %p256 = pneg %p250
      %p257 = scmp.eq.s32.totalorder %s26, 1
      %p258 = por %p256, %p257
      %p259 = scmp.ne.s32.totalorder %s251, %s254
      %p260 = scmp.eq.s32.totalorder %s26, 0
      %p261 = por %p259, %p260
      %p262 = scmp.ne.s32.totalorder %s251, %s254
      %p263 = scmp.eq.s32.totalorder %s31, 1
      %p264 = por %p262, %p263
      %p265 = scmp.ne.s32.totalorder %s254, %s255
      %p266 = scmp.eq.s32.totalorder %s31, 0
      %p267 = por %p265, %p266
      %p268 = scmp.ne.s32.totalorder %s254, %s255
      %p269 = scmp.eq.s32.totalorder %s32, 1
      %p270 = por %p268, %p269
      %p272 = scmp.ne.s32.totalorder %s255, %s271
      %p273 = scmp.eq.s32.totalorder %s32, 0
      %p274 = por %p272, %p273
      %p275 = scmp.le.s32.totalorder 1, %s26
      %p276 = scmp.lt.s32.totalorder %s26, 3
      %p277 = pnand %p275, %p276
      %p278 = pneg %p277
      // Predicated region
      $region9: #{transformer_encoder.1} parent=5 // pred_check
        _
      $region10: #{transformer_encoder.1} parent=5 // pred_check_branch
        %280 = sbr.rel (%p277) target = $region12
      $region11: #{transformer_encoder.1} parent=5 // pred_region
        %s281 = ssub.s32 %s26, 1
        // Predicated region
        $region13: #{transformer_encoder.1} parent=11 // pred_check
          %p282 = pneg %p73
        $region14: #{transformer_encoder.1} parent=11 // pred_check_branch
          %284 = sbr.rel (%p282) target = $region16
        $region15: #{transformer_encoder.1} parent=11 // pred_region
          %286 = vsyncadd [#allocation6], 0
          %s287 = sshll.u32 %s1, 4
          %s288 = int_to_ptr.hbm [resolvable:$true] %s287
          %s289 = sshll.u32 [#allocation5], 4
          %s290 = int_to_ptr.vmem [resolvable:$true] %s289
          %295 = dma.hbm_to_vmem [thread:$0]  %s288, 3072, %s290, [#allocation6], 192, 192, 12
        $region16: #{transformer_encoder.1} parent=11 // pred_fallthru
          _
        // Predicated region
        $region17: #{transformer_encoder.1} parent=11 // pred_check
          %p296 = pneg %p94
        $region18: #{transformer_encoder.1} parent=11 // pred_check_branch
          %298 = sbr.rel (%p296) target = $region20
        $region19: #{transformer_encoder.1} parent=11 // pred_region
          _
        $region20: #{transformer_encoder.1} parent=11 // pred_fallthru
          _
        // Predicated region
        $region21: #{transformer_encoder.1} parent=11 // pred_check
          %p299 = pneg %p115
        $region22: #{transformer_encoder.1} parent=11 // pred_check_branch
          %301 = sbr.rel (%p299) target = $region24
        $region23: #{transformer_encoder.1} parent=11 // pred_region
          %303 = vsyncadd [#allocation6], 0
          %s304 = sshll.u32 %s3, 4
          %s305 = int_to_ptr.hbm [resolvable:$true] %s304
          %s306 = sshll.u32 [#allocation7], 4
          %s307 = int_to_ptr.vmem [resolvable:$true] %s306
          %312 = dma.hbm_to_vmem [thread:$0]  %s305, 1024, %s307, [#allocation6], 64, 64, 4
        $region24: #{transformer_encoder.1} parent=11 // pred_fallthru
          _
        // Predicated region
        $region25: #{transformer_encoder.1} parent=11 // pred_check
          %p313 = pneg %p136
        $region26: #{transformer_encoder.1} parent=11 // pred_check_branch
          %315 = sbr.rel (%p313) target = $region28
        $region27: #{transformer_encoder.1} parent=11 // pred_region
          %317 = vsyncadd [#allocation9], 0
          %s319 = sshll.u32 %s4, 4
          %s320 = int_to_ptr.hbm [resolvable:$true] %s319
          %s321 = sshll.u32 [#allocation8], 4
          %s322 = int_to_ptr.vmem [resolvable:$true] %s321
          %324 = dma.hbm_to_vmem [thread:$0]  %s320, 16, %s322, [#allocation9]
        $region28: #{transformer_encoder.1} parent=11 // pred_fallthru
          _
        // Predicated region
        $region29: #{transformer_encoder.1} parent=11 // pred_check
          %p325 = pneg %p157
        $region30: #{transformer_encoder.1} parent=11 // pred_check_branch
          %327 = sbr.rel (%p325) target = $region32
        $region31: #{transformer_encoder.1} parent=11 // pred_region
          %329 = vsyncadd [#allocation9], 0
          %s330 = sshll.u32 %s5, 4
          %s331 = int_to_ptr.hbm [resolvable:$true] %s330
          %s332 = sshll.u32 [#allocation10], 4
          %s333 = int_to_ptr.vmem [resolvable:$true] %s332
          %338 = dma.hbm_to_vmem [thread:$0]  %s331, 1024, %s333, [#allocation9], 64, 64, 4
        $region32: #{transformer_encoder.1} parent=11 // pred_fallthru
          _
        // Predicated region
        $region33: #{transformer_encoder.1} parent=11 // pred_check
          %p339 = pneg %p178
        $region34: #{transformer_encoder.1} parent=11 // pred_check_branch
          %341 = sbr.rel (%p339) target = $region36
        $region35: #{transformer_encoder.1} parent=11 // pred_region
          %343 = vsyncadd [#allocation12], 0
          %s345 = sshll.u32 %s6, 4
          %s346 = int_to_ptr.hbm [resolvable:$true] %s345
          %s347 = sshll.u32 [#allocation11], 4
          %s348 = int_to_ptr.vmem [resolvable:$true] %s347
          %350 = dma.hbm_to_vmem [thread:$0]  %s346, 16, %s348, [#allocation12]
        $region36: #{transformer_encoder.1} parent=11 // pred_fallthru
          _
        // Predicated region
        $region37: #{transformer_encoder.1} parent=11 // pred_check
          %p351 = pneg %p199
        $region38: #{transformer_encoder.1} parent=11 // pred_check_branch
          %353 = sbr.rel (%p351) target = $region40
        $region39: #{transformer_encoder.1} parent=11 // pred_region
          _
        $region40: #{transformer_encoder.1} parent=11 // pred_fallthru
          _
        // Predicated region
        $region41: #{transformer_encoder.1} parent=11 // pred_check
          %p354 = pneg %p220
        $region42: #{transformer_encoder.1} parent=11 // pred_check_branch
          %356 = sbr.rel (%p354) target = $region44
        $region43: #{transformer_encoder.1} parent=11 // pred_region
          %358 = vsyncadd [#allocation12], 0
          %s360 = sshll.u32 %s8, 4
          %s361 = int_to_ptr.hbm [resolvable:$true] %s360
          %s362 = sshll.u32 [#allocation13], 4
          %s363 = int_to_ptr.vmem [resolvable:$true] %s362
          %365 = dma.hbm_to_vmem [thread:$0]  %s361, 16, %s363, [#allocation12]
        $region44: #{transformer_encoder.1} parent=11 // pred_fallthru
          _
        // Predicated region
        $region45: #{transformer_encoder.1} parent=11 // pred_check
          %p366 = pneg %p241
        $region46: #{transformer_encoder.1} parent=11 // pred_check_branch
          %368 = sbr.rel (%p366) target = $region48
        $region47: #{transformer_encoder.1} parent=11 // pred_region
          %370 = vsyncadd [#allocation15], 0
          %s371 = sshll.u32 %s9, 4
          %s372 = int_to_ptr.hbm [resolvable:$true] %s371
          %s373 = sshll.u32 [#allocation14], 4
          %s374 = int_to_ptr.vmem [resolvable:$true] %s373
          %379 = dma.hbm_to_vmem [thread:$0]  %s372, 1024, %s374, [#allocation15], 64, 64, 4
        $region48: #{transformer_encoder.1} parent=11 // pred_fallthru
          _
      $region12: #{transformer_encoder.1} parent=5 // pred_fallthru
        _
      %p380 = scmp.lt.s32.totalorder %s26, 2
      // Predicated region
      $region49: #{transformer_encoder.1} parent=5 // pred_check
        %p381 = pneg %p380
      $region50: #{transformer_encoder.1} parent=5 // pred_check_branch
        %383 = sbr.rel (%p381) target = $region52
      $region51: #{transformer_encoder.1} parent=5 // pred_region
        // Predicated region
        $region53: #{transformer_encoder.1} parent=51 // pred_check
          %p384 = pneg %p46
        $region54: #{transformer_encoder.1} parent=51 // pred_check_branch
          %386 = sbr.rel (%p384) target = $region56
        $region55: #{transformer_encoder.1} parent=51 // pred_region
          %s387 = sand.u32 %s36, 1
          %s388 = scalar_lea.sflag [#allocation3], %s387
          %s389 = sand.u32 %s36, 1
          %s390 = smul.addr %s389, 16
          %s391 = scalar_lea.vmem [#allocation2], %s390
          %393 = vsyncadd %s388, 0
          %s394 = smul.addr %s26, 2
          %s395 = smul.addr %s394, 8
          %s396 = scalar_lea.hbm %s0, %s395
          %s397 = sshll.u32 %s396, 4
          %s398 = int_to_ptr.hbm [resolvable:$true] %s397
          %s399 = sshll.u32 %s391, 4
          %s400 = int_to_ptr.vmem [resolvable:$true] %s399
          %405 = dma.hbm_to_vmem [thread:$0]  %s398, 256, %s400, %s388, 128, 128, 8
        $region56: #{transformer_encoder.1} parent=51 // pred_fallthru
          _
      $region52: #{transformer_encoder.1} parent=5 // pred_fallthru
        _
      %p406 = scmp.le.s32.totalorder 1, %s26
      %p407 = scmp.lt.s32.totalorder %s26, 3
      %p408 = pnand %p406, %p407
      %p409 = pneg %p408
      // Predicated region
      $region57: #{transformer_encoder.1} parent=5 // pred_check
        _
      $region58: #{transformer_encoder.1} parent=5 // pred_check_branch
        %411 = sbr.rel (%p408) target = $region60
      $region59: #{transformer_encoder.1} parent=5 // pred_region
        %s412 = ssub.s32 %s26, 1
        %s413 = sand.u32 %s39, 1
        %s414 = scalar_lea.sflag [#allocation3], %s413
        %s415 = sand.u32 %s39, 1
        %s416 = smul.addr %s415, 16
        %s417 = scalar_lea.vmem [#allocation2], %s416
        // Predicated region
        $region61: #{transformer_encoder.1} parent=59 // pred_check
          %p418 = pneg %p52
        $region62: #{transformer_encoder.1} parent=59 // pred_check_branch
          %420 = sbr.rel (%p418) target = $region64
        $region63: #{transformer_encoder.1} parent=59 // pred_region
          %422 = dma.done %s414, 256
        $region64: #{transformer_encoder.1} parent=59 // pred_fallthru
          _
        // Predicated region
        $region65: #{transformer_encoder.1} parent=59 // pred_check
          %p423 = pneg %p73
        $region66: #{transformer_encoder.1} parent=59 // pred_check_branch
          %425 = sbr.rel (%p423) target = $region68
        $region67: #{transformer_encoder.1} parent=59 // pred_region
          %427 = dma.done [#allocation6], 3072
        $region68: #{transformer_encoder.1} parent=59 // pred_fallthru
          _
        // Predicated region
        $region69: #{transformer_encoder.1} parent=59 // pred_check
          %p428 = pneg %p115
        $region70: #{transformer_encoder.1} parent=59 // pred_check_branch
          %430 = sbr.rel (%p428) target = $region72
        $region71: #{transformer_encoder.1} parent=59 // pred_region
          %432 = dma.done [#allocation6], 1024
        $region72: #{transformer_encoder.1} parent=59 // pred_fallthru
          _
        // Predicated region
        $region73: #{transformer_encoder.1} parent=59 // pred_check
          %p433 = pneg %p136
        $region74: #{transformer_encoder.1} parent=59 // pred_check_branch
          %435 = sbr.rel (%p433) target = $region76
        $region75: #{transformer_encoder.1} parent=59 // pred_region
          %437 = dma.done [#allocation9], 16
        $region76: #{transformer_encoder.1} parent=59 // pred_fallthru
          _
        // Predicated region
        $region77: #{transformer_encoder.1} parent=59 // pred_check
          %p438 = pneg %p157
        $region78: #{transformer_encoder.1} parent=59 // pred_check_branch
          %440 = sbr.rel (%p438) target = $region80
        $region79: #{transformer_encoder.1} parent=59 // pred_region
          %442 = dma.done [#allocation9], 1024
        $region80: #{transformer_encoder.1} parent=59 // pred_fallthru
          _
        // Predicated region
        $region81: #{transformer_encoder.1} parent=59 // pred_check
          %p443 = pneg %p178
        $region82: #{transformer_encoder.1} parent=59 // pred_check_branch
          %445 = sbr.rel (%p443) target = $region84
        $region83: #{transformer_encoder.1} parent=59 // pred_region
          %447 = dma.done [#allocation12], 16
        $region84: #{transformer_encoder.1} parent=59 // pred_fallthru
          _
        // Predicated region
        $region85: #{transformer_encoder.1} parent=59 // pred_check
          %p448 = pneg %p220
        $region86: #{transformer_encoder.1} parent=59 // pred_check_branch
          %450 = sbr.rel (%p448) target = $region88
        $region87: #{transformer_encoder.1} parent=59 // pred_region
          %452 = dma.done [#allocation12], 16
        $region88: #{transformer_encoder.1} parent=59 // pred_fallthru
          _
        // Predicated region
        $region89: #{transformer_encoder.1} parent=59 // pred_check
          %p453 = pneg %p241
        $region90: #{transformer_encoder.1} parent=59 // pred_check_branch
          %455 = sbr.rel (%p453) target = $region92
        $region91: #{transformer_encoder.1} parent=59 // pred_region
          %457 = dma.done [#allocation15], 1024
        $region92: #{transformer_encoder.1} parent=59 // pred_fallthru
          _
        %s458 = sand.u32 %s39, 1
        %s459 = scalar_lea.sflag [#allocation3], %s458
        %s460 = sand.u32 %s39, 1
        %s461 = smul.addr %s460, 16
        %s462 = scalar_lea.vmem [#allocation2], %s461
        %p463 = pneg %p52
        %p464 = pneg %p49
        %p465 = pneg %p73
        %p466 = pneg %p70
        %p467 = pneg %p94
        %p468 = pneg %p91
        %p469 = pneg %p115
        %p470 = pneg %p112
        %p471 = pneg %p136
        %p472 = pneg %p133
        %p473 = pneg %p157
        %p474 = pneg %p154
        %p475 = pneg %p178
        %p476 = pneg %p175
        %p477 = pneg %p199
        %p478 = pneg %p196
        %p479 = pneg %p220
        %p480 = pneg %p217
        %p481 = pneg %p241
        %p482 = pneg %p238
        %p483 = pneg %p267
        %p484 = pneg %p264
        %s485 = sand.u32 %s254, 1
        %s486 = scalar_lea.sflag [#allocation4], %s485
        %s487 = sand.u32 %s254, 1
        %s488 = smul.addr %s487, 16
        %s489 = scalar_lea.vmem [#allocation16], %s488
        %v490 = vld [vmem:[#allocation5] sm:$0xff]
        %v491 = vld [vmem:[#allocation5 + $0x8] sm:$0xf]
        %v492 = vld [vmem:[#allocation5 + $0xc] sm:$0xff]
        %v493 = vld [vmem:[#allocation5 + $0x14] sm:$0xf]
        %v494 = vld [vmem:[#allocation5 + $0x18] sm:$0xff]
        %v495 = vld [vmem:[#allocation5 + $0x20] sm:$0xf]
        %v496 = vld [vmem:[#allocation5 + $0x24] sm:$0xff]
        %v497 = vld [vmem:[#allocation5 + $0x2c] sm:$0xf]
        %v498 = vld [vmem:[#allocation5 + $0x30] sm:$0xff]
        %v499 = vld [vmem:[#allocation5 + $0x38] sm:$0xf]
        %v500 = vld [vmem:[#allocation5 + $0x3c] sm:$0xff]
        %v501 = vld [vmem:[#allocation5 + $0x44] sm:$0xf]
        %v502 = vld [vmem:[#allocation5 + $0x48] sm:$0xff]
        %v503 = vld [vmem:[#allocation5 + $0x50] sm:$0xf]
        %v504 = vld [vmem:[#allocation5 + $0x54] sm:$0xff]
        %v505 = vld [vmem:[#allocation5 + $0x5c] sm:$0xf]
        %v506 = vld [vmem:[#allocation5 + $0x60] sm:$0xff]
        %v507 = vld [vmem:[#allocation5 + $0x68] sm:$0xf]
        %v508 = vld [vmem:[#allocation5 + $0x6c] sm:$0xff]
        %v509 = vld [vmem:[#allocation5 + $0x74] sm:$0xf]
        %v510 = vld [vmem:[#allocation5 + $0x78] sm:$0xff]
        %v511 = vld [vmem:[#allocation5 + $0x80] sm:$0xf]
        %v512 = vld [vmem:[#allocation5 + $0x84] sm:$0xff]
        %v513 = vld [vmem:[#allocation5 + $0x8c] sm:$0xf]
        %v514 = vld [vmem:[#allocation5 + $0x90] sm:$0xff]
        %v515 = vld [vmem:[#allocation5 + $0x98] sm:$0xf]
        %v516 = vld [vmem:[#allocation5 + $0x9c] sm:$0xff]
        %v517 = vld [vmem:[#allocation5 + $0xa4] sm:$0xf]
        %v518 = vld [vmem:[#allocation5 + $0xa8] sm:$0xff]
        %v519 = vld [vmem:[#allocation5 + $0xb0] sm:$0xf]
        %v520 = vld [vmem:[#allocation5 + $0xb4] sm:$0xff]
        %v521 = vld [vmem:[#allocation5 + $0xbc] sm:$0xf]
        %v522 = vld [vmem:[#allocation7] sm:$0xf]
        %v523 = vld [vmem:[#allocation7 + $0x4] sm:$0xf]
        %v524 = vld [vmem:[#allocation7 + $0x8] sm:$0xf]
        %v525 = vld [vmem:[#allocation7 + $0xc] sm:$0xf]
        %v526 = vld [vmem:[#allocation7 + $0x10] sm:$0xf]
        %v527 = vld [vmem:[#allocation7 + $0x14] sm:$0xf]
        %v528 = vld [vmem:[#allocation7 + $0x18] sm:$0xf]
        %v529 = vld [vmem:[#allocation7 + $0x1c] sm:$0xf]
        %v530 = vld [vmem:[#allocation7 + $0x20] sm:$0xf]
        %v531 = vld [vmem:[#allocation7 + $0x24] sm:$0xf]
        %v532 = vld [vmem:[#allocation7 + $0x28] sm:$0xf]
        %v533 = vld [vmem:[#allocation7 + $0x2c] sm:$0xf]
        %v534 = vld [vmem:[#allocation7 + $0x30] sm:$0xf]
        %v535 = vld [vmem:[#allocation7 + $0x34] sm:$0xf]
        %v536 = vld [vmem:[#allocation7 + $0x38] sm:$0xf]
        %v537 = vld [vmem:[#allocation7 + $0x3c] sm:$0xf]
        %v538 = vld [vmem:[#allocation10] sm:$0xf]
        %v539 = vld [vmem:[#allocation10 + $0x4] sm:$0xf]
        %v540 = vld [vmem:[#allocation10 + $0x8] sm:$0xf]
        %v541 = vld [vmem:[#allocation10 + $0xc] sm:$0xf]
        %v542 = vld [vmem:[#allocation10 + $0x10] sm:$0xf]
        %v543 = vld [vmem:[#allocation10 + $0x14] sm:$0xf]
        %v544 = vld [vmem:[#allocation10 + $0x18] sm:$0xf]
        %v545 = vld [vmem:[#allocation10 + $0x1c] sm:$0xf]
        %v546 = vld [vmem:[#allocation10 + $0x20] sm:$0xf]
        %v547 = vld [vmem:[#allocation10 + $0x24] sm:$0xf]
        %v548 = vld [vmem:[#allocation10 + $0x28] sm:$0xf]
        %v549 = vld [vmem:[#allocation10 + $0x2c] sm:$0xf]
        %v550 = vld [vmem:[#allocation10 + $0x30] sm:$0xf]
        %v551 = vld [vmem:[#allocation10 + $0x34] sm:$0xf]
        %v552 = vld [vmem:[#allocation10 + $0x38] sm:$0xf]
        %v553 = vld [vmem:[#allocation10 + $0x3c] sm:$0xf]
        %v554 = vld [vmem:[#allocation14] sm:$0xf]
        %v555 = vld [vmem:[#allocation14 + $0x4] sm:$0xf]
        %v556 = vld [vmem:[#allocation14 + $0x8] sm:$0xf]
        %v557 = vld [vmem:[#allocation14 + $0xc] sm:$0xf]
        %v558 = vld [vmem:[#allocation14 + $0x10] sm:$0xf]
        %v559 = vld [vmem:[#allocation14 + $0x14] sm:$0xf]
        %v560 = vld [vmem:[#allocation14 + $0x18] sm:$0xf]
        %v561 = vld [vmem:[#allocation14 + $0x1c] sm:$0xf]
        %v562 = vld [vmem:[#allocation14 + $0x20] sm:$0xf]
        %v563 = vld [vmem:[#allocation14 + $0x24] sm:$0xf]
        %v564 = vld [vmem:[#allocation14 + $0x28] sm:$0xf]
        %v565 = vld [vmem:[#allocation14 + $0x2c] sm:$0xf]
        %v566 = vld [vmem:[#allocation14 + $0x30] sm:$0xf]
        %v567 = vld [vmem:[#allocation14 + $0x34] sm:$0xf]
        %v568 = vld [vmem:[#allocation14 + $0x38] sm:$0xf]
        %v569 = vld [vmem:[#allocation14 + $0x3c] sm:$0xf]
        %v570 = vld [vmem:[%s2] sm:$0x7]
        %v572 = vperm.slane %v570, 0
        %v573 = vperm.slane %v570, 1
        %v574 = vperm.slane %v570, 2
        %v578 = vld [vmem:[#allocation8] sm:$0x1]
        %v580 = vperm.slane %v578, 0
        %v582 = vld [vmem:[#allocation11] sm:$0x1]
        %v584 = vperm.slane %v582, 0
        %v586 = vld [vmem:[%s7] sm:$0x1]
        %v588 = vperm.slane %v586, 0
        %v590 = vld [vmem:[#allocation13] sm:$0x1]
        %v592 = vperm.slane %v590, 0
        %v594 = vld [vmem:[%s417] sm:$0xff]
        %v595 = vld [vmem:[%s417 + $0x8] sm:$0xff]
        %v596 = vpack.c.bf16 %v595, %v594
        %v629 = vunpack.c.l.b16 %v490
        %v630 = vunpack.c.h.b16 %v490
        %v631 = vunpack.c.l.b16 %v491
        %v632 = vunpack.c.l.b16 %v492
        %v633 = vunpack.c.h.b16 %v492
        %v634 = vunpack.c.l.b16 %v493
        %v635 = vunpack.c.l.b16 %v494
        %v636 = vunpack.c.h.b16 %v494
        %v637 = vunpack.c.l.b16 %v495
        %v638 = vunpack.c.l.b16 %v496
        %v639 = vunpack.c.h.b16 %v496
        %v640 = vunpack.c.l.b16 %v497
        %v641 = vunpack.c.l.b16 %v498
        %v642 = vunpack.c.h.b16 %v498
        %v643 = vunpack.c.l.b16 %v499
        %v644 = vunpack.c.l.b16 %v500
        %v645 = vunpack.c.h.b16 %v500
        %v646 = vunpack.c.l.b16 %v501
        %v647 = vunpack.c.l.b16 %v502
        %v648 = vunpack.c.h.b16 %v502
        %v649 = vunpack.c.l.b16 %v503
        %v650 = vunpack.c.l.b16 %v504
        %v651 = vunpack.c.h.b16 %v504
        %v652 = vunpack.c.l.b16 %v505
        %v653 = vunpack.c.l.b16 %v506
        %v654 = vunpack.c.h.b16 %v506
        %v655 = vunpack.c.l.b16 %v507
        %v656 = vunpack.c.l.b16 %v508
        %v657 = vunpack.c.h.b16 %v508
        %v658 = vunpack.c.l.b16 %v509
        %v659 = vunpack.c.l.b16 %v510
        %v660 = vunpack.c.h.b16 %v510
        %v661 = vunpack.c.l.b16 %v511
        %v662 = vunpack.c.l.b16 %v512
        %v663 = vunpack.c.h.b16 %v512
        %v664 = vunpack.c.l.b16 %v513
        %v665 = vunpack.c.l.b16 %v514
        %v666 = vunpack.c.h.b16 %v514
        %v667 = vunpack.c.l.b16 %v515
        %v668 = vunpack.c.l.b16 %v516
        %v669 = vunpack.c.h.b16 %v516
        %v670 = vunpack.c.l.b16 %v517
        %v671 = vunpack.c.l.b16 %v518
        %v672 = vunpack.c.h.b16 %v518
        %v673 = vunpack.c.l.b16 %v519
        %v674 = vunpack.c.l.b16 %v520
        %v675 = vunpack.c.h.b16 %v520
        %v676 = vunpack.c.l.b16 %v521
        %v677 = vpack.c.b16 %v632, %v629
        %v678 = vpack.c.b16 %v633, %v630
        %v679 = vpack.c.b16 %v634, %v631
        %v680 = vpack.c.b16 %v638, %v635
        %v681 = vpack.c.b16 %v639, %v636
        %v682 = vpack.c.b16 %v640, %v637
        %v683 = vpack.c.b16 %v644, %v641
        %v684 = vpack.c.b16 %v645, %v642
        %v685 = vpack.c.b16 %v646, %v643
        %v686 = vpack.c.b16 %v650, %v647
        %v687 = vpack.c.b16 %v651, %v648
        %v688 = vpack.c.b16 %v652, %v649
        %v689 = vpack.c.b16 %v656, %v653
        %v690 = vpack.c.b16 %v657, %v654
        %v691 = vpack.c.b16 %v658, %v655
        %v692 = vpack.c.b16 %v662, %v659
        %v693 = vpack.c.b16 %v663, %v660
        %v694 = vpack.c.b16 %v664, %v661
        %v695 = vpack.c.b16 %v668, %v665
        %v696 = vpack.c.b16 %v669, %v666
        %v697 = vpack.c.b16 %v670, %v667
        %v698 = vpack.c.b16 %v674, %v671
        %v699 = vpack.c.b16 %v675, %v672
        %v700 = vpack.c.b16 %v676, %v673
        %725 = vmatpush.bf16.msra.mxu0 %v698
        %726 = vmatpush.bf16.msra.mxu0 %v695
        %727 = vmatpush.bf16.msra.mxu0 %v692
        %728 = vmatpush.bf16.msra.mxu0 %v689
        %729 = vmatpush.bf16.msra.mxu0 %v686
        %730 = vmatpush.bf16.msra.mxu0 %v683
        %731 = vmatpush.bf16.msra.mxu0 %v680
        %732 = vmatpush.bf16.msra.mxu0 %v677
        %733 = vmatmul.bf16.gmra.mxu0 %v596
        %v734 = vpop.f32.mrf.mxu0
        %v735 = vadd.f32 %v572, %v734
        %v736 = vpop.f32.mrf.mxu0
        %v737 = vadd.f32 %v572, %v736
        %738 = vdwg.mxu0
        %739 = vmatpush.bf16.msra.mxu0 %v699
        %740 = vmatpush.bf16.msra.mxu0 %v696
        %741 = vmatpush.bf16.msra.mxu0 %v693
        %742 = vmatpush.bf16.msra.mxu0 %v690
        %743 = vmatpush.bf16.msra.mxu0 %v687
        %744 = vmatpush.bf16.msra.mxu0 %v684
        %745 = vmatpush.bf16.msra.mxu0 %v681
        %746 = vmatpush.bf16.msra.mxu0 %v678
        %747 = vmatmul.bf16.gmra.mxu0 %v596
        %v748 = vpop.f32.mrf.mxu0
        %v749 = vadd.f32 %v573, %v748
        %v750 = vpop.f32.mrf.mxu0
        %v751 = vadd.f32 %v573, %v750
        %752 = vdwg.mxu0
        %753 = vmatpush.bf16.msra.mxu0 %v700
        %754 = vmatpush.bf16.msra.mxu0 %v697
        %755 = vmatpush.bf16.msra.mxu0 %v694
        %756 = vmatpush.bf16.msra.mxu0 %v691
        %757 = vmatpush.bf16.msra.mxu0 %v688
        %758 = vmatpush.bf16.msra.mxu0 %v685
        %759 = vmatpush.bf16.msra.mxu0 %v682
        %760 = vmatpush.bf16.msra.mxu0 %v679
        %761 = vmatmul.bf16.gmra.mxu0 %v596
        %v762 = vpop.f32.mrf.mxu0
        %v763 = vadd.f32 %v574, %v762
        %v764 = vpop.f32.mrf.mxu0
        %v765 = vadd.f32 %v574, %v764
        %766 = vdwg.mxu0
        %v767 = vpack.c.bf16 %v737, %v735
        %v768 = vpack.c.bf16 %v763, %v749
        %v769 = vpack.c.bf16 %v765, %v751
        %v772 = vunpack.c.l.b16 %v768
        %v773 = vunpack.c.h.b16 %v768
        %v774 = vunpack.c.l.b16 %v769
        %v775 = vunpack.c.h.b16 %v769
        %v776 = vpack.c.b16 %v774, %v772
        %v777 = vpack.c.b16 %v775, %v773
        %v780 = vunpack.c.l.bf16 %v776
        %v781 = vunpack.c.h.bf16 %v776
        %v782 = vunpack.c.l.bf16 %v554
        %v783 = vunpack.c.l.bf16 %v555
        %v784 = vunpack.c.l.bf16 %v556
        %v785 = vunpack.c.l.bf16 %v557
        %v786 = vunpack.c.l.bf16 %v558
        %v787 = vunpack.c.l.bf16 %v559
        %v788 = vunpack.c.l.bf16 %v560
        %v789 = vunpack.c.l.bf16 %v561
        %v790 = vunpack.c.l.bf16 %v562
        %v791 = vunpack.c.l.bf16 %v563
        %v792 = vunpack.c.l.bf16 %v564
        %v793 = vunpack.c.l.bf16 %v565
        %v794 = vunpack.c.l.bf16 %v566
        %v795 = vunpack.c.l.bf16 %v567
        %v796 = vunpack.c.l.bf16 %v568
        %v797 = vunpack.c.l.bf16 %v569
        %v798 = vmul.f32 %v780, %v782
        %v799 = vmul.f32 %v781, %v783
        %v800 = vmul.f32 %v780, %v784
        %v801 = vmul.f32 %v781, %v785
        %v802 = vmul.f32 %v780, %v786
        %v803 = vmul.f32 %v781, %v787
        %v804 = vmul.f32 %v780, %v788
        %v805 = vmul.f32 %v781, %v789
        %v806 = vmul.f32 %v780, %v790
        %v807 = vmul.f32 %v781, %v791
        %v808 = vmul.f32 %v780, %v792
        %v809 = vmul.f32 %v781, %v793
        %v810 = vmul.f32 %v780, %v794
        %v811 = vmul.f32 %v781, %v795
        %v812 = vmul.f32 %v780, %v796
        %v813 = vmul.f32 %v781, %v797
        %v814 = vpack.c.bf16 %v799, %v798
        %v815 = vpack.c.bf16 %v801, %v800
        %v816 = vpack.c.bf16 %v803, %v802
        %v817 = vpack.c.bf16 %v805, %v804
        %v818 = vpack.c.bf16 %v807, %v806
        %v819 = vpack.c.bf16 %v809, %v808
        %v820 = vpack.c.bf16 %v811, %v810
        %v821 = vpack.c.bf16 %v813, %v812
        %v822 = vunpack.c.l.bf16 %v777
        %v823 = vunpack.c.h.bf16 %v777
        %v824 = vmul.f32 %v822, %v782
        %v825 = vmul.f32 %v823, %v783
        %v826 = vmul.f32 %v822, %v784
        %v827 = vmul.f32 %v823, %v785
        %v828 = vmul.f32 %v822, %v786
        %v829 = vmul.f32 %v823, %v787
        %v830 = vmul.f32 %v822, %v788
        %v831 = vmul.f32 %v823, %v789
        %v832 = vmul.f32 %v822, %v790
        %v833 = vmul.f32 %v823, %v791
        %v834 = vmul.f32 %v822, %v792
        %v835 = vmul.f32 %v823, %v793
        %v836 = vmul.f32 %v822, %v794
        %v837 = vmul.f32 %v823, %v795
        %v838 = vmul.f32 %v822, %v796
        %v839 = vmul.f32 %v823, %v797
        %v840 = vpack.c.bf16 %v825, %v824
        %v841 = vpack.c.bf16 %v827, %v826
        %v842 = vpack.c.bf16 %v829, %v828
        %v843 = vpack.c.bf16 %v831, %v830
        %v844 = vpack.c.bf16 %v833, %v832
        %v845 = vpack.c.bf16 %v835, %v834
        %v846 = vpack.c.bf16 %v837, %v836
        %v847 = vpack.c.bf16 %v839, %v838
        %848 = vmatpush.bf16.xpose.msra.mxu0 %v821
        %849 = vmatpush.bf16.xpose.msra.mxu0 %v820
        %850 = vmatpush.bf16.xpose.msra.mxu0 %v819
        %851 = vmatpush.bf16.xpose.msra.mxu0 %v818
        %852 = vmatpush.bf16.xpose.msra.mxu0 %v817
        %853 = vmatpush.bf16.xpose.msra.mxu0 %v816
        %854 = vmatpush.bf16.xpose.msra.mxu0 %v815
        %855 = vmatpush.bf16.xpose.msra.mxu0 %v814
        %856 = vmatmul.bf16.gmra.mxu0 %v767
        %v857 = vpop.f32.mrf.mxu0
        %v858 = vadd.f32 0.0, %v857
        %v859 = vpop.f32.mrf.mxu0
        %v860 = vadd.f32 0.0, %v859
        %861 = vdwg.mxu0
        %862 = vmax.xlane.f32.xlu0 %v858
        %v863 = vpop.xlane.xlu0 %862
        %864 = vmax.xlane.f32.xlu0 %v860
        %v865 = vpop.xlane.xlu0 %864
        %v866 = vsub.f32 %v858, %v863
        %v867 = vsub.f32 %v860, %v865
        %v868 = vmul.f32 %v866, 1.442695
        %v869 = vpow.pop %v868
        %v870 = vmul.f32 %v867, 1.442695
        %v871 = vpow.pop %v870
        %v872 = vpack.c.bf16 %v871, %v869
        %v889 = vunpack.c.l.b16 %v554
        %v890 = vunpack.c.l.b16 %v555
        %v891 = vunpack.c.l.b16 %v556
        %v892 = vunpack.c.l.b16 %v557
        %v893 = vunpack.c.l.b16 %v558
        %v894 = vunpack.c.l.b16 %v559
        %v895 = vunpack.c.l.b16 %v560
        %v896 = vunpack.c.l.b16 %v561
        %v897 = vunpack.c.l.b16 %v562
        %v898 = vunpack.c.l.b16 %v563
        %v899 = vunpack.c.l.b16 %v564
        %v900 = vunpack.c.l.b16 %v565
        %v901 = vunpack.c.l.b16 %v566
        %v902 = vunpack.c.l.b16 %v567
        %v903 = vunpack.c.l.b16 %v568
        %v904 = vunpack.c.l.b16 %v569
        %v905 = vpack.c.b16 %v890, %v889
        %v906 = vpack.c.b16 %v892, %v891
        %v907 = vpack.c.b16 %v894, %v893
        %v908 = vpack.c.b16 %v896, %v895
        %v909 = vpack.c.b16 %v898, %v897
        %v910 = vpack.c.b16 %v900, %v899
        %v911 = vpack.c.b16 %v902, %v901
        %v912 = vpack.c.b16 %v904, %v903
        %921 = vmatpush.bf16.msra.mxu0 %v912
        %922 = vmatpush.bf16.msra.mxu0 %v911
        %923 = vmatpush.bf16.msra.mxu0 %v910
        %924 = vmatpush.bf16.msra.mxu0 %v909
        %925 = vmatpush.bf16.msra.mxu0 %v908
        %926 = vmatpush.bf16.msra.mxu0 %v907
        %927 = vmatpush.bf16.msra.mxu0 %v906
        %928 = vmatpush.bf16.msra.mxu0 %v905
        %929 = vmatmul.bf16.gmra.mxu0 %v872
        %v930 = vpop.f32.mrf.mxu0
        %v931 = vadd.f32 0.0, %v930
        %v932 = vpop.f32.mrf.mxu0
        %v933 = vadd.f32 0.0, %v932
        %934 = vdwg.mxu0
        %935 = vmatpush.bf16.msra.mxu0 %v847
        %936 = vmatpush.bf16.msra.mxu0 %v846
        %937 = vmatpush.bf16.msra.mxu0 %v845
        %938 = vmatpush.bf16.msra.mxu0 %v844
        %939 = vmatpush.bf16.msra.mxu0 %v843
        %940 = vmatpush.bf16.msra.mxu0 %v842
        %941 = vmatpush.bf16.msra.mxu0 %v841
        %942 = vmatpush.bf16.msra.mxu0 %v840
        %943 = vmatmul.bf16.gmra.mxu0 %v872
        %v944 = vpop.f32.mrf.mxu0
        %v945 = vadd.f32 0.0, %v944
        %v946 = vpop.f32.mrf.mxu0
        %v947 = vadd.f32 0.0, %v946
        %948 = vdwg.mxu0
        %v949 = vrcp.pop %v931
        %v950 = vrcp.pop %v933
        %v951 = vmul.f32 %v945, %v949
        %v952 = vmul.f32 %v947, %v950
        %v953 = vpack.c.bf16 %v952, %v951
        %v970 = vunpack.c.l.b16 %v522
        %v971 = vunpack.c.l.b16 %v523
        %v972 = vunpack.c.l.b16 %v524
        %v973 = vunpack.c.l.b16 %v525
        %v974 = vunpack.c.l.b16 %v526
        %v975 = vunpack.c.l.b16 %v527
        %v976 = vunpack.c.l.b16 %v528
        %v977 = vunpack.c.l.b16 %v529
        %v978 = vunpack.c.l.b16 %v530
        %v979 = vunpack.c.l.b16 %v531
        %v980 = vunpack.c.l.b16 %v532
        %v981 = vunpack.c.l.b16 %v533
        %v982 = vunpack.c.l.b16 %v534
        %v983 = vunpack.c.l.b16 %v535
        %v984 = vunpack.c.l.b16 %v536
        %v985 = vunpack.c.l.b16 %v537
        %v986 = vpack.c.b16 %v971, %v970
        %v987 = vpack.c.b16 %v973, %v972
        %v988 = vpack.c.b16 %v975, %v974
        %v989 = vpack.c.b16 %v977, %v976
        %v990 = vpack.c.b16 %v979, %v978
        %v991 = vpack.c.b16 %v981, %v980
        %v992 = vpack.c.b16 %v983, %v982
        %v993 = vpack.c.b16 %v985, %v984
        %1002 = vmatpush.bf16.msra.mxu0 %v993
        %1003 = vmatpush.bf16.msra.mxu0 %v992
        %1004 = vmatpush.bf16.msra.mxu0 %v991
        %1005 = vmatpush.bf16.msra.mxu0 %v990
        %1006 = vmatpush.bf16.msra.mxu0 %v989
        %1007 = vmatpush.bf16.msra.mxu0 %v988
        %1008 = vmatpush.bf16.msra.mxu0 %v987
        %1009 = vmatpush.bf16.msra.mxu0 %v986
        %1010 = vmatmul.bf16.gmra.mxu0 %v953
        %v1011 = vpop.f32.mrf.mxu0
        %v1012 = vadd.f32 %v580, %v1011
        %v1013 = vpop.f32.mrf.mxu0
        %v1014 = vadd.f32 %v580, %v1013
        %1015 = vdwg.mxu0
        %v1016 = vadd.f32 %v594, %v1012
        %v1017 = vadd.f32 %v595, %v1014
        %1018 = vadd.xlane.f32.xlu0 %v1016
        %v1019 = vpop.xlane.xlu0 %1018
        %1020 = vadd.xlane.f32.xlu0 %v1017
        %v1021 = vpop.xlane.xlu0 %1020
        %v1022 = vrcp.pop 128.0
        %v1023 = vmul.f32 128.0, %v1022
        %v1024 = vsub.f32 1.0, %v1023
        %v1025 = vmul.f32 %v1022, %v1024
        %v1026 = vadd.f32 %v1022, %v1025
        %vm1027 = vweird.f32 %v1022
        %v1028 = vsel %vm1027, %v1022, %v1026
        %v1029 = vmul.f32 %v1019, %v1028
        %v1030 = vmul.f32 %v1021, %v1028
        %v1031 = vmul.f32 %v1016, %v1016
        %v1032 = vmul.f32 %v1017, %v1017
        %1033 = vadd.xlane.f32.xlu0 %v1031
        %v1034 = vpop.xlane.xlu0 %1033
        %1035 = vadd.xlane.f32.xlu0 %v1032
        %v1036 = vpop.xlane.xlu0 %1035
        %v1037 = vmul.f32 %v1034, %v1028
        %v1038 = vmul.f32 %v1036, %v1028
        %v1039 = vmul.f32 %v1029, %v1029
        %v1040 = vmul.f32 %v1030, %v1030
        %v1041 = vsub.f32 %v1037, %v1039
        %v1042 = vsub.f32 %v1038, %v1040
        %v1043 = vsub.f32 %v1016, %v1029
        %v1044 = vsub.f32 %v1017, %v1030
        %v1045 = vadd.f32 %v1041, 1e-05
        %v1046 = vadd.f32 %v1042, 1e-05
        %v1047 = vrsqrt.pop %v1045
        %v1048 = vmul.f32 %v1047, %v1045
        %v1049 = vmul.f32 %v1048, %v1047
        %v1050 = vmul.f32 0.5, %v1049
        %v1051 = vsub.f32 1.5, %v1050
        %v1052 = vmul.f32 %v1047, %v1051
        %vm1053 = vweird.f32 %v1045
        %vm1054 = vweird.f32 %v1047
        %vm1055 = vmor %vm1053, %vm1054
        %v1056 = vsel %vm1055, %v1047, %v1052
        %v1057 = vrsqrt.pop %v1046
        %v1058 = vmul.f32 %v1057, %v1046
        %v1059 = vmul.f32 %v1058, %v1057
        %v1060 = vmul.f32 0.5, %v1059
        %v1061 = vsub.f32 1.5, %v1060
        %v1062 = vmul.f32 %v1057, %v1061
        %vm1063 = vweird.f32 %v1046
        %vm1064 = vweird.f32 %v1057
        %vm1065 = vmor %vm1063, %vm1064
        %v1066 = vsel %vm1065, %v1057, %v1062
        %v1067 = vmul.f32 %v1043, %v1056
        %v1068 = vmul.f32 %v1044, %v1066
        %v1069 = vmul.f32 %v1067, %v588
        %v1070 = vmul.f32 %v1068, %v588
        %v1071 = vadd.f32 %v1069, %v592
        %v1072 = vadd.f32 %v1070, %v592
        %v1073 = vpack.c.bf16 %v1072, %v1071
        %v1090 = vunpack.c.l.b16 %v538
        %v1091 = vunpack.c.l.b16 %v539
        %v1092 = vunpack.c.l.b16 %v540
        %v1093 = vunpack.c.l.b16 %v541
        %v1094 = vunpack.c.l.b16 %v542
        %v1095 = vunpack.c.l.b16 %v543
        %v1096 = vunpack.c.l.b16 %v544
        %v1097 = vunpack.c.l.b16 %v545
        %v1098 = vunpack.c.l.b16 %v546
        %v1099 = vunpack.c.l.b16 %v547
        %v1100 = vunpack.c.l.b16 %v548
        %v1101 = vunpack.c.l.b16 %v549
        %v1102 = vunpack.c.l.b16 %v550
        %v1103 = vunpack.c.l.b16 %v551
        %v1104 = vunpack.c.l.b16 %v552
        %v1105 = vunpack.c.l.b16 %v553
        %v1106 = vpack.c.b16 %v1091, %v1090
        %v1107 = vpack.c.b16 %v1093, %v1092
        %v1108 = vpack.c.b16 %v1095, %v1094
        %v1109 = vpack.c.b16 %v1097, %v1096
        %v1110 = vpack.c.b16 %v1099, %v1098
        %v1111 = vpack.c.b16 %v1101, %v1100
        %v1112 = vpack.c.b16 %v1103, %v1102
        %v1113 = vpack.c.b16 %v1105, %v1104
        %1122 = vmatpush.bf16.msra.mxu0 %v1113
        %1123 = vmatpush.bf16.msra.mxu0 %v1112
        %1124 = vmatpush.bf16.msra.mxu0 %v1111
        %1125 = vmatpush.bf16.msra.mxu0 %v1110
        %1126 = vmatpush.bf16.msra.mxu0 %v1109
        %1127 = vmatpush.bf16.msra.mxu0 %v1108
        %1128 = vmatpush.bf16.msra.mxu0 %v1107
        %1129 = vmatpush.bf16.msra.mxu0 %v1106
        %1130 = vmatmul.bf16.gmra.mxu0 %v1073
        %v1131 = vpop.f32.mrf.mxu0
        %v1132 = vadd.f32 %v584, %v1131
        %v1133 = vpop.f32.mrf.mxu0
        %v1134 = vadd.f32 %v584, %v1133
        %1135 = vdwg.mxu0
        %v1136 = vadd.f32 %v1071, %v1132
        %v1137 = vadd.f32 %v1072, %v1134
        %1138 = vadd.xlane.f32.xlu0 %v1136
        %v1139 = vpop.xlane.xlu0 %1138
        %1140 = vadd.xlane.f32.xlu0 %v1137
        %v1141 = vpop.xlane.xlu0 %1140
        %v1142 = vmul.f32 %v1139, %v1028
        %v1143 = vmul.f32 %v1141, %v1028
        %v1144 = vmul.f32 %v1136, %v1136
        %v1145 = vmul.f32 %v1137, %v1137
        %1146 = vadd.xlane.f32.xlu0 %v1144
        %v1147 = vpop.xlane.xlu0 %1146
        %1148 = vadd.xlane.f32.xlu0 %v1145
        %v1149 = vpop.xlane.xlu0 %1148
        %v1150 = vmul.f32 %v1147, %v1028
        %v1151 = vmul.f32 %v1149, %v1028
        %v1152 = vmul.f32 %v1142, %v1142
        %v1153 = vmul.f32 %v1143, %v1143
        %v1154 = vsub.f32 %v1150, %v1152
        %v1155 = vsub.f32 %v1151, %v1153
        %v1156 = vsub.f32 %v1136, %v1142
        %v1157 = vsub.f32 %v1137, %v1143
        %v1158 = vadd.f32 %v1154, 1e-05
        %v1159 = vadd.f32 %v1155, 1e-05
        %v1160 = vrsqrt.pop %v1158
        %v1161 = vmul.f32 %v1160, %v1158
        %v1162 = vmul.f32 %v1161, %v1160
        %v1163 = vmul.f32 0.5, %v1162
        %v1164 = vsub.f32 1.5, %v1163
        %v1165 = vmul.f32 %v1160, %v1164
        %vm1166 = vweird.f32 %v1158
        %vm1167 = vweird.f32 %v1160
        %vm1168 = vmor %vm1166, %vm1167
        %v1169 = vsel %vm1168, %v1160, %v1165
        %v1170 = vrsqrt.pop %v1159
        %v1171 = vmul.f32 %v1170, %v1159
        %v1172 = vmul.f32 %v1171, %v1170
        %v1173 = vmul.f32 0.5, %v1172
        %v1174 = vsub.f32 1.5, %v1173
        %v1175 = vmul.f32 %v1170, %v1174
        %vm1176 = vweird.f32 %v1159
        %vm1177 = vweird.f32 %v1170
        %vm1178 = vmor %vm1176, %vm1177
        %v1179 = vsel %vm1178, %v1170, %v1175
        %v1180 = vmul.f32 %v1156, %v1169
        %v1181 = vmul.f32 %v1157, %v1179
        %v1182 = vmul.f32 %v1180, %v588
        %v1183 = vmul.f32 %v1181, %v588
        %v1184 = vadd.f32 %v1182, %v592
        %v1185 = vadd.f32 %v1183, %v592
        %v1186 = vpack.c.bf16 %v1185, %v1184
        %1187 = vmatpush.bf16.msra.mxu0 %v698
        %1188 = vmatpush.bf16.msra.mxu0 %v695
        %1189 = vmatpush.bf16.msra.mxu0 %v692
        %1190 = vmatpush.bf16.msra.mxu0 %v689
        %1191 = vmatpush.bf16.msra.mxu0 %v686
        %1192 = vmatpush.bf16.msra.mxu0 %v683
        %1193 = vmatpush.bf16.msra.mxu0 %v680
        %1194 = vmatpush.bf16.msra.mxu0 %v677
        %1195 = vmatmul.bf16.gmra.mxu0 %v1186
        %v1196 = vpop.f32.mrf.mxu0
        %v1197 = vadd.f32 %v572, %v1196
        %v1198 = vpop.f32.mrf.mxu0
        %v1199 = vadd.f32 %v572, %v1198
        %1200 = vdwg.mxu0
        %1201 = vmatpush.bf16.msra.mxu0 %v699
        %1202 = vmatpush.bf16.msra.mxu0 %v696
        %1203 = vmatpush.bf16.msra.mxu0 %v693
        %1204 = vmatpush.bf16.msra.mxu0 %v690
        %1205 = vmatpush.bf16.msra.mxu0 %v687
        %1206 = vmatpush.bf16.msra.mxu0 %v684
        %1207 = vmatpush.bf16.msra.mxu0 %v681
        %1208 = vmatpush.bf16.msra.mxu0 %v678
        %1209 = vmatmul.bf16.gmra.mxu0 %v1186
        %v1210 = vpop.f32.mrf.mxu0
        %v1211 = vadd.f32 %v573, %v1210
        %v1212 = vpop.f32.mrf.mxu0
        %v1213 = vadd.f32 %v573, %v1212
        %1214 = vdwg.mxu0
        %1215 = vmatpush.bf16.msra.mxu0 %v700
        %1216 = vmatpush.bf16.msra.mxu0 %v697
        %1217 = vmatpush.bf16.msra.mxu0 %v694
        %1218 = vmatpush.bf16.msra.mxu0 %v691
        %1219 = vmatpush.bf16.msra.mxu0 %v688
        %1220 = vmatpush.bf16.msra.mxu0 %v685
        %1221 = vmatpush.bf16.msra.mxu0 %v682
        %1222 = vmatpush.bf16.msra.mxu0 %v679
        %1223 = vmatmul.bf16.gmra.mxu0 %v1186
        %v1224 = vpop.f32.mrf.mxu0
        %v1225 = vadd.f32 %v574, %v1224
        %v1226 = vpop.f32.mrf.mxu0
        %v1227 = vadd.f32 %v574, %v1226
        %1228 = vdwg.mxu0
        %v1229 = vpack.c.bf16 %v1199, %v1197
        %v1230 = vpack.c.bf16 %v1225, %v1211
        %v1231 = vpack.c.bf16 %v1227, %v1213
        %v1234 = vunpack.c.l.b16 %v1230
        %v1235 = vunpack.c.h.b16 %v1230
        %v1236 = vunpack.c.l.b16 %v1231
        %v1237 = vunpack.c.h.b16 %v1231
        %v1238 = vpack.c.b16 %v1236, %v1234
        %v1239 = vpack.c.b16 %v1237, %v1235
        %v1242 = vunpack.c.l.bf16 %v1238
        %v1243 = vunpack.c.h.bf16 %v1238
        %v1244 = vmul.f32 %v1242, %v782
        %v1245 = vmul.f32 %v1243, %v783
        %v1246 = vmul.f32 %v1242, %v784
        %v1247 = vmul.f32 %v1243, %v785
        %v1248 = vmul.f32 %v1242, %v786
        %v1249 = vmul.f32 %v1243, %v787
        %v1250 = vmul.f32 %v1242, %v788
        %v1251 = vmul.f32 %v1243, %v789
        %v1252 = vmul.f32 %v1242, %v790
        %v1253 = vmul.f32 %v1243, %v791
        %v1254 = vmul.f32 %v1242, %v792
        %v1255 = vmul.f32 %v1243, %v793
        %v1256 = vmul.f32 %v1242, %v794
        %v1257 = vmul.f32 %v1243, %v795
        %v1258 = vmul.f32 %v1242, %v796
        %v1259 = vmul.f32 %v1243, %v797
        %v1260 = vpack.c.bf16 %v1245, %v1244
        %v1261 = vpack.c.bf16 %v1247, %v1246
        %v1262 = vpack.c.bf16 %v1249, %v1248
        %v1263 = vpack.c.bf16 %v1251, %v1250
        %v1264 = vpack.c.bf16 %v1253, %v1252
        %v1265 = vpack.c.bf16 %v1255, %v1254
        %v1266 = vpack.c.bf16 %v1257, %v1256
        %v1267 = vpack.c.bf16 %v1259, %v1258
        %v1268 = vunpack.c.l.bf16 %v1239
        %v1269 = vunpack.c.h.bf16 %v1239
        %v1270 = vmul.f32 %v1268, %v782
        %v1271 = vmul.f32 %v1269, %v783
        %v1272 = vmul.f32 %v1268, %v784
        %v1273 = vmul.f32 %v1269, %v785
        %v1274 = vmul.f32 %v1268, %v786
        %v1275 = vmul.f32 %v1269, %v787
        %v1276 = vmul.f32 %v1268, %v788
        %v1277 = vmul.f32 %v1269, %v789
        %v1278 = vmul.f32 %v1268, %v790
        %v1279 = vmul.f32 %v1269, %v791
        %v1280 = vmul.f32 %v1268, %v792
        %v1281 = vmul.f32 %v1269, %v793
        %v1282 = vmul.f32 %v1268, %v794
        %v1283 = vmul.f32 %v1269, %v795
        %v1284 = vmul.f32 %v1268, %v796
        %v1285 = vmul.f32 %v1269, %v797
        %v1286 = vpack.c.bf16 %v1271, %v1270
        %v1287 = vpack.c.bf16 %v1273, %v1272
        %v1288 = vpack.c.bf16 %v1275, %v1274
        %v1289 = vpack.c.bf16 %v1277, %v1276
        %v1290 = vpack.c.bf16 %v1279, %v1278
        %v1291 = vpack.c.bf16 %v1281, %v1280
        %v1292 = vpack.c.bf16 %v1283, %v1282
        %v1293 = vpack.c.bf16 %v1285, %v1284
        %1294 = vmatpush.bf16.xpose.msra.mxu0 %v1267
        %1295 = vmatpush.bf16.xpose.msra.mxu0 %v1266
        %1296 = vmatpush.bf16.xpose.msra.mxu0 %v1265
        %1297 = vmatpush.bf16.xpose.msra.mxu0 %v1264
        %1298 = vmatpush.bf16.xpose.msra.mxu0 %v1263
        %1299 = vmatpush.bf16.xpose.msra.mxu0 %v1262
        %1300 = vmatpush.bf16.xpose.msra.mxu0 %v1261
        %1301 = vmatpush.bf16.xpose.msra.mxu0 %v1260
        %1302 = vmatmul.bf16.gmra.mxu0 %v1229
        %v1303 = vpop.f32.mrf.mxu0
        %v1304 = vadd.f32 0.0, %v1303
        %v1305 = vpop.f32.mrf.mxu0
        %v1306 = vadd.f32 0.0, %v1305
        %1307 = vdwg.mxu0
        %1308 = vmax.xlane.f32.xlu0 %v1304
        %v1309 = vpop.xlane.xlu0 %1308
        %1310 = vmax.xlane.f32.xlu0 %v1306
        %v1311 = vpop.xlane.xlu0 %1310
        %v1312 = vsub.f32 %v1304, %v1309
        %v1313 = vsub.f32 %v1306, %v1311
        %v1314 = vmul.f32 %v1312, 1.442695
        %v1315 = vpow.pop %v1314
        %v1316 = vmul.f32 %v1313, 1.442695
        %v1317 = vpow.pop %v1316
        %v1318 = vpack.c.bf16 %v1317, %v1315
        %1319 = vmatpush.bf16.msra.mxu0 %v912
        %1320 = vmatpush.bf16.msra.mxu0 %v911
        %1321 = vmatpush.bf16.msra.mxu0 %v910
        %1322 = vmatpush.bf16.msra.mxu0 %v909
        %1323 = vmatpush.bf16.msra.mxu0 %v908
        %1324 = vmatpush.bf16.msra.mxu0 %v907
        %1325 = vmatpush.bf16.msra.mxu0 %v906
        %1326 = vmatpush.bf16.msra.mxu0 %v905
        %1327 = vmatmul.bf16.gmra.mxu0 %v1318
        %v1328 = vpop.f32.mrf.mxu0
        %v1329 = vadd.f32 0.0, %v1328
        %v1330 = vpop.f32.mrf.mxu0
        %v1331 = vadd.f32 0.0, %v1330
        %1332 = vdwg.mxu0
        %1333 = vmatpush.bf16.msra.mxu0 %v1293
        %1334 = vmatpush.bf16.msra.mxu0 %v1292
        %1335 = vmatpush.bf16.msra.mxu0 %v1291
        %1336 = vmatpush.bf16.msra.mxu0 %v1290
        %1337 = vmatpush.bf16.msra.mxu0 %v1289
        %1338 = vmatpush.bf16.msra.mxu0 %v1288
        %1339 = vmatpush.bf16.msra.mxu0 %v1287
        %1340 = vmatpush.bf16.msra.mxu0 %v1286
        %1341 = vmatmul.bf16.gmra.mxu0 %v1318
        %v1342 = vpop.f32.mrf.mxu0
        %v1343 = vadd.f32 0.0, %v1342
        %v1344 = vpop.f32.mrf.mxu0
        %v1345 = vadd.f32 0.0, %v1344
        %1346 = vdwg.mxu0
        %v1347 = vrcp.pop %v1329
        %v1348 = vrcp.pop %v1331
        %v1349 = vmul.f32 %v1343, %v1347
        %v1350 = vmul.f32 %v1345, %v1348
        %v1351 = vpack.c.bf16 %v1350, %v1349
        %1352 = vmatpush.bf16.msra.mxu0 %v993
        %1353 = vmatpush.bf16.msra.mxu0 %v992
        %1354 = vmatpush.bf16.msra.mxu0 %v991
        %1355 = vmatpush.bf16.msra.mxu0 %v990
        %1356 = vmatpush.bf16.msra.mxu0 %v989
        %1357 = vmatpush.bf16.msra.mxu0 %v988
        %1358 = vmatpush.bf16.msra.mxu0 %v987
        %1359 = vmatpush.bf16.msra.mxu0 %v986
        %1360 = vmatmul.bf16.gmra.mxu0 %v1351
        %v1361 = vpop.f32.mrf.mxu0
        %v1362 = vadd.f32 %v580, %v1361
        %v1363 = vpop.f32.mrf.mxu0
        %v1364 = vadd.f32 %v580, %v1363
        %1365 = vdwg.mxu0
        %v1366 = vadd.f32 %v1184, %v1362
        %v1367 = vadd.f32 %v1185, %v1364
        %1368 = vadd.xlane.f32.xlu0 %v1366
        %v1369 = vpop.xlane.xlu0 %1368
        %1370 = vadd.xlane.f32.xlu0 %v1367
        %v1371 = vpop.xlane.xlu0 %1370
        %v1372 = vmul.f32 %v1369, %v1028
        %v1373 = vmul.f32 %v1371, %v1028
        %v1374 = vmul.f32 %v1366, %v1366
        %v1375 = vmul.f32 %v1367, %v1367
        %1376 = vadd.xlane.f32.xlu0 %v1374
        %v1377 = vpop.xlane.xlu0 %1376
        %1378 = vadd.xlane.f32.xlu0 %v1375
        %v1379 = vpop.xlane.xlu0 %1378
        %v1380 = vmul.f32 %v1377, %v1028
        %v1381 = vmul.f32 %v1379, %v1028
        %v1382 = vmul.f32 %v1372, %v1372
        %v1383 = vmul.f32 %v1373, %v1373
        %v1384 = vsub.f32 %v1380, %v1382
        %v1385 = vsub.f32 %v1381, %v1383
        %v1386 = vsub.f32 %v1366, %v1372
        %v1387 = vsub.f32 %v1367, %v1373
        %v1388 = vadd.f32 %v1384, 1e-05
        %v1389 = vadd.f32 %v1385, 1e-05
        %v1390 = vrsqrt.pop %v1388
        %v1391 = vmul.f32 %v1390, %v1388
        %v1392 = vmul.f32 %v1391, %v1390
        %v1393 = vmul.f32 0.5, %v1392
        %v1394 = vsub.f32 1.5, %v1393
        %v1395 = vmul.f32 %v1390, %v1394
        %vm1396 = vweird.f32 %v1388
        %vm1397 = vweird.f32 %v1390
        %vm1398 = vmor %vm1396, %vm1397
        %v1399 = vsel %vm1398, %v1390, %v1395
        %v1400 = vrsqrt.pop %v1389
        %v1401 = vmul.f32 %v1400, %v1389
        %v1402 = vmul.f32 %v1401, %v1400
        %v1403 = vmul.f32 0.5, %v1402
        %v1404 = vsub.f32 1.5, %v1403
        %v1405 = vmul.f32 %v1400, %v1404
        %vm1406 = vweird.f32 %v1389
        %vm1407 = vweird.f32 %v1400
        %vm1408 = vmor %vm1406, %vm1407
        %v1409 = vsel %vm1408, %v1400, %v1405
        %v1410 = vmul.f32 %v1386, %v1399
        %v1411 = vmul.f32 %v1387, %v1409
        %v1412 = vmul.f32 %v1410, %v588
        %v1413 = vmul.f32 %v1411, %v588
        %v1414 = vadd.f32 %v1412, %v592
        %v1415 = vadd.f32 %v1413, %v592
        %v1416 = vpack.c.bf16 %v1415, %v1414
        %1417 = vmatpush.bf16.msra.mxu0 %v1113
        %1418 = vmatpush.bf16.msra.mxu0 %v1112
        %1419 = vmatpush.bf16.msra.mxu0 %v1111
        %1420 = vmatpush.bf16.msra.mxu0 %v1110
        %1421 = vmatpush.bf16.msra.mxu0 %v1109
        %1422 = vmatpush.bf16.msra.mxu0 %v1108
        %1423 = vmatpush.bf16.msra.mxu0 %v1107
        %1424 = vmatpush.bf16.msra.mxu0 %v1106
        %1425 = vmatmul.bf16.gmra.mxu0 %v1416
        %v1426 = vpop.f32.mrf.mxu0
        %v1427 = vadd.f32 %v584, %v1426
        %v1428 = vpop.f32.mrf.mxu0
        %v1429 = vadd.f32 %v584, %v1428
        %1430 = vdwg.mxu0
        %v1431 = vadd.f32 %v1414, %v1427
        %v1432 = vadd.f32 %v1415, %v1429
        %1433 = vadd.xlane.f32.xlu0 %v1431
        %v1434 = vpop.xlane.xlu0 %1433
        %1435 = vadd.xlane.f32.xlu0 %v1432
        %v1436 = vpop.xlane.xlu0 %1435
        %v1437 = vmul.f32 %v1434, %v1028
        %v1438 = vmul.f32 %v1436, %v1028
        %v1439 = vmul.f32 %v1431, %v1431
        %v1440 = vmul.f32 %v1432, %v1432
        %1441 = vadd.xlane.f32.xlu0 %v1439
        %v1442 = vpop.xlane.xlu0 %1441
        %1443 = vadd.xlane.f32.xlu0 %v1440
        %v1444 = vpop.xlane.xlu0 %1443
        %v1445 = vmul.f32 %v1442, %v1028
        %v1446 = vmul.f32 %v1444, %v1028
        %v1447 = vmul.f32 %v1437, %v1437
        %v1448 = vmul.f32 %v1438, %v1438
        %v1449 = vsub.f32 %v1445, %v1447
        %v1450 = vsub.f32 %v1446, %v1448
        %v1451 = vsub.f32 %v1431, %v1437
        %v1452 = vsub.f32 %v1432, %v1438
        %v1453 = vadd.f32 %v1449, 1e-05
        %v1454 = vadd.f32 %v1450, 1e-05
        %v1455 = vrsqrt.pop %v1453
        %v1456 = vmul.f32 %v1455, %v1453
        %v1457 = vmul.f32 %v1456, %v1455
        %v1458 = vmul.f32 0.5, %v1457
        %v1459 = vsub.f32 1.5, %v1458
        %v1460 = vmul.f32 %v1455, %v1459
        %vm1461 = vweird.f32 %v1453
        %vm1462 = vweird.f32 %v1455
        %vm1463 = vmor %vm1461, %vm1462
        %v1464 = vsel %vm1463, %v1455, %v1460
        %v1465 = vrsqrt.pop %v1454
        %v1466 = vmul.f32 %v1465, %v1454
        %v1467 = vmul.f32 %v1466, %v1465
        %v1468 = vmul.f32 0.5, %v1467
        %v1469 = vsub.f32 1.5, %v1468
        %v1470 = vmul.f32 %v1465, %v1469
        %vm1471 = vweird.f32 %v1454
        %vm1472 = vweird.f32 %v1465
        %vm1473 = vmor %vm1471, %vm1472
        %v1474 = vsel %vm1473, %v1465, %v1470
        %v1475 = vmul.f32 %v1451, %v1464
        %v1476 = vmul.f32 %v1452, %v1474
        %v1477 = vmul.f32 %v1475, %v588
        %v1478 = vmul.f32 %v1476, %v588
        %v1479 = vadd.f32 %v1477, %v592
        %v1480 = vadd.f32 %v1478, %v592
        %v1481 = vpack.c.bf16 %v1480, %v1479
        %1482 = vmatpush.bf16.msra.mxu0 %v698
        %1483 = vmatpush.bf16.msra.mxu0 %v695
        %1484 = vmatpush.bf16.msra.mxu0 %v692
        %1485 = vmatpush.bf16.msra.mxu0 %v689
        %1486 = vmatpush.bf16.msra.mxu0 %v686
        %1487 = vmatpush.bf16.msra.mxu0 %v683
        %1488 = vmatpush.bf16.msra.mxu0 %v680
        %1489 = vmatpush.bf16.msra.mxu0 %v677
        %1490 = vmatmul.bf16.gmra.mxu0 %v1481
        %v1491 = vpop.f32.mrf.mxu0
        %v1492 = vadd.f32 %v572, %v1491
        %v1493 = vpop.f32.mrf.mxu0
        %v1494 = vadd.f32 %v572, %v1493
        %1495 = vdwg.mxu0
        %1496 = vmatpush.bf16.msra.mxu0 %v699
        %1497 = vmatpush.bf16.msra.mxu0 %v696
        %1498 = vmatpush.bf16.msra.mxu0 %v693
        %1499 = vmatpush.bf16.msra.mxu0 %v690
        %1500 = vmatpush.bf16.msra.mxu0 %v687
        %1501 = vmatpush.bf16.msra.mxu0 %v684
        %1502 = vmatpush.bf16.msra.mxu0 %v681
        %1503 = vmatpush.bf16.msra.mxu0 %v678
        %1504 = vmatmul.bf16.gmra.mxu0 %v1481
        %v1505 = vpop.f32.mrf.mxu0
        %v1506 = vadd.f32 %v573, %v1505
        %v1507 = vpop.f32.mrf.mxu0
        %v1508 = vadd.f32 %v573, %v1507
        %1509 = vdwg.mxu0
        %1510 = vmatpush.bf16.msra.mxu0 %v700
        %1511 = vmatpush.bf16.msra.mxu0 %v697
        %1512 = vmatpush.bf16.msra.mxu0 %v694
        %1513 = vmatpush.bf16.msra.mxu0 %v691
        %1514 = vmatpush.bf16.msra.mxu0 %v688
        %1515 = vmatpush.bf16.msra.mxu0 %v685
        %1516 = vmatpush.bf16.msra.mxu0 %v682
        %1517 = vmatpush.bf16.msra.mxu0 %v679
        %1518 = vmatmul.bf16.gmra.mxu0 %v1481
        %v1519 = vpop.f32.mrf.mxu0
        %v1520 = vadd.f32 %v574, %v1519
        %v1521 = vpop.f32.mrf.mxu0
        %v1522 = vadd.f32 %v574, %v1521
        %1523 = vdwg.mxu0
        %v1524 = vpack.c.bf16 %v1494, %v1492
        %v1525 = vpack.c.bf16 %v1520, %v1506
        %v1526 = vpack.c.bf16 %v1522, %v1508
        %v1529 = vunpack.c.l.b16 %v1525
        %v1530 = vunpack.c.h.b16 %v1525
        %v1531 = vunpack.c.l.b16 %v1526
        %v1532 = vunpack.c.h.b16 %v1526
        %v1533 = vpack.c.b16 %v1531, %v1529
        %v1534 = vpack.c.b16 %v1532, %v1530
        %v1537 = vunpack.c.l.bf16 %v1533
        %v1538 = vunpack.c.h.bf16 %v1533
        %v1539 = vmul.f32 %v1537, %v782
        %v1540 = vmul.f32 %v1538, %v783
        %v1541 = vmul.f32 %v1537, %v784
        %v1542 = vmul.f32 %v1538, %v785
        %v1543 = vmul.f32 %v1537, %v786
        %v1544 = vmul.f32 %v1538, %v787
        %v1545 = vmul.f32 %v1537, %v788
        %v1546 = vmul.f32 %v1538, %v789
        %v1547 = vmul.f32 %v1537, %v790
        %v1548 = vmul.f32 %v1538, %v791
        %v1549 = vmul.f32 %v1537, %v792
        %v1550 = vmul.f32 %v1538, %v793
        %v1551 = vmul.f32 %v1537, %v794
        %v1552 = vmul.f32 %v1538, %v795
        %v1553 = vmul.f32 %v1537, %v796
        %v1554 = vmul.f32 %v1538, %v797
        %v1555 = vpack.c.bf16 %v1540, %v1539
        %v1556 = vpack.c.bf16 %v1542, %v1541
        %v1557 = vpack.c.bf16 %v1544, %v1543
        %v1558 = vpack.c.bf16 %v1546, %v1545
        %v1559 = vpack.c.bf16 %v1548, %v1547
        %v1560 = vpack.c.bf16 %v1550, %v1549
        %v1561 = vpack.c.bf16 %v1552, %v1551
        %v1562 = vpack.c.bf16 %v1554, %v1553
        %v1563 = vunpack.c.l.bf16 %v1534
        %v1564 = vunpack.c.h.bf16 %v1534
        %v1565 = vmul.f32 %v1563, %v782
        %v1566 = vmul.f32 %v1564, %v783
        %v1567 = vmul.f32 %v1563, %v784
        %v1568 = vmul.f32 %v1564, %v785
        %v1569 = vmul.f32 %v1563, %v786
        %v1570 = vmul.f32 %v1564, %v787
        %v1571 = vmul.f32 %v1563, %v788
        %v1572 = vmul.f32 %v1564, %v789
        %v1573 = vmul.f32 %v1563, %v790
        %v1574 = vmul.f32 %v1564, %v791
        %v1575 = vmul.f32 %v1563, %v792
        %v1576 = vmul.f32 %v1564, %v793
        %v1577 = vmul.f32 %v1563, %v794
        %v1578 = vmul.f32 %v1564, %v795
        %v1579 = vmul.f32 %v1563, %v796
        %v1580 = vmul.f32 %v1564, %v797
        %v1581 = vpack.c.bf16 %v1566, %v1565
        %v1582 = vpack.c.bf16 %v1568, %v1567
        %v1583 = vpack.c.bf16 %v1570, %v1569
        %v1584 = vpack.c.bf16 %v1572, %v1571
        %v1585 = vpack.c.bf16 %v1574, %v1573
        %v1586 = vpack.c.bf16 %v1576, %v1575
        %v1587 = vpack.c.bf16 %v1578, %v1577
        %v1588 = vpack.c.bf16 %v1580, %v1579
        %1589 = vmatpush.bf16.xpose.msra.mxu0 %v1562
        %1590 = vmatpush.bf16.xpose.msra.mxu0 %v1561
        %1591 = vmatpush.bf16.xpose.msra.mxu0 %v1560
        %1592 = vmatpush.bf16.xpose.msra.mxu0 %v1559
        %1593 = vmatpush.bf16.xpose.msra.mxu0 %v1558
        %1594 = vmatpush.bf16.xpose.msra.mxu0 %v1557
        %1595 = vmatpush.bf16.xpose.msra.mxu0 %v1556
        %1596 = vmatpush.bf16.xpose.msra.mxu0 %v1555
        %1597 = vmatmul.bf16.gmra.mxu0 %v1524
        %v1598 = vpop.f32.mrf.mxu0
        %v1599 = vadd.f32 0.0, %v1598
        %v1600 = vpop.f32.mrf.mxu0
        %v1601 = vadd.f32 0.0, %v1600
        %1602 = vdwg.mxu0
        %1603 = vmax.xlane.f32.xlu0 %v1599
        %v1604 = vpop.xlane.xlu0 %1603
        %1605 = vmax.xlane.f32.xlu0 %v1601
        %v1606 = vpop.xlane.xlu0 %1605
        %v1607 = vsub.f32 %v1599, %v1604
        %v1608 = vsub.f32 %v1601, %v1606
        %v1609 = vmul.f32 %v1607, 1.442695
        %v1610 = vpow.pop %v1609
        %v1611 = vmul.f32 %v1608, 1.442695
        %v1612 = vpow.pop %v1611
        %v1613 = vpack.c.bf16 %v1612, %v1610
        %1614 = vmatpush.bf16.msra.mxu0 %v912
        %1615 = vmatpush.bf16.msra.mxu0 %v911
        %1616 = vmatpush.bf16.msra.mxu0 %v910
        %1617 = vmatpush.bf16.msra.mxu0 %v909
        %1618 = vmatpush.bf16.msra.mxu0 %v908
        %1619 = vmatpush.bf16.msra.mxu0 %v907
        %1620 = vmatpush.bf16.msra.mxu0 %v906
        %1621 = vmatpush.bf16.msra.mxu0 %v905
        %1622 = vmatmul.bf16.gmra.mxu0 %v1613
        %v1623 = vpop.f32.mrf.mxu0
        %v1624 = vadd.f32 0.0, %v1623
        %v1625 = vpop.f32.mrf.mxu0
        %v1626 = vadd.f32 0.0, %v1625
        %1627 = vdwg.mxu0
        %1628 = vmatpush.bf16.msra.mxu0 %v1588
        %1629 = vmatpush.bf16.msra.mxu0 %v1587
        %1630 = vmatpush.bf16.msra.mxu0 %v1586
        %1631 = vmatpush.bf16.msra.mxu0 %v1585
        %1632 = vmatpush.bf16.msra.mxu0 %v1584
        %1633 = vmatpush.bf16.msra.mxu0 %v1583
        %1634 = vmatpush.bf16.msra.mxu0 %v1582
        %1635 = vmatpush.bf16.msra.mxu0 %v1581
        %1636 = vmatmul.bf16.gmra.mxu0 %v1613
        %v1637 = vpop.f32.mrf.mxu0
        %v1638 = vadd.f32 0.0, %v1637
        %v1639 = vpop.f32.mrf.mxu0
        %v1640 = vadd.f32 0.0, %v1639
        %1641 = vdwg.mxu0
        %v1642 = vrcp.pop %v1624
        %v1643 = vrcp.pop %v1626
        %v1644 = vmul.f32 %v1638, %v1642
        %v1645 = vmul.f32 %v1640, %v1643
        %v1646 = vpack.c.bf16 %v1645, %v1644
        %1647 = vmatpush.bf16.msra.mxu0 %v993
        %1648 = vmatpush.bf16.msra.mxu0 %v992
        %1649 = vmatpush.bf16.msra.mxu0 %v991
        %1650 = vmatpush.bf16.msra.mxu0 %v990
        %1651 = vmatpush.bf16.msra.mxu0 %v989
        %1652 = vmatpush.bf16.msra.mxu0 %v988
        %1653 = vmatpush.bf16.msra.mxu0 %v987
        %1654 = vmatpush.bf16.msra.mxu0 %v986
        %1655 = vmatmul.bf16.gmra.mxu0 %v1646
        %v1656 = vpop.f32.mrf.mxu0
        %v1657 = vadd.f32 %v580, %v1656
        %v1658 = vpop.f32.mrf.mxu0
        %v1659 = vadd.f32 %v580, %v1658
        %1660 = vdwg.mxu0
        %v1661 = vadd.f32 %v1479, %v1657
        %v1662 = vadd.f32 %v1480, %v1659
        %1663 = vadd.xlane.f32.xlu0 %v1661
        %v1664 = vpop.xlane.xlu0 %1663
        %1665 = vadd.xlane.f32.xlu0 %v1662
        %v1666 = vpop.xlane.xlu0 %1665
        %v1667 = vmul.f32 %v1664, %v1028
        %v1668 = vmul.f32 %v1666, %v1028
        %v1669 = vmul.f32 %v1661, %v1661
        %v1670 = vmul.f32 %v1662, %v1662
        %1671 = vadd.xlane.f32.xlu0 %v1669
        %v1672 = vpop.xlane.xlu0 %1671
        %1673 = vadd.xlane.f32.xlu0 %v1670
        %v1674 = vpop.xlane.xlu0 %1673
        %v1675 = vmul.f32 %v1672, %v1028
        %v1676 = vmul.f32 %v1674, %v1028
        %v1677 = vmul.f32 %v1667, %v1667
        %v1678 = vmul.f32 %v1668, %v1668
        %v1679 = vsub.f32 %v1675, %v1677
        %v1680 = vsub.f32 %v1676, %v1678
        %v1681 = vsub.f32 %v1661, %v1667
        %v1682 = vsub.f32 %v1662, %v1668
        %v1683 = vadd.f32 %v1679, 1e-05
        %v1684 = vadd.f32 %v1680, 1e-05
        %v1685 = vrsqrt.pop %v1683
        %v1686 = vmul.f32 %v1685, %v1683
        %v1687 = vmul.f32 %v1686, %v1685
        %v1688 = vmul.f32 0.5, %v1687
        %v1689 = vsub.f32 1.5, %v1688
        %v1690 = vmul.f32 %v1685, %v1689
        %vm1691 = vweird.f32 %v1683
        %vm1692 = vweird.f32 %v1685
        %vm1693 = vmor %vm1691, %vm1692
        %v1694 = vsel %vm1693, %v1685, %v1690
        %v1695 = vrsqrt.pop %v1684
        %v1696 = vmul.f32 %v1695, %v1684
        %v1697 = vmul.f32 %v1696, %v1695
        %v1698 = vmul.f32 0.5, %v1697
        %v1699 = vsub.f32 1.5, %v1698
        %v1700 = vmul.f32 %v1695, %v1699
        %vm1701 = vweird.f32 %v1684
        %vm1702 = vweird.f32 %v1695
        %vm1703 = vmor %vm1701, %vm1702
        %v1704 = vsel %vm1703, %v1695, %v1700
        %v1705 = vmul.f32 %v1681, %v1694
        %v1706 = vmul.f32 %v1682, %v1704
        %v1707 = vmul.f32 %v1705, %v588
        %v1708 = vmul.f32 %v1706, %v588
        %v1709 = vadd.f32 %v1707, %v592
        %v1710 = vadd.f32 %v1708, %v592
        %v1711 = vpack.c.bf16 %v1710, %v1709
        %1712 = vmatpush.bf16.msra.mxu0 %v1113
        %1713 = vmatpush.bf16.msra.mxu0 %v1112
        %1714 = vmatpush.bf16.msra.mxu0 %v1111
        %1715 = vmatpush.bf16.msra.mxu0 %v1110
        %1716 = vmatpush.bf16.msra.mxu0 %v1109
        %1717 = vmatpush.bf16.msra.mxu0 %v1108
        %1718 = vmatpush.bf16.msra.mxu0 %v1107
        %1719 = vmatpush.bf16.msra.mxu0 %v1106
        %1720 = vmatmul.bf16.gmra.mxu0 %v1711
        %v1721 = vpop.f32.mrf.mxu0
        %v1722 = vadd.f32 %v584, %v1721
        %v1723 = vpop.f32.mrf.mxu0
        %v1724 = vadd.f32 %v584, %v1723
        %1725 = vdwg.mxu0
        %v1726 = vadd.f32 %v1709, %v1722
        %v1727 = vadd.f32 %v1710, %v1724
        %1728 = vadd.xlane.f32.xlu0 %v1726
        %v1729 = vpop.xlane.xlu0 %1728
        %1730 = vadd.xlane.f32.xlu0 %v1727
        %v1731 = vpop.xlane.xlu0 %1730
        %v1732 = vmul.f32 %v1729, %v1028
        %v1733 = vmul.f32 %v1731, %v1028
        %v1734 = vmul.f32 %v1726, %v1726
        %v1735 = vmul.f32 %v1727, %v1727
        %1736 = vadd.xlane.f32.xlu0 %v1734
        %v1737 = vpop.xlane.xlu0 %1736
        %1738 = vadd.xlane.f32.xlu0 %v1735
        %v1739 = vpop.xlane.xlu0 %1738
        %v1740 = vmul.f32 %v1737, %v1028
        %v1741 = vmul.f32 %v1739, %v1028
        %v1742 = vmul.f32 %v1732, %v1732
        %v1743 = vmul.f32 %v1733, %v1733
        %v1744 = vsub.f32 %v1740, %v1742
        %v1745 = vsub.f32 %v1741, %v1743
        %v1746 = vsub.f32 %v1726, %v1732
        %v1747 = vsub.f32 %v1727, %v1733
        %v1748 = vadd.f32 %v1744, 1e-05
        %v1749 = vadd.f32 %v1745, 1e-05
        %v1750 = vrsqrt.pop %v1748
        %v1751 = vmul.f32 %v1750, %v1748
        %v1752 = vmul.f32 %v1751, %v1750
        %v1753 = vmul.f32 0.5, %v1752
        %v1754 = vsub.f32 1.5, %v1753
        %v1755 = vmul.f32 %v1750, %v1754
        %vm1756 = vweird.f32 %v1748
        %vm1757 = vweird.f32 %v1750
        %vm1758 = vmor %vm1756, %vm1757
        %v1759 = vsel %vm1758, %v1750, %v1755
        %v1760 = vrsqrt.pop %v1749
        %v1761 = vmul.f32 %v1760, %v1749
        %v1762 = vmul.f32 %v1761, %v1760
        %v1763 = vmul.f32 0.5, %v1762
        %v1764 = vsub.f32 1.5, %v1763
        %v1765 = vmul.f32 %v1760, %v1764
        %vm1766 = vweird.f32 %v1749
        %vm1767 = vweird.f32 %v1760
        %vm1768 = vmor %vm1766, %vm1767
        %v1769 = vsel %vm1768, %v1760, %v1765
        %v1770 = vmul.f32 %v1746, %v1759
        %v1771 = vmul.f32 %v1747, %v1769
        %v1772 = vmul.f32 %v1770, %v588
        %v1773 = vmul.f32 %v1771, %v588
        %v1774 = vadd.f32 %v1772, %v592
        %v1775 = vadd.f32 %v1773, %v592
        %v1776 = vpack.c.bf16 %v1775, %v1774
        %1777 = vmatpush.bf16.msra.mxu0 %v698
        %1778 = vmatpush.bf16.msra.mxu0 %v695
        %1779 = vmatpush.bf16.msra.mxu0 %v692
        %1780 = vmatpush.bf16.msra.mxu0 %v689
        %1781 = vmatpush.bf16.msra.mxu0 %v686
        %1782 = vmatpush.bf16.msra.mxu0 %v683
        %1783 = vmatpush.bf16.msra.mxu0 %v680
        %1784 = vmatpush.bf16.msra.mxu0 %v677
        %1785 = vmatmul.bf16.gmra.mxu0 %v1776
        %v1786 = vpop.f32.mrf.mxu0
        %v1787 = vadd.f32 %v572, %v1786
        %v1788 = vpop.f32.mrf.mxu0
        %v1789 = vadd.f32 %v572, %v1788
        %1790 = vdwg.mxu0
        %1791 = vmatpush.bf16.msra.mxu0 %v699
        %1792 = vmatpush.bf16.msra.mxu0 %v696
        %1793 = vmatpush.bf16.msra.mxu0 %v693
        %1794 = vmatpush.bf16.msra.mxu0 %v690
        %1795 = vmatpush.bf16.msra.mxu0 %v687
        %1796 = vmatpush.bf16.msra.mxu0 %v684
        %1797 = vmatpush.bf16.msra.mxu0 %v681
        %1798 = vmatpush.bf16.msra.mxu0 %v678
        %1799 = vmatmul.bf16.gmra.mxu0 %v1776
        %v1800 = vpop.f32.mrf.mxu0
        %v1801 = vadd.f32 %v573, %v1800
        %v1802 = vpop.f32.mrf.mxu0
        %v1803 = vadd.f32 %v573, %v1802
        %1804 = vdwg.mxu0
        %1805 = vmatpush.bf16.msra.mxu0 %v700
        %1806 = vmatpush.bf16.msra.mxu0 %v697
        %1807 = vmatpush.bf16.msra.mxu0 %v694
        %1808 = vmatpush.bf16.msra.mxu0 %v691
        %1809 = vmatpush.bf16.msra.mxu0 %v688
        %1810 = vmatpush.bf16.msra.mxu0 %v685
        %1811 = vmatpush.bf16.msra.mxu0 %v682
        %1812 = vmatpush.bf16.msra.mxu0 %v679
        %1813 = vmatmul.bf16.gmra.mxu0 %v1776
        %v1814 = vpop.f32.mrf.mxu0
        %v1815 = vadd.f32 %v574, %v1814
        %v1816 = vpop.f32.mrf.mxu0
        %v1817 = vadd.f32 %v574, %v1816
        %1818 = vdwg.mxu0
        %v1819 = vpack.c.bf16 %v1789, %v1787
        %v1820 = vpack.c.bf16 %v1815, %v1801
        %v1821 = vpack.c.bf16 %v1817, %v1803
        %v1824 = vunpack.c.l.b16 %v1820
        %v1825 = vunpack.c.h.b16 %v1820
        %v1826 = vunpack.c.l.b16 %v1821
        %v1827 = vunpack.c.h.b16 %v1821
        %v1828 = vpack.c.b16 %v1826, %v1824
        %v1829 = vpack.c.b16 %v1827, %v1825
        %v1832 = vunpack.c.l.bf16 %v1828
        %v1833 = vunpack.c.h.bf16 %v1828
        %v1834 = vmul.f32 %v1832, %v782
        %v1835 = vmul.f32 %v1833, %v783
        %v1836 = vmul.f32 %v1832, %v784
        %v1837 = vmul.f32 %v1833, %v785
        %v1838 = vmul.f32 %v1832, %v786
        %v1839 = vmul.f32 %v1833, %v787
        %v1840 = vmul.f32 %v1832, %v788
        %v1841 = vmul.f32 %v1833, %v789
        %v1842 = vmul.f32 %v1832, %v790
        %v1843 = vmul.f32 %v1833, %v791
        %v1844 = vmul.f32 %v1832, %v792
        %v1845 = vmul.f32 %v1833, %v793
        %v1846 = vmul.f32 %v1832, %v794
        %v1847 = vmul.f32 %v1833, %v795
        %v1848 = vmul.f32 %v1832, %v796
        %v1849 = vmul.f32 %v1833, %v797
        %v1850 = vpack.c.bf16 %v1835, %v1834
        %v1851 = vpack.c.bf16 %v1837, %v1836
        %v1852 = vpack.c.bf16 %v1839, %v1838
        %v1853 = vpack.c.bf16 %v1841, %v1840
        %v1854 = vpack.c.bf16 %v1843, %v1842
        %v1855 = vpack.c.bf16 %v1845, %v1844
        %v1856 = vpack.c.bf16 %v1847, %v1846
        %v1857 = vpack.c.bf16 %v1849, %v1848
        %v1858 = vunpack.c.l.bf16 %v1829
        %v1859 = vunpack.c.h.bf16 %v1829
        %v1860 = vmul.f32 %v1858, %v782
        %v1861 = vmul.f32 %v1859, %v783
        %v1862 = vmul.f32 %v1858, %v784
        %v1863 = vmul.f32 %v1859, %v785
        %v1864 = vmul.f32 %v1858, %v786
        %v1865 = vmul.f32 %v1859, %v787
        %v1866 = vmul.f32 %v1858, %v788
        %v1867 = vmul.f32 %v1859, %v789
        %v1868 = vmul.f32 %v1858, %v790
        %v1869 = vmul.f32 %v1859, %v791
        %v1870 = vmul.f32 %v1858, %v792
        %v1871 = vmul.f32 %v1859, %v793
        %v1872 = vmul.f32 %v1858, %v794
        %v1873 = vmul.f32 %v1859, %v795
        %v1874 = vmul.f32 %v1858, %v796
        %v1875 = vmul.f32 %v1859, %v797
        %v1876 = vpack.c.bf16 %v1861, %v1860
        %v1877 = vpack.c.bf16 %v1863, %v1862
        %v1878 = vpack.c.bf16 %v1865, %v1864
        %v1879 = vpack.c.bf16 %v1867, %v1866
        %v1880 = vpack.c.bf16 %v1869, %v1868
        %v1881 = vpack.c.bf16 %v1871, %v1870
        %v1882 = vpack.c.bf16 %v1873, %v1872
        %v1883 = vpack.c.bf16 %v1875, %v1874
        %1884 = vmatpush.bf16.xpose.msra.mxu0 %v1857
        %1885 = vmatpush.bf16.xpose.msra.mxu0 %v1856
        %1886 = vmatpush.bf16.xpose.msra.mxu0 %v1855
        %1887 = vmatpush.bf16.xpose.msra.mxu0 %v1854
        %1888 = vmatpush.bf16.xpose.msra.mxu0 %v1853
        %1889 = vmatpush.bf16.xpose.msra.mxu0 %v1852
        %1890 = vmatpush.bf16.xpose.msra.mxu0 %v1851
        %1891 = vmatpush.bf16.xpose.msra.mxu0 %v1850
        %1892 = vmatmul.bf16.gmra.mxu0 %v1819
        %v1893 = vpop.f32.mrf.mxu0
        %v1894 = vadd.f32 0.0, %v1893
        %v1895 = vpop.f32.mrf.mxu0
        %v1896 = vadd.f32 0.0, %v1895
        %1897 = vdwg.mxu0
        %1898 = vmax.xlane.f32.xlu0 %v1894
        %v1899 = vpop.xlane.xlu0 %1898
        %1900 = vmax.xlane.f32.xlu0 %v1896
        %v1901 = vpop.xlane.xlu0 %1900
        %v1902 = vsub.f32 %v1894, %v1899
        %v1903 = vsub.f32 %v1896, %v1901
        %v1904 = vmul.f32 %v1902, 1.442695
        %v1905 = vpow.pop %v1904
        %v1906 = vmul.f32 %v1903, 1.442695
        %v1907 = vpow.pop %v1906
        %v1908 = vpack.c.bf16 %v1907, %v1905
        %1909 = vmatpush.bf16.msra.mxu0 %v912
        %1910 = vmatpush.bf16.msra.mxu0 %v911
        %1911 = vmatpush.bf16.msra.mxu0 %v910
        %1912 = vmatpush.bf16.msra.mxu0 %v909
        %1913 = vmatpush.bf16.msra.mxu0 %v908
        %1914 = vmatpush.bf16.msra.mxu0 %v907
        %1915 = vmatpush.bf16.msra.mxu0 %v906
        %1916 = vmatpush.bf16.msra.mxu0 %v905
        %1917 = vmatmul.bf16.gmra.mxu0 %v1908
        %v1918 = vpop.f32.mrf.mxu0
        %v1919 = vadd.f32 0.0, %v1918
        %v1920 = vpop.f32.mrf.mxu0
        %v1921 = vadd.f32 0.0, %v1920
        %1922 = vdwg.mxu0
        %1923 = vmatpush.bf16.msra.mxu0 %v1883
        %1924 = vmatpush.bf16.msra.mxu0 %v1882
        %1925 = vmatpush.bf16.msra.mxu0 %v1881
        %1926 = vmatpush.bf16.msra.mxu0 %v1880
        %1927 = vmatpush.bf16.msra.mxu0 %v1879
        %1928 = vmatpush.bf16.msra.mxu0 %v1878
        %1929 = vmatpush.bf16.msra.mxu0 %v1877
        %1930 = vmatpush.bf16.msra.mxu0 %v1876
        %1931 = vmatmul.bf16.gmra.mxu0 %v1908
        %v1932 = vpop.f32.mrf.mxu0
        %v1933 = vadd.f32 0.0, %v1932
        %v1934 = vpop.f32.mrf.mxu0
        %v1935 = vadd.f32 0.0, %v1934
        %1936 = vdwg.mxu0
        %v1937 = vrcp.pop %v1919
        %v1938 = vrcp.pop %v1921
        %v1939 = vmul.f32 %v1933, %v1937
        %v1940 = vmul.f32 %v1935, %v1938
        %v1941 = vpack.c.bf16 %v1940, %v1939
        %1942 = vmatpush.bf16.msra.mxu0 %v993
        %1943 = vmatpush.bf16.msra.mxu0 %v992
        %1944 = vmatpush.bf16.msra.mxu0 %v991
        %1945 = vmatpush.bf16.msra.mxu0 %v990
        %1946 = vmatpush.bf16.msra.mxu0 %v989
        %1947 = vmatpush.bf16.msra.mxu0 %v988
        %1948 = vmatpush.bf16.msra.mxu0 %v987
        %1949 = vmatpush.bf16.msra.mxu0 %v986
        %1950 = vmatmul.bf16.gmra.mxu0 %v1941
        %v1951 = vpop.f32.mrf.mxu0
        %v1952 = vadd.f32 %v580, %v1951
        %v1953 = vpop.f32.mrf.mxu0
        %v1954 = vadd.f32 %v580, %v1953
        %1955 = vdwg.mxu0
        %v1956 = vadd.f32 %v1774, %v1952
        %v1957 = vadd.f32 %v1775, %v1954
        %1958 = vadd.xlane.f32.xlu0 %v1956
        %v1959 = vpop.xlane.xlu0 %1958
        %1960 = vadd.xlane.f32.xlu0 %v1957
        %v1961 = vpop.xlane.xlu0 %1960
        %v1962 = vmul.f32 %v1959, %v1028
        %v1963 = vmul.f32 %v1961, %v1028
        %v1964 = vmul.f32 %v1956, %v1956
        %v1965 = vmul.f32 %v1957, %v1957
        %1966 = vadd.xlane.f32.xlu0 %v1964
        %v1967 = vpop.xlane.xlu0 %1966
        %1968 = vadd.xlane.f32.xlu0 %v1965
        %v1969 = vpop.xlane.xlu0 %1968
        %v1970 = vmul.f32 %v1967, %v1028
        %v1971 = vmul.f32 %v1969, %v1028
        %v1972 = vmul.f32 %v1962, %v1962
        %v1973 = vmul.f32 %v1963, %v1963
        %v1974 = vsub.f32 %v1970, %v1972
        %v1975 = vsub.f32 %v1971, %v1973
        %v1976 = vsub.f32 %v1956, %v1962
        %v1977 = vsub.f32 %v1957, %v1963
        %v1978 = vadd.f32 %v1974, 1e-05
        %v1979 = vadd.f32 %v1975, 1e-05
        %v1980 = vrsqrt.pop %v1978
        %v1981 = vmul.f32 %v1980, %v1978
        %v1982 = vmul.f32 %v1981, %v1980
        %v1983 = vmul.f32 0.5, %v1982
        %v1984 = vsub.f32 1.5, %v1983
        %v1985 = vmul.f32 %v1980, %v1984
        %vm1986 = vweird.f32 %v1978
        %vm1987 = vweird.f32 %v1980
        %vm1988 = vmor %vm1986, %vm1987
        %v1989 = vsel %vm1988, %v1980, %v1985
        %v1990 = vrsqrt.pop %v1979
        %v1991 = vmul.f32 %v1990, %v1979
        %v1992 = vmul.f32 %v1991, %v1990
        %v1993 = vmul.f32 0.5, %v1992
        %v1994 = vsub.f32 1.5, %v1993
        %v1995 = vmul.f32 %v1990, %v1994
        %vm1996 = vweird.f32 %v1979
        %vm1997 = vweird.f32 %v1990
        %vm1998 = vmor %vm1996, %vm1997
        %v1999 = vsel %vm1998, %v1990, %v1995
        %v2000 = vmul.f32 %v1976, %v1989
        %v2001 = vmul.f32 %v1977, %v1999
        %v2002 = vmul.f32 %v2000, %v588
        %v2003 = vmul.f32 %v2001, %v588
        %v2004 = vadd.f32 %v2002, %v592
        %v2005 = vadd.f32 %v2003, %v592
        %v2006 = vpack.c.bf16 %v2005, %v2004
        %2007 = vmatpush.bf16.msra.mxu0 %v1113
        %2008 = vmatpush.bf16.msra.mxu0 %v1112
        %2009 = vmatpush.bf16.msra.mxu0 %v1111
        %2010 = vmatpush.bf16.msra.mxu0 %v1110
        %2011 = vmatpush.bf16.msra.mxu0 %v1109
        %2012 = vmatpush.bf16.msra.mxu0 %v1108
        %2013 = vmatpush.bf16.msra.mxu0 %v1107
        %2014 = vmatpush.bf16.msra.mxu0 %v1106
        %2015 = vmatmul.bf16.gmra.mxu0 %v2006
        %v2016 = vpop.f32.mrf.mxu0
        %v2017 = vadd.f32 %v584, %v2016
        %v2018 = vpop.f32.mrf.mxu0
        %v2019 = vadd.f32 %v584, %v2018
        %2020 = vdwg.mxu0
        %v2021 = vadd.f32 %v2004, %v2017
        %v2022 = vadd.f32 %v2005, %v2019
        %2023 = vadd.xlane.f32.xlu0 %v2021
        %v2024 = vpop.xlane.xlu0 %2023
        %2025 = vadd.xlane.f32.xlu0 %v2022
        %v2026 = vpop.xlane.xlu0 %2025
        %v2027 = vmul.f32 %v2024, %v1028
        %v2028 = vmul.f32 %v2026, %v1028
        %v2029 = vmul.f32 %v2021, %v2021
        %v2030 = vmul.f32 %v2022, %v2022
        %2031 = vadd.xlane.f32.xlu0 %v2029
        %v2032 = vpop.xlane.xlu0 %2031
        %2033 = vadd.xlane.f32.xlu0 %v2030
        %v2034 = vpop.xlane.xlu0 %2033
        %v2035 = vmul.f32 %v2032, %v1028
        %v2036 = vmul.f32 %v2034, %v1028
        %v2037 = vmul.f32 %v2027, %v2027
        %v2038 = vmul.f32 %v2028, %v2028
        %v2039 = vsub.f32 %v2035, %v2037
        %v2040 = vsub.f32 %v2036, %v2038
        %v2041 = vsub.f32 %v2021, %v2027
        %v2042 = vsub.f32 %v2022, %v2028
        %v2043 = vadd.f32 %v2039, 1e-05
        %v2044 = vadd.f32 %v2040, 1e-05
        %v2045 = vrsqrt.pop %v2043
        %v2046 = vmul.f32 %v2045, %v2043
        %v2047 = vmul.f32 %v2046, %v2045
        %v2048 = vmul.f32 0.5, %v2047
        %v2049 = vsub.f32 1.5, %v2048
        %v2050 = vmul.f32 %v2045, %v2049
        %vm2051 = vweird.f32 %v2043
        %vm2052 = vweird.f32 %v2045
        %vm2053 = vmor %vm2051, %vm2052
        %v2054 = vsel %vm2053, %v2045, %v2050
        %v2055 = vrsqrt.pop %v2044
        %v2056 = vmul.f32 %v2055, %v2044
        %v2057 = vmul.f32 %v2056, %v2055
        %v2058 = vmul.f32 0.5, %v2057
        %v2059 = vsub.f32 1.5, %v2058
        %v2060 = vmul.f32 %v2055, %v2059
        %vm2061 = vweird.f32 %v2044
        %vm2062 = vweird.f32 %v2055
        %vm2063 = vmor %vm2061, %vm2062
        %v2064 = vsel %vm2063, %v2055, %v2060
        %v2065 = vmul.f32 %v2041, %v2054
        %v2066 = vmul.f32 %v2042, %v2064
        %v2067 = vmul.f32 %v2065, %v588
        %v2068 = vmul.f32 %v2066, %v588
        %v2069 = vadd.f32 %v2067, %v592
        %v2070 = vadd.f32 %v2068, %v592
        %v2071 = vpack.c.bf16 %v2070, %v2069
        %2072 = vmatpush.bf16.msra.mxu0 %v698
        %2073 = vmatpush.bf16.msra.mxu0 %v695
        %2074 = vmatpush.bf16.msra.mxu0 %v692
        %2075 = vmatpush.bf16.msra.mxu0 %v689
        %2076 = vmatpush.bf16.msra.mxu0 %v686
        %2077 = vmatpush.bf16.msra.mxu0 %v683
        %2078 = vmatpush.bf16.msra.mxu0 %v680
        %2079 = vmatpush.bf16.msra.mxu0 %v677
        %2080 = vmatmul.bf16.gmra.mxu0 %v2071
        %v2081 = vpop.f32.mrf.mxu0
        %v2082 = vadd.f32 %v572, %v2081
        %v2083 = vpop.f32.mrf.mxu0
        %v2084 = vadd.f32 %v572, %v2083
        %2085 = vdwg.mxu0
        %2086 = vmatpush.bf16.msra.mxu0 %v699
        %2087 = vmatpush.bf16.msra.mxu0 %v696
        %2088 = vmatpush.bf16.msra.mxu0 %v693
        %2089 = vmatpush.bf16.msra.mxu0 %v690
        %2090 = vmatpush.bf16.msra.mxu0 %v687
        %2091 = vmatpush.bf16.msra.mxu0 %v684
        %2092 = vmatpush.bf16.msra.mxu0 %v681
        %2093 = vmatpush.bf16.msra.mxu0 %v678
        %2094 = vmatmul.bf16.gmra.mxu0 %v2071
        %v2095 = vpop.f32.mrf.mxu0
        %v2096 = vadd.f32 %v573, %v2095
        %v2097 = vpop.f32.mrf.mxu0
        %v2098 = vadd.f32 %v573, %v2097
        %2099 = vdwg.mxu0
        %2100 = vmatpush.bf16.msra.mxu0 %v700
        %2101 = vmatpush.bf16.msra.mxu0 %v697
        %2102 = vmatpush.bf16.msra.mxu0 %v694
        %2103 = vmatpush.bf16.msra.mxu0 %v691
        %2104 = vmatpush.bf16.msra.mxu0 %v688
        %2105 = vmatpush.bf16.msra.mxu0 %v685
        %2106 = vmatpush.bf16.msra.mxu0 %v682
        %2107 = vmatpush.bf16.msra.mxu0 %v679
        %2108 = vmatmul.bf16.gmra.mxu0 %v2071
        %v2109 = vpop.f32.mrf.mxu0
        %v2110 = vadd.f32 %v574, %v2109
        %v2111 = vpop.f32.mrf.mxu0
        %v2112 = vadd.f32 %v574, %v2111
        %2113 = vdwg.mxu0
        %v2114 = vpack.c.bf16 %v2084, %v2082
        %v2115 = vpack.c.bf16 %v2110, %v2096
        %v2116 = vpack.c.bf16 %v2112, %v2098
        %v2119 = vunpack.c.l.b16 %v2115
        %v2120 = vunpack.c.h.b16 %v2115
        %v2121 = vunpack.c.l.b16 %v2116
        %v2122 = vunpack.c.h.b16 %v2116
        %v2123 = vpack.c.b16 %v2121, %v2119
        %v2124 = vpack.c.b16 %v2122, %v2120
        %v2127 = vunpack.c.l.bf16 %v2123
        %v2128 = vunpack.c.h.bf16 %v2123
        %v2129 = vmul.f32 %v2127, %v782
        %v2130 = vmul.f32 %v2128, %v783
        %v2131 = vmul.f32 %v2127, %v784
        %v2132 = vmul.f32 %v2128, %v785
        %v2133 = vmul.f32 %v2127, %v786
        %v2134 = vmul.f32 %v2128, %v787
        %v2135 = vmul.f32 %v2127, %v788
        %v2136 = vmul.f32 %v2128, %v789
        %v2137 = vmul.f32 %v2127, %v790
        %v2138 = vmul.f32 %v2128, %v791
        %v2139 = vmul.f32 %v2127, %v792
        %v2140 = vmul.f32 %v2128, %v793
        %v2141 = vmul.f32 %v2127, %v794
        %v2142 = vmul.f32 %v2128, %v795
        %v2143 = vmul.f32 %v2127, %v796
        %v2144 = vmul.f32 %v2128, %v797
        %v2145 = vpack.c.bf16 %v2130, %v2129
        %v2146 = vpack.c.bf16 %v2132, %v2131
        %v2147 = vpack.c.bf16 %v2134, %v2133
        %v2148 = vpack.c.bf16 %v2136, %v2135
        %v2149 = vpack.c.bf16 %v2138, %v2137
        %v2150 = vpack.c.bf16 %v2140, %v2139
        %v2151 = vpack.c.bf16 %v2142, %v2141
        %v2152 = vpack.c.bf16 %v2144, %v2143
        %v2153 = vunpack.c.l.bf16 %v2124
        %v2154 = vunpack.c.h.bf16 %v2124
        %v2155 = vmul.f32 %v2153, %v782
        %v2156 = vmul.f32 %v2154, %v783
        %v2157 = vmul.f32 %v2153, %v784
        %v2158 = vmul.f32 %v2154, %v785
        %v2159 = vmul.f32 %v2153, %v786
        %v2160 = vmul.f32 %v2154, %v787
        %v2161 = vmul.f32 %v2153, %v788
        %v2162 = vmul.f32 %v2154, %v789
        %v2163 = vmul.f32 %v2153, %v790
        %v2164 = vmul.f32 %v2154, %v791
        %v2165 = vmul.f32 %v2153, %v792
        %v2166 = vmul.f32 %v2154, %v793
        %v2167 = vmul.f32 %v2153, %v794
        %v2168 = vmul.f32 %v2154, %v795
        %v2169 = vmul.f32 %v2153, %v796
        %v2170 = vmul.f32 %v2154, %v797
        %v2171 = vpack.c.bf16 %v2156, %v2155
        %v2172 = vpack.c.bf16 %v2158, %v2157
        %v2173 = vpack.c.bf16 %v2160, %v2159
        %v2174 = vpack.c.bf16 %v2162, %v2161
        %v2175 = vpack.c.bf16 %v2164, %v2163
        %v2176 = vpack.c.bf16 %v2166, %v2165
        %v2177 = vpack.c.bf16 %v2168, %v2167
        %v2178 = vpack.c.bf16 %v2170, %v2169
        %2179 = vmatpush.bf16.xpose.msra.mxu0 %v2152
        %2180 = vmatpush.bf16.xpose.msra.mxu0 %v2151
        %2181 = vmatpush.bf16.xpose.msra.mxu0 %v2150
        %2182 = vmatpush.bf16.xpose.msra.mxu0 %v2149
        %2183 = vmatpush.bf16.xpose.msra.mxu0 %v2148
        %2184 = vmatpush.bf16.xpose.msra.mxu0 %v2147
        %2185 = vmatpush.bf16.xpose.msra.mxu0 %v2146
        %2186 = vmatpush.bf16.xpose.msra.mxu0 %v2145
        %2187 = vmatmul.bf16.gmra.mxu0 %v2114
        %v2188 = vpop.f32.mrf.mxu0
        %v2189 = vadd.f32 0.0, %v2188
        %v2190 = vpop.f32.mrf.mxu0
        %v2191 = vadd.f32 0.0, %v2190
        %2192 = vdwg.mxu0
        %2193 = vmax.xlane.f32.xlu0 %v2189
        %v2194 = vpop.xlane.xlu0 %2193
        %2195 = vmax.xlane.f32.xlu0 %v2191
        %v2196 = vpop.xlane.xlu0 %2195
        %v2197 = vsub.f32 %v2189, %v2194
        %v2198 = vsub.f32 %v2191, %v2196
        %v2199 = vmul.f32 %v2197, 1.442695
        %v2200 = vpow.pop %v2199
        %v2201 = vmul.f32 %v2198, 1.442695
        %v2202 = vpow.pop %v2201
        %v2203 = vpack.c.bf16 %v2202, %v2200
        %2204 = vmatpush.bf16.msra.mxu0 %v912
        %2205 = vmatpush.bf16.msra.mxu0 %v911
        %2206 = vmatpush.bf16.msra.mxu0 %v910
        %2207 = vmatpush.bf16.msra.mxu0 %v909
        %2208 = vmatpush.bf16.msra.mxu0 %v908
        %2209 = vmatpush.bf16.msra.mxu0 %v907
        %2210 = vmatpush.bf16.msra.mxu0 %v906
        %2211 = vmatpush.bf16.msra.mxu0 %v905
        %2212 = vmatmul.bf16.gmra.mxu0 %v2203
        %v2213 = vpop.f32.mrf.mxu0
        %v2214 = vadd.f32 0.0, %v2213
        %v2215 = vpop.f32.mrf.mxu0
        %v2216 = vadd.f32 0.0, %v2215
        %2217 = vdwg.mxu0
        %2218 = vmatpush.bf16.msra.mxu0 %v2178
        %2219 = vmatpush.bf16.msra.mxu0 %v2177
        %2220 = vmatpush.bf16.msra.mxu0 %v2176
        %2221 = vmatpush.bf16.msra.mxu0 %v2175
        %2222 = vmatpush.bf16.msra.mxu0 %v2174
        %2223 = vmatpush.bf16.msra.mxu0 %v2173
        %2224 = vmatpush.bf16.msra.mxu0 %v2172
        %2225 = vmatpush.bf16.msra.mxu0 %v2171
        %2226 = vmatmul.bf16.gmra.mxu0 %v2203
        %v2227 = vpop.f32.mrf.mxu0
        %v2228 = vadd.f32 0.0, %v2227
        %v2229 = vpop.f32.mrf.mxu0
        %v2230 = vadd.f32 0.0, %v2229
        %2231 = vdwg.mxu0
        %v2232 = vrcp.pop %v2214
        %v2233 = vrcp.pop %v2216
        %v2234 = vmul.f32 %v2228, %v2232
        %v2235 = vmul.f32 %v2230, %v2233
        %v2236 = vpack.c.bf16 %v2235, %v2234
        %2237 = vmatpush.bf16.msra.mxu0 %v993
        %2238 = vmatpush.bf16.msra.mxu0 %v992
        %2239 = vmatpush.bf16.msra.mxu0 %v991
        %2240 = vmatpush.bf16.msra.mxu0 %v990
        %2241 = vmatpush.bf16.msra.mxu0 %v989
        %2242 = vmatpush.bf16.msra.mxu0 %v988
        %2243 = vmatpush.bf16.msra.mxu0 %v987
        %2244 = vmatpush.bf16.msra.mxu0 %v986
        %2245 = vmatmul.bf16.gmra.mxu0 %v2236
        %v2246 = vpop.f32.mrf.mxu0
        %v2247 = vadd.f32 %v580, %v2246
        %v2248 = vpop.f32.mrf.mxu0
        %v2249 = vadd.f32 %v580, %v2248
        %2250 = vdwg.mxu0
        %v2251 = vadd.f32 %v2069, %v2247
        %v2252 = vadd.f32 %v2070, %v2249
        %2253 = vadd.xlane.f32.xlu0 %v2251
        %v2254 = vpop.xlane.xlu0 %2253
        %2255 = vadd.xlane.f32.xlu0 %v2252
        %v2256 = vpop.xlane.xlu0 %2255
        %v2257 = vmul.f32 %v2254, %v1028
        %v2258 = vmul.f32 %v2256, %v1028
        %v2259 = vmul.f32 %v2251, %v2251
        %v2260 = vmul.f32 %v2252, %v2252
        %2261 = vadd.xlane.f32.xlu0 %v2259
        %v2262 = vpop.xlane.xlu0 %2261
        %2263 = vadd.xlane.f32.xlu0 %v2260
        %v2264 = vpop.xlane.xlu0 %2263
        %v2265 = vmul.f32 %v2262, %v1028
        %v2266 = vmul.f32 %v2264, %v1028
        %v2267 = vmul.f32 %v2257, %v2257
        %v2268 = vmul.f32 %v2258, %v2258
        %v2269 = vsub.f32 %v2265, %v2267
        %v2270 = vsub.f32 %v2266, %v2268
        %v2271 = vsub.f32 %v2251, %v2257
        %v2272 = vsub.f32 %v2252, %v2258
        %v2273 = vadd.f32 %v2269, 1e-05
        %v2274 = vadd.f32 %v2270, 1e-05
        %v2275 = vrsqrt.pop %v2273
        %v2276 = vmul.f32 %v2275, %v2273
        %v2277 = vmul.f32 %v2276, %v2275
        %v2278 = vmul.f32 0.5, %v2277
        %v2279 = vsub.f32 1.5, %v2278
        %v2280 = vmul.f32 %v2275, %v2279
        %vm2281 = vweird.f32 %v2273
        %vm2282 = vweird.f32 %v2275
        %vm2283 = vmor %vm2281, %vm2282
        %v2284 = vsel %vm2283, %v2275, %v2280
        %v2285 = vrsqrt.pop %v2274
        %v2286 = vmul.f32 %v2285, %v2274
        %v2287 = vmul.f32 %v2286, %v2285
        %v2288 = vmul.f32 0.5, %v2287
        %v2289 = vsub.f32 1.5, %v2288
        %v2290 = vmul.f32 %v2285, %v2289
        %vm2291 = vweird.f32 %v2274
        %vm2292 = vweird.f32 %v2285
        %vm2293 = vmor %vm2291, %vm2292
        %v2294 = vsel %vm2293, %v2285, %v2290
        %v2295 = vmul.f32 %v2271, %v2284
        %v2296 = vmul.f32 %v2272, %v2294
        %v2297 = vmul.f32 %v2295, %v588
        %v2298 = vmul.f32 %v2296, %v588
        %v2299 = vadd.f32 %v2297, %v592
        %v2300 = vadd.f32 %v2298, %v592
        %v2301 = vpack.c.bf16 %v2300, %v2299
        %2302 = vmatpush.bf16.msra.mxu0 %v1113
        %2303 = vmatpush.bf16.msra.mxu0 %v1112
        %2304 = vmatpush.bf16.msra.mxu0 %v1111
        %2305 = vmatpush.bf16.msra.mxu0 %v1110
        %2306 = vmatpush.bf16.msra.mxu0 %v1109
        %2307 = vmatpush.bf16.msra.mxu0 %v1108
        %2308 = vmatpush.bf16.msra.mxu0 %v1107
        %2309 = vmatpush.bf16.msra.mxu0 %v1106
        %2310 = vmatmul.bf16.gmra.mxu0 %v2301
        %v2311 = vpop.f32.mrf.mxu0
        %v2312 = vadd.f32 %v584, %v2311
        %v2313 = vpop.f32.mrf.mxu0
        %v2314 = vadd.f32 %v584, %v2313
        %2315 = vdwg.mxu0
        %v2316 = vadd.f32 %v2299, %v2312
        %v2317 = vadd.f32 %v2300, %v2314
        %2318 = vadd.xlane.f32.xlu0 %v2316
        %v2319 = vpop.xlane.xlu0 %2318
        %2320 = vadd.xlane.f32.xlu0 %v2317
        %v2321 = vpop.xlane.xlu0 %2320
        %v2322 = vmul.f32 %v2319, %v1028
        %v2323 = vmul.f32 %v2321, %v1028
        %v2324 = vmul.f32 %v2316, %v2316
        %v2325 = vmul.f32 %v2317, %v2317
        %2326 = vadd.xlane.f32.xlu0 %v2324
        %v2327 = vpop.xlane.xlu0 %2326
        %2328 = vadd.xlane.f32.xlu0 %v2325
        %v2329 = vpop.xlane.xlu0 %2328
        %v2330 = vmul.f32 %v2327, %v1028
        %v2331 = vmul.f32 %v2329, %v1028
        %v2332 = vmul.f32 %v2322, %v2322
        %v2333 = vmul.f32 %v2323, %v2323
        %v2334 = vsub.f32 %v2330, %v2332
        %v2335 = vsub.f32 %v2331, %v2333
        %v2336 = vsub.f32 %v2316, %v2322
        %v2337 = vsub.f32 %v2317, %v2323
        %v2338 = vadd.f32 %v2334, 1e-05
        %v2339 = vadd.f32 %v2335, 1e-05
        %v2340 = vrsqrt.pop %v2338
        %v2341 = vmul.f32 %v2340, %v2338
        %v2342 = vmul.f32 %v2341, %v2340
        %v2343 = vmul.f32 0.5, %v2342
        %v2344 = vsub.f32 1.5, %v2343
        %v2345 = vmul.f32 %v2340, %v2344
        %vm2346 = vweird.f32 %v2338
        %vm2347 = vweird.f32 %v2340
        %vm2348 = vmor %vm2346, %vm2347
        %v2349 = vsel %vm2348, %v2340, %v2345
        %v2350 = vrsqrt.pop %v2339
        %v2351 = vmul.f32 %v2350, %v2339
        %v2352 = vmul.f32 %v2351, %v2350
        %v2353 = vmul.f32 0.5, %v2352
        %v2354 = vsub.f32 1.5, %v2353
        %v2355 = vmul.f32 %v2350, %v2354
        %vm2356 = vweird.f32 %v2339
        %vm2357 = vweird.f32 %v2350
        %vm2358 = vmor %vm2356, %vm2357
        %v2359 = vsel %vm2358, %v2350, %v2355
        %v2360 = vmul.f32 %v2336, %v2349
        %v2361 = vmul.f32 %v2337, %v2359
        %v2362 = vmul.f32 %v2360, %v588
        %v2363 = vmul.f32 %v2361, %v588
        %v2364 = vadd.f32 %v2362, %v592
        %v2365 = vadd.f32 %v2363, %v592
        %v2366 = vpack.c.bf16 %v2365, %v2364
        %2367 = vmatpush.bf16.msra.mxu0 %v698
        %2368 = vmatpush.bf16.msra.mxu0 %v695
        %2369 = vmatpush.bf16.msra.mxu0 %v692
        %2370 = vmatpush.bf16.msra.mxu0 %v689
        %2371 = vmatpush.bf16.msra.mxu0 %v686
        %2372 = vmatpush.bf16.msra.mxu0 %v683
        %2373 = vmatpush.bf16.msra.mxu0 %v680
        %2374 = vmatpush.bf16.msra.mxu0 %v677
        %2375 = vmatmul.bf16.gmra.mxu0 %v2366
        %v2376 = vpop.f32.mrf.mxu0
        %v2377 = vadd.f32 %v572, %v2376
        %v2378 = vpop.f32.mrf.mxu0
        %v2379 = vadd.f32 %v572, %v2378
        %2380 = vdwg.mxu0
        %2381 = vmatpush.bf16.msra.mxu0 %v699
        %2382 = vmatpush.bf16.msra.mxu0 %v696
        %2383 = vmatpush.bf16.msra.mxu0 %v693
        %2384 = vmatpush.bf16.msra.mxu0 %v690
        %2385 = vmatpush.bf16.msra.mxu0 %v687
        %2386 = vmatpush.bf16.msra.mxu0 %v684
        %2387 = vmatpush.bf16.msra.mxu0 %v681
        %2388 = vmatpush.bf16.msra.mxu0 %v678
        %2389 = vmatmul.bf16.gmra.mxu0 %v2366
        %v2390 = vpop.f32.mrf.mxu0
        %v2391 = vadd.f32 %v573, %v2390
        %v2392 = vpop.f32.mrf.mxu0
        %v2393 = vadd.f32 %v573, %v2392
        %2394 = vdwg.mxu0
        %2395 = vmatpush.bf16.msra.mxu0 %v700
        %2396 = vmatpush.bf16.msra.mxu0 %v697
        %2397 = vmatpush.bf16.msra.mxu0 %v694
        %2398 = vmatpush.bf16.msra.mxu0 %v691
        %2399 = vmatpush.bf16.msra.mxu0 %v688
        %2400 = vmatpush.bf16.msra.mxu0 %v685
        %2401 = vmatpush.bf16.msra.mxu0 %v682
        %2402 = vmatpush.bf16.msra.mxu0 %v679
        %2403 = vmatmul.bf16.gmra.mxu0 %v2366
        %v2404 = vpop.f32.mrf.mxu0
        %v2405 = vadd.f32 %v574, %v2404
        %v2406 = vpop.f32.mrf.mxu0
        %v2407 = vadd.f32 %v574, %v2406
        %2408 = vdwg.mxu0
        %v2409 = vpack.c.bf16 %v2379, %v2377
        %v2410 = vpack.c.bf16 %v2405, %v2391
        %v2411 = vpack.c.bf16 %v2407, %v2393
        %v2414 = vunpack.c.l.b16 %v2410
        %v2415 = vunpack.c.h.b16 %v2410
        %v2416 = vunpack.c.l.b16 %v2411
        %v2417 = vunpack.c.h.b16 %v2411
        %v2418 = vpack.c.b16 %v2416, %v2414
        %v2419 = vpack.c.b16 %v2417, %v2415
        %v2422 = vunpack.c.l.bf16 %v2418
        %v2423 = vunpack.c.h.bf16 %v2418
        %v2424 = vmul.f32 %v2422, %v782
        %v2425 = vmul.f32 %v2423, %v783
        %v2426 = vmul.f32 %v2422, %v784
        %v2427 = vmul.f32 %v2423, %v785
        %v2428 = vmul.f32 %v2422, %v786
        %v2429 = vmul.f32 %v2423, %v787
        %v2430 = vmul.f32 %v2422, %v788
        %v2431 = vmul.f32 %v2423, %v789
        %v2432 = vmul.f32 %v2422, %v790
        %v2433 = vmul.f32 %v2423, %v791
        %v2434 = vmul.f32 %v2422, %v792
        %v2435 = vmul.f32 %v2423, %v793
        %v2436 = vmul.f32 %v2422, %v794
        %v2437 = vmul.f32 %v2423, %v795
        %v2438 = vmul.f32 %v2422, %v796
        %v2439 = vmul.f32 %v2423, %v797
        %v2440 = vpack.c.bf16 %v2425, %v2424
        %v2441 = vpack.c.bf16 %v2427, %v2426
        %v2442 = vpack.c.bf16 %v2429, %v2428
        %v2443 = vpack.c.bf16 %v2431, %v2430
        %v2444 = vpack.c.bf16 %v2433, %v2432
        %v2445 = vpack.c.bf16 %v2435, %v2434
        %v2446 = vpack.c.bf16 %v2437, %v2436
        %v2447 = vpack.c.bf16 %v2439, %v2438
        %v2448 = vunpack.c.l.bf16 %v2419
        %v2449 = vunpack.c.h.bf16 %v2419
        %v2450 = vmul.f32 %v2448, %v782
        %v2451 = vmul.f32 %v2449, %v783
        %v2452 = vmul.f32 %v2448, %v784
        %v2453 = vmul.f32 %v2449, %v785
        %v2454 = vmul.f32 %v2448, %v786
        %v2455 = vmul.f32 %v2449, %v787
        %v2456 = vmul.f32 %v2448, %v788
        %v2457 = vmul.f32 %v2449, %v789
        %v2458 = vmul.f32 %v2448, %v790
        %v2459 = vmul.f32 %v2449, %v791
        %v2460 = vmul.f32 %v2448, %v792
        %v2461 = vmul.f32 %v2449, %v793
        %v2462 = vmul.f32 %v2448, %v794
        %v2463 = vmul.f32 %v2449, %v795
        %v2464 = vmul.f32 %v2448, %v796
        %v2465 = vmul.f32 %v2449, %v797
        %v2466 = vpack.c.bf16 %v2451, %v2450
        %v2467 = vpack.c.bf16 %v2453, %v2452
        %v2468 = vpack.c.bf16 %v2455, %v2454
        %v2469 = vpack.c.bf16 %v2457, %v2456
        %v2470 = vpack.c.bf16 %v2459, %v2458
        %v2471 = vpack.c.bf16 %v2461, %v2460
        %v2472 = vpack.c.bf16 %v2463, %v2462
        %v2473 = vpack.c.bf16 %v2465, %v2464
        %2474 = vmatpush.bf16.xpose.msra.mxu0 %v2447
        %2475 = vmatpush.bf16.xpose.msra.mxu0 %v2446
        %2476 = vmatpush.bf16.xpose.msra.mxu0 %v2445
        %2477 = vmatpush.bf16.xpose.msra.mxu0 %v2444
        %2478 = vmatpush.bf16.xpose.msra.mxu0 %v2443
        %2479 = vmatpush.bf16.xpose.msra.mxu0 %v2442
        %2480 = vmatpush.bf16.xpose.msra.mxu0 %v2441
        %2481 = vmatpush.bf16.xpose.msra.mxu0 %v2440
        %2482 = vmatmul.bf16.gmra.mxu0 %v2409
        %v2483 = vpop.f32.mrf.mxu0
        %v2484 = vadd.f32 0.0, %v2483
        %v2485 = vpop.f32.mrf.mxu0
        %v2486 = vadd.f32 0.0, %v2485
        %2487 = vdwg.mxu0
        %2488 = vmax.xlane.f32.xlu0 %v2484
        %v2489 = vpop.xlane.xlu0 %2488
        %2490 = vmax.xlane.f32.xlu0 %v2486
        %v2491 = vpop.xlane.xlu0 %2490
        %v2492 = vsub.f32 %v2484, %v2489
        %v2493 = vsub.f32 %v2486, %v2491
        %v2494 = vmul.f32 %v2492, 1.442695
        %v2495 = vpow.pop %v2494
        %v2496 = vmul.f32 %v2493, 1.442695
        %v2497 = vpow.pop %v2496
        %v2498 = vpack.c.bf16 %v2497, %v2495
        %2499 = vmatpush.bf16.msra.mxu0 %v912
        %2500 = vmatpush.bf16.msra.mxu0 %v911
        %2501 = vmatpush.bf16.msra.mxu0 %v910
        %2502 = vmatpush.bf16.msra.mxu0 %v909
        %2503 = vmatpush.bf16.msra.mxu0 %v908
        %2504 = vmatpush.bf16.msra.mxu0 %v907
        %2505 = vmatpush.bf16.msra.mxu0 %v906
        %2506 = vmatpush.bf16.msra.mxu0 %v905
        %2507 = vmatmul.bf16.gmra.mxu0 %v2498
        %v2508 = vpop.f32.mrf.mxu0
        %v2509 = vadd.f32 0.0, %v2508
        %v2510 = vpop.f32.mrf.mxu0
        %v2511 = vadd.f32 0.0, %v2510
        %2512 = vdwg.mxu0
        %2513 = vmatpush.bf16.msra.mxu0 %v2473
        %2514 = vmatpush.bf16.msra.mxu0 %v2472
        %2515 = vmatpush.bf16.msra.mxu0 %v2471
        %2516 = vmatpush.bf16.msra.mxu0 %v2470
        %2517 = vmatpush.bf16.msra.mxu0 %v2469
        %2518 = vmatpush.bf16.msra.mxu0 %v2468
        %2519 = vmatpush.bf16.msra.mxu0 %v2467
        %2520 = vmatpush.bf16.msra.mxu0 %v2466
        %2521 = vmatmul.bf16.gmra.mxu0 %v2498
        %v2522 = vpop.f32.mrf.mxu0
        %v2523 = vadd.f32 0.0, %v2522
        %v2524 = vpop.f32.mrf.mxu0
        %v2525 = vadd.f32 0.0, %v2524
        %2526 = vdwg.mxu0
        %v2527 = vrcp.pop %v2509
        %v2528 = vrcp.pop %v2511
        %v2529 = vmul.f32 %v2523, %v2527
        %v2530 = vmul.f32 %v2525, %v2528
        %v2531 = vpack.c.bf16 %v2530, %v2529
        %2532 = vmatpush.bf16.msra.mxu0 %v993
        %2533 = vmatpush.bf16.msra.mxu0 %v992
        %2534 = vmatpush.bf16.msra.mxu0 %v991
        %2535 = vmatpush.bf16.msra.mxu0 %v990
        %2536 = vmatpush.bf16.msra.mxu0 %v989
        %2537 = vmatpush.bf16.msra.mxu0 %v988
        %2538 = vmatpush.bf16.msra.mxu0 %v987
        %2539 = vmatpush.bf16.msra.mxu0 %v986
        %2540 = vmatmul.bf16.gmra.mxu0 %v2531
        %v2541 = vpop.f32.mrf.mxu0
        %v2542 = vadd.f32 %v580, %v2541
        %v2543 = vpop.f32.mrf.mxu0
        %v2544 = vadd.f32 %v580, %v2543
        %2545 = vdwg.mxu0
        %v2546 = vadd.f32 %v2364, %v2542
        %v2547 = vadd.f32 %v2365, %v2544
        %2548 = vadd.xlane.f32.xlu0 %v2546
        %v2549 = vpop.xlane.xlu0 %2548
        %2550 = vadd.xlane.f32.xlu0 %v2547
        %v2551 = vpop.xlane.xlu0 %2550
        %v2552 = vmul.f32 %v2549, %v1028
        %v2553 = vmul.f32 %v2551, %v1028
        %v2554 = vmul.f32 %v2546, %v2546
        %v2555 = vmul.f32 %v2547, %v2547
        %2556 = vadd.xlane.f32.xlu0 %v2554
        %v2557 = vpop.xlane.xlu0 %2556
        %2558 = vadd.xlane.f32.xlu0 %v2555
        %v2559 = vpop.xlane.xlu0 %2558
        %v2560 = vmul.f32 %v2557, %v1028
        %v2561 = vmul.f32 %v2559, %v1028
        %v2562 = vmul.f32 %v2552, %v2552
        %v2563 = vmul.f32 %v2553, %v2553
        %v2564 = vsub.f32 %v2560, %v2562
        %v2565 = vsub.f32 %v2561, %v2563
        %v2566 = vsub.f32 %v2546, %v2552
        %v2567 = vsub.f32 %v2547, %v2553
        %v2568 = vadd.f32 %v2564, 1e-05
        %v2569 = vadd.f32 %v2565, 1e-05
        %v2570 = vrsqrt.pop %v2568
        %v2571 = vmul.f32 %v2570, %v2568
        %v2572 = vmul.f32 %v2571, %v2570
        %v2573 = vmul.f32 0.5, %v2572
        %v2574 = vsub.f32 1.5, %v2573
        %v2575 = vmul.f32 %v2570, %v2574
        %vm2576 = vweird.f32 %v2568
        %vm2577 = vweird.f32 %v2570
        %vm2578 = vmor %vm2576, %vm2577
        %v2579 = vsel %vm2578, %v2570, %v2575
        %v2580 = vrsqrt.pop %v2569
        %v2581 = vmul.f32 %v2580, %v2569
        %v2582 = vmul.f32 %v2581, %v2580
        %v2583 = vmul.f32 0.5, %v2582
        %v2584 = vsub.f32 1.5, %v2583
        %v2585 = vmul.f32 %v2580, %v2584
        %vm2586 = vweird.f32 %v2569
        %vm2587 = vweird.f32 %v2580
        %vm2588 = vmor %vm2586, %vm2587
        %v2589 = vsel %vm2588, %v2580, %v2585
        %v2590 = vmul.f32 %v2566, %v2579
        %v2591 = vmul.f32 %v2567, %v2589
        %v2592 = vmul.f32 %v2590, %v588
        %v2593 = vmul.f32 %v2591, %v588
        %v2594 = vadd.f32 %v2592, %v592
        %v2595 = vadd.f32 %v2593, %v592
        %v2596 = vpack.c.bf16 %v2595, %v2594
        %2597 = vmatpush.bf16.msra.mxu0 %v1113
        %2598 = vmatpush.bf16.msra.mxu0 %v1112
        %2599 = vmatpush.bf16.msra.mxu0 %v1111
        %2600 = vmatpush.bf16.msra.mxu0 %v1110
        %2601 = vmatpush.bf16.msra.mxu0 %v1109
        %2602 = vmatpush.bf16.msra.mxu0 %v1108
        %2603 = vmatpush.bf16.msra.mxu0 %v1107
        %2604 = vmatpush.bf16.msra.mxu0 %v1106
        %2605 = vmatmul.bf16.gmra.mxu0 %v2596
        %v2606 = vpop.f32.mrf.mxu0
        %v2607 = vadd.f32 %v584, %v2606
        %v2608 = vpop.f32.mrf.mxu0
        %v2609 = vadd.f32 %v584, %v2608
        %2610 = vdwg.mxu0
        %v2611 = vadd.f32 %v2594, %v2607
        %v2612 = vadd.f32 %v2595, %v2609
        %2613 = vadd.xlane.f32.xlu0 %v2611
        %v2614 = vpop.xlane.xlu0 %2613
        %2615 = vadd.xlane.f32.xlu0 %v2612
        %v2616 = vpop.xlane.xlu0 %2615
        %v2617 = vmul.f32 %v2614, %v1028
        %v2618 = vmul.f32 %v2616, %v1028
        %v2619 = vmul.f32 %v2611, %v2611
        %v2620 = vmul.f32 %v2612, %v2612
        %2621 = vadd.xlane.f32.xlu0 %v2619
        %v2622 = vpop.xlane.xlu0 %2621
        %2623 = vadd.xlane.f32.xlu0 %v2620
        %v2624 = vpop.xlane.xlu0 %2623
        %v2625 = vmul.f32 %v2622, %v1028
        %v2626 = vmul.f32 %v2624, %v1028
        %v2627 = vmul.f32 %v2617, %v2617
        %v2628 = vmul.f32 %v2618, %v2618
        %v2629 = vsub.f32 %v2625, %v2627
        %v2630 = vsub.f32 %v2626, %v2628
        %v2631 = vsub.f32 %v2611, %v2617
        %v2632 = vsub.f32 %v2612, %v2618
        %v2633 = vadd.f32 %v2629, 1e-05
        %v2634 = vadd.f32 %v2630, 1e-05
        %v2635 = vrsqrt.pop %v2633
        %v2636 = vmul.f32 %v2635, %v2633
        %v2637 = vmul.f32 %v2636, %v2635
        %v2638 = vmul.f32 0.5, %v2637
        %v2639 = vsub.f32 1.5, %v2638
        %v2640 = vmul.f32 %v2635, %v2639
        %vm2641 = vweird.f32 %v2633
        %vm2642 = vweird.f32 %v2635
        %vm2643 = vmor %vm2641, %vm2642
        %v2644 = vsel %vm2643, %v2635, %v2640
        %v2645 = vrsqrt.pop %v2634
        %v2646 = vmul.f32 %v2645, %v2634
        %v2647 = vmul.f32 %v2646, %v2645
        %v2648 = vmul.f32 0.5, %v2647
        %v2649 = vsub.f32 1.5, %v2648
        %v2650 = vmul.f32 %v2645, %v2649
        %vm2651 = vweird.f32 %v2634
        %vm2652 = vweird.f32 %v2645
        %vm2653 = vmor %vm2651, %vm2652
        %v2654 = vsel %vm2653, %v2645, %v2650
        %v2655 = vmul.f32 %v2631, %v2644
        %v2656 = vmul.f32 %v2632, %v2654
        %v2657 = vmul.f32 %v2655, %v588
        %v2658 = vmul.f32 %v2656, %v588
        %v2659 = vadd.f32 %v2657, %v592
        %v2660 = vadd.f32 %v2658, %v592
        %2661 = vst [vmem:[%s489] sm:$0xff] %v2659
        %2662 = vst [vmem:[%s489 + $0x8] sm:$0xff] %v2660
        %s2663 = sand.u32 %s254, 1
        %s2664 = scalar_lea.sflag [#allocation4], %s2663
        %s2665 = sand.u32 %s254, 1
        %s2666 = smul.addr %s2665, 16
        %s2667 = scalar_lea.vmem [#allocation16], %s2666
        // Predicated region
        $region93: #{transformer_encoder.1} parent=59 // pred_check
          %p2668 = pneg %p264
        $region94: #{transformer_encoder.1} parent=59 // pred_check_branch
          %2670 = sbr.rel (%p2668) target = $region96
        $region95: #{transformer_encoder.1} parent=59 // pred_region
          %2672 = vsyncadd %s2664, 0
          %s2673 = smul.addr %s31, 2
          %s2674 = smul.addr %s2673, 8
          %s2675 = scalar_lea.hbm %s10, %s2674
          %s2676 = sshll.u32 %s2667, 4
          %s2677 = int_to_ptr.vmem [resolvable:$true] %s2676
          %s2678 = sshll.u32 %s2675, 4
          %s2679 = int_to_ptr.hbm [resolvable:$true] %s2678
          %2684 = dma.vmem_to_hbm [thread:$0]  %s2677, 256, %s2679, %s2664, 128, 128, 8
        $region96: #{transformer_encoder.1} parent=59 // pred_fallthru
          _
      $region60: #{transformer_encoder.1} parent=5 // pred_fallthru
        _
      %p2685 = scmp.le.s32.totalorder 2, %s26
      // Predicated region
      $region97: #{transformer_encoder.1} parent=5 // pred_check
        %p2686 = pneg %p2685
      $region98: #{transformer_encoder.1} parent=5 // pred_check_branch
        %2688 = sbr.rel (%p2686) target = $region100
      $region99: #{transformer_encoder.1} parent=5 // pred_region
        %s2689 = ssub.s32 %s26, 2
        // Predicated region
        $region101: #{transformer_encoder.1} parent=99 // pred_check
          %p2690 = pneg %p270
        $region102: #{transformer_encoder.1} parent=99 // pred_check_branch
          %2692 = sbr.rel (%p2690) target = $region104
        $region103: #{transformer_encoder.1} parent=99 // pred_region
          %s2693 = sand.u32 %s255, 1
          %s2694 = scalar_lea.sflag [#allocation4], %s2693
          %s2695 = sand.u32 %s255, 1
          %s2696 = smul.addr %s2695, 16
          %s2697 = scalar_lea.vmem [#allocation16], %s2696
          %2699 = dma.done %s2694, 256
        $region104: #{transformer_encoder.1} parent=99 // pred_fallthru
          _
      $region100: #{transformer_encoder.1} parent=5 // pred_fallthru
        _
    $region6: #{transformer_encoder.1} parent=1 // loop_footer
      %s30 = sadd.s32 1, %s26
    $region7: #{transformer_encoder.1} parent=1 // loop_footer_branch
      %25 = sbr.rel target = $region3
    $region8: #{transformer_encoder.1} parent=1 // loop_exit
      _
    %2700 = vsyncpa [#allocation3], 1
    %s2701 = scalar_lea.sflag [#allocation3], 1
    %2702 = vsyncpa %s2701, 1
    %2703 = vsyncpa [#allocation6], 1
    %2704 = vsyncpa [#allocation9], 1
    %2705 = vsyncpa [#allocation12], 1
    %2706 = vsyncpa [#allocation15], 1
    %2707 = vsyncpa [#allocation4], 1
    %s2708 = scalar_lea.sflag [#allocation4], 1
    %2709 = vsyncpa %s2708, 1

</llo_original>
